<compile_context>
chip_gen: v6e
topology: v6e:2x2x1
jax: 0.10.0
libtpu: 0.0.40
codegen_flags: <defaults>
</compile_context>

<pallas_src>
import functools

import jax
import jax.numpy as jnp
from jax.experimental import pallas as pl
from jax.experimental.pallas import tpu as pltpu


_LANE = 128
_SUBLANE = 8


def _device_kind():
    try:
        return jax.devices()[0].device_kind.lower()
    except Exception:
        return ""


_KIND = _device_kind()
# v5e / v6e: 128 MiB physical VMEM -> 64 MiB scoped limit + deep tiles.
# v7x: only 64 MiB physical VMEM -> stay at the conservative 32 MiB scoped
# limit with half-depth tiles (also used for anything we cannot identify).
_BIG_VMEM = ("v5" in _KIND) or ("v6" in _KIND)
_VMEM_LIMIT_BYTES = (64 if _BIG_VMEM else 32) * 1024 * 1024
_DEC_TM = 2048 if _BIG_VMEM else 1024
_CONVT_TM = 4096 if _BIG_VMEM else 2048


def _round_up(x, m):
    return (x + m - 1) // m * m


def _pick_tm(m_rows, target_tm):
    """Row tile: as big as allowed, but keep >=2 grid blocks when possible so
    both v7x TensorCores get work and a ragged last block wastes < half a tile."""
    half = _round_up(max(-(-m_rows // 2), _SUBLANE), _SUBLANE)
    return max(_SUBLANE, min(target_tm, half))


def _pad_rows_to_sublane(x2d):
    m = x2d.shape[0]
    mp = _round_up(m, _SUBLANE)
    if mp != m:
        x2d = jnp.pad(x2d, ((0, mp - m), (0, 0)))
    return mp, x2d


# ----------------------------------------------------------------------------
# Kernel 1: fused decoder + dec-slice of the ConvTranspose.
#   out = relu(relu(x @ W1 + b1) @ W2 + b2) @ Wt_dec
#   (== Conv2d(512,512,1)+ReLU+Dropout(eval)+Conv2d(512,512,1)+ReLU, then the
#    first 512 input channels of ConvTranspose2d(1280,C,2,2) as a matmul)
# bf16 matmul operands, f32 accumulation / bias / ReLU; lane-padded output.
# ----------------------------------------------------------------------------
def _decoder_convt_kernel(x_ref, w1_ref, b1_ref, w2_ref, b2_ref, wt_ref, o_ref):
    h = jnp.dot(x_ref[...], w1_ref[...], preferred_element_type=jnp.float32)
    h = jnp.maximum(h + b1_ref[...], 0.0)
    # TODO(synk): nn.Dropout(0.8) training-mode masking not implemented (identity in eval).
    h = jnp.dot(h.astype(w2_ref.dtype), w2_ref[...],
                preferred_element_type=jnp.float32)
    h = jnp.maximum(h + b2_ref[...], 0.0)
    # dec-slice of the ConvTranspose matmul, fused so the 512-wide decoder
    # activation never round-trips HBM.
    o_ref[...] = jnp.dot(h.astype(wt_ref.dtype), wt_ref[...],
                         preferred_element_type=jnp.float32).astype(o_ref.dtype)


def decoder_convt_pointwise(x2d, w1, b1, w2, b2, wt_slice, *,
                            target_tm=_DEC_TM, out_dtype=jnp.float32):
    M, K = x2d.shape
    H1 = w1.shape[1]
    H2 = w2.shape[1]
    C4 = wt_slice.shape[1]
    Np = _round_up(C4, _LANE)                 # lane-dense (unmasked) stores

    tm = _pick_tm(M, target_tm)
    Mp, xp = _pad_rows_to_sublane(x2d.astype(jnp.bfloat16))
    wtp = jnp.pad(wt_slice, ((0, 0), (0, Np - C4))).astype(jnp.bfloat16)

    out = pl.pallas_call(
        _decoder_convt_kernel,
        out_shape=jax.ShapeDtypeStruct((Mp, Np), out_dtype),
        grid_spec=pltpu.PrefetchScalarGridSpec(
            num_scalar_prefetch=0,
            grid=(pl.cdiv(Mp, tm),),
            in_specs=[
                pl.BlockSpec((tm, K), lambda i: (i, 0)),
                # Grid-invariant weights/biases are small in bf16; the implicit
                # double-buffer costs ~1.3 MiB, well within the VMEM budget
                # (use pipeline_mode=pl.Buffered(1) only if tiles are ever
                # pushed near the v7x 32 MiB scoped limit).
                pl.BlockSpec((K, H1), lambda i: (0, 0)),
                pl.BlockSpec((1, H1), lambda i: (0, 0)),
                pl.BlockSpec((H1, H2), lambda i: (0, 0)),
                pl.BlockSpec((1, H2), lambda i: (0, 0)),
                pl.BlockSpec((H2, Np), lambda i: (0, 0)),
            ],
            out_specs=pl.BlockSpec((tm, Np), lambda i: (i, 0)),
        ),
        compiler_params=pltpu.CompilerParams(
            dimension_semantics=("parallel",),
            vmem_limit_bytes=_VMEM_LIMIT_BYTES),
    )(xp,
      w1.astype(jnp.bfloat16), b1.reshape(1, -1).astype(jnp.float32),
      w2.astype(jnp.bfloat16), b2.reshape(1, -1).astype(jnp.float32),
      wtp)
    return out[:M, :C4]


# ----------------------------------------------------------------------------
# Kernel 2: one input-channel slice of ConvTranspose2d(1280, C, k=2, s=2) as a
# matmul at the source's native resolution: out = x @ Wslice + b.
# ----------------------------------------------------------------------------
def _convt_partial_kernel(x_ref, w_ref, b_ref, o_ref):
    acc = jnp.dot(x_ref[...], w_ref[...], preferred_element_type=jnp.float32)
    o_ref[...] = (acc + b_ref[...]).astype(o_ref.dtype)


def convt_partial_pointwise(x2d, w2d, bias, *, target_tm=_CONVT_TM,
                            out_dtype=jnp.float32):
    M, K = x2d.shape
    N = w2d.shape[1]
    Np = _round_up(N, _LANE)                  # lane-dense output width

    tm = _pick_tm(M, target_tm)
    Mp, xp = _pad_rows_to_sublane(x2d.astype(jnp.bfloat16))
    wp = jnp.pad(w2d, ((0, 0), (0, Np - N))).astype(jnp.bfloat16)
    bp = jnp.pad(bias.reshape(1, -1), ((0, 0), (0, Np - N))).astype(jnp.float32)

    out = pl.pallas_call(
        _convt_partial_kernel,
        out_shape=jax.ShapeDtypeStruct((Mp, Np), out_dtype),
        grid_spec=pltpu.PrefetchScalarGridSpec(
            num_scalar_prefetch=0,
            grid=(pl.cdiv(Mp, tm),),
            in_specs=[
                pl.BlockSpec((tm, K), lambda i: (i, 0)),
                pl.BlockSpec((K, Np), lambda i: (0, 0)),
                pl.BlockSpec((1, Np), lambda i: (0, 0)),
            ],
            out_specs=pl.BlockSpec((tm, Np), lambda i: (i, 0)),
        ),
        compiler_params=pltpu.CompilerParams(
            dimension_semantics=("parallel",),
            vmem_limit_bytes=_VMEM_LIMIT_BYTES),
    )(xp, wp, bp)
    return out[:M, :N]


# ----------------------------------------------------------------------------
# Glue (plain JAX): layout conversion, nearest-neighbour replication, sums.
# All glue tensors are num_classes-wide (tiny) — the 1280-channel pyramid of
# the original module is never built.
# ----------------------------------------------------------------------------
def _nchw_to_nhwc(x):
    return jnp.transpose(x, (0, 2, 3, 1))


def _nn_upsample(x_nhwc, factor):
    """Nearest-neighbour spatial upsample by `factor` (single-pass broadcast)."""
    if factor == 1:
        return x_nhwc
    n, h, w, c = x_nhwc.shape
    y = jnp.broadcast_to(x_nhwc[:, :, None, :, None, :],
                         (n, h, factor, w, factor, c))
    return y.reshape(n, h * factor, w * factor, c)


def column_decoder_forward(params, x, pool_3, pool_4):
    """x, pool_3, pool_4 in NCHW (matching the PyTorch module); returns NCHW f32.

    Nearest upsample commutes with the pointwise ConvTranspose(k=2,s=2), so the
    ConvT weight is split along its 1280 input channels into the
    [dec | pool_4 | pool_3] slices, each applied at its source's native
    resolution; the num_classes-wide partials are replicated (x4 / x2 / x1),
    summed at (4H,4W), and finally replicated into the 8x8 output blocks.
    """
    C = params["bt"].shape[0]
    C4 = 4 * C

    wt = params["wt"]                                    # (1280, 2, 2, C)
    wt_dec = wt[:512].reshape(512, C4)                   # cols in (di, dj, oc) order
    wt_p4 = wt[512:1024].reshape(512, C4)
    wt_p3 = wt[1024:1280].reshape(256, C4)
    b4 = jnp.tile(params["bt"], 4)                       # (di, dj, oc) order

    # --- decoder (two 1x1 convs + ReLU) fused with its ConvT slice, at (H, W)
    x_nhwc = _nchw_to_nhwc(x)                            # (N, H, W, 512)
    Nb, H, W, C0 = x_nhwc.shape
    part_dec = decoder_convt_pointwise(
        x_nhwc.reshape(Nb * H * W, C0),
        params["w1"], params["b1"], params["w2"], params["b2"], wt_dec)
    part_dec = part_dec.reshape(Nb, H, W, C4)

    # --- pool_4 ConvT slice at its native (2H, 2W)
    p4 = _nchw_to_nhwc(pool_4)
    part_p4 = convt_partial_pointwise(
        p4.reshape(Nb * 2 * H * 2 * W, p4.shape[-1]),
        wt_p4, jnp.zeros((C4,), jnp.float32))
    part_p4 = part_p4.reshape(Nb, 2 * H, 2 * W, C4)

    # --- pool_3 ConvT slice at its native (4H, 4W); carries the bias (once).
    p3 = _nchw_to_nhwc(pool_3)
    part_p3 = convt_partial_pointwise(
        p3.reshape(Nb * 4 * H * 4 * W, p3.shape[-1]), wt_p3, b4)
    part_p3 = part_p3.reshape(Nb, 4 * H, 4 * W, C4)

    # --- combine the tiny partials at (4H, 4W)
    small = _nn_upsample(part_dec, 4) + _nn_upsample(part_p4, 2) + part_p3
    Hz, Wz = 4 * H, 4 * W
    small = small.reshape(Nb, Hz, Wz, 2, 2, C)           # (n, p, q, di, dj, c)

    # Replicate each per-pixel (2,2) ConvT result into its 8x8 output block:
    #   out[n, 8p + 2u + di, 8q + 2v + dj, c] = small[n, p, q, di, dj, c]
    t = jnp.transpose(small, (0, 1, 3, 2, 4, 5))         # (n, p, di, q, dj, c)
    t = jnp.broadcast_to(t[:, :, None, :, :, None, :, :],
                         (Nb, Hz, 4, 2, Wz, 4, 2, C))
    out_nhwc = t.reshape(Nb, 8 * Hz, 8 * Wz, C)          # (N, 32H, 32W, C)
    return jnp.transpose(out_nhwc, (0, 3, 1, 2))         # back to NCHW


# ----------------------------------------------------------------------------
# Pure-JAX fp32 reference following the original module structure exactly.
# ----------------------------------------------------------------------------
def _upsample2x_nearest(x_nhwc):
    x = jnp.repeat(x_nhwc, 2, axis=1)
    return jnp.repeat(x, 2, axis=2)


def reference_forward(params, x, pool_3, pool_4):
    num_classes = params["bt"].shape[0]
    x_nhwc = _nchw_to_nhwc(x)
    h = jnp.maximum(jnp.einsum("nhwc,cd->nhwd", x_nhwc, params["w1"]) + params["b1"], 0.0)
    h = jnp.maximum(jnp.einsum("nhwc,cd->nhwd", h, params["w2"]) + params["b2"], 0.0)
    y = _upsample2x_nearest(h)
    y = jnp.concatenate([y, _nchw_to_nhwc(pool_4)], axis=-1)
    y = _upsample2x_nearest(y)
    y = jnp.concatenate([y, _nchw_to_nhwc(pool_3)], axis=-1)
    y = _upsample2x_nearest(y)
    y = _upsample2x_nearest(y)
    Nb, Hh, Ww, Cin = y.shape
    o = jnp.einsum("nhwc,cijk->nhwijk", y, params["wt"]) + params["bt"]
    o = jnp.transpose(o, (0, 1, 3, 2, 4, 5)).reshape(Nb, 2 * Hh, 2 * Ww, num_classes)
    return jnp.transpose(o, (0, 3, 1, 2))


def init_params(key, num_classes):
    k1, k2, k3, k4, k5, k6 = jax.random.split(key, 6)
    # Conv2d(512,512,1) weights stored as (in, out) so y = x @ W + b.
    w1 = jax.random.normal(k1, (512, 512), jnp.float32) * 0.02
    b1 = jax.random.normal(k2, (512,), jnp.float32) * 0.02
    w2 = jax.random.normal(k3, (512, 512), jnp.float32) * 0.02
    b2 = jax.random.normal(k4, (512,), jnp.float32) * 0.02
    # ConvTranspose2d(1280, C, 2, 2) weight stored as (in, kh, kw, out).
    wt = jax.random.normal(k5, (1280, 2, 2, num_classes), jnp.float32) * 0.02
    bt = jax.random.normal(k6, (num_classes,), jnp.float32) * 0.02
    return {"w1": w1, "b1": b1, "w2": w2, "b2": b2, "wt": wt, "bt": bt}


if __name__ == "__main__":
    key = jax.random.PRNGKey(0)
    kp, kx, k3, k4 = jax.random.split(key, 4)

    num_classes = 2
    Nb, H, W = 2, 2, 2
    params = init_params(kp, num_classes)

    x = jax.random.normal(kx, (Nb, 512, H, W), jnp.float32)             # VGG block-5 features
    pool_3 = jax.random.normal(k3, (Nb, 256, 4 * H, 4 * W), jnp.float32)
    pool_4 = jax.random.normal(k4, (Nb, 512, 2 * H, 2 * W), jnp.float32)

    fwd = jax.jit(functools.partial(column_decoder_forward, params))
    out = jax.block_until_ready(fwd(x, pool_3, pool_4))

    expected_shape = (Nb, num_classes, 32 * H, 32 * W)
    assert out.shape == expected_shape, (out.shape, expected_shape)

    ref = reference_forward(params, x, pool_3, pool_4)
    # bf16 matmul operands with f32 accumulation -> relaxed tolerance vs fp32 ref.
    max_err = float(jnp.max(jnp.abs(out - ref)))
    assert jnp.allclose(out, ref, atol=6e-2, rtol=6e-2), max_err

    print("KERNEL_OK")
</pallas_src>

<mosaic_0001>
module attributes {stable_mosaic.version = 11 : i64} {
  func.func @_decoder_convt_kernel(%arg0: i32, %arg1: memref<8x512xbf16, #tpu.memory_space<vmem>>, %arg2: memref<512x512xbf16, #tpu.memory_space<vmem>>, %arg3: memref<1x512xf32, #tpu.memory_space<vmem>>, %arg4: memref<512x512xbf16, #tpu.memory_space<vmem>>, %arg5: memref<1x512xf32, #tpu.memory_space<vmem>>, %arg6: memref<512x128xbf16, #tpu.memory_space<vmem>>, %arg7: memref<8x128xf32, #tpu.memory_space<vmem>>) attributes {dimension_semantics = [#tpu.dimension_semantics<parallel>], iteration_bounds = array<i64: 1>, scalar_prefetch = 0 : i64, scratch_operands = 0 : i64, tpu.core_type = #tpu.core_type<tc>, window_params = [{transform_indices = @transform_0, window_bounds = array<i64: 8, 512>}, {pipeline_mode = #tpu.pipeline_mode<synchronous>, transform_indices = @transform_1, window_bounds = array<i64: 512, 512>}, {pipeline_mode = #tpu.pipeline_mode<synchronous>, transform_indices = @transform_2, window_bounds = array<i64: 1, 512>}, {pipeline_mode = #tpu.pipeline_mode<synchronous>, transform_indices = @transform_3, window_bounds = array<i64: 512, 512>}, {pipeline_mode = #tpu.pipeline_mode<synchronous>, transform_indices = @transform_4, window_bounds = array<i64: 1, 512>}, {pipeline_mode = #tpu.pipeline_mode<synchronous>, transform_indices = @transform_5, window_bounds = array<i64: 512, 128>}, {transform_indices = @transform_6, window_bounds = array<i64: 8, 128>}]} {
    %c0 = arith.constant 0 : index
    %c0_0 = arith.constant 0 : index
    %0 = vector.load %arg1[%c0, %c0_0] : memref<8x512xbf16, #tpu.memory_space<vmem>>, vector<8x512xbf16>
    %c0_1 = arith.constant 0 : index
    %c0_2 = arith.constant 0 : index
    %1 = vector.load %arg2[%c0_1, %c0_2] : memref<512x512xbf16, #tpu.memory_space<vmem>>, vector<512x512xbf16>
    %cst = arith.constant dense<0.000000e+00> : vector<8x512xf32>
    %2 = tpu.matmul %0, %1, %cst {dimension_numbers = #tpu.dot_dimension_numbers<[1], [0], [0], [1], [0, 0, 1, 1], [], []>} : vector<8x512xbf16>, vector<512x512xbf16>, vector<8x512xf32> -> vector<8x512xf32>
    %c0_3 = arith.constant 0 : index
    %c0_4 = arith.constant 0 : index
    %3 = vector.load %arg3[%c0_3, %c0_4] : memref<1x512xf32, #tpu.memory_space<vmem>>, vector<1x512xf32>
    %4 = vector.broadcast %3 : vector<1x512xf32> to vector<8x512xf32>
    %5 = arith.addf %2, %4 : vector<8x512xf32>
    %cst_5 = arith.constant 0.000000e+00 : f32
    %6 = vector.broadcast %cst_5 : f32 to vector<8x512xf32>
    %7 = arith.maximumf %5, %6 : vector<8x512xf32>
    %8 = arith.truncf %7 : vector<8x512xf32> to vector<8x512xbf16>
    %c0_6 = arith.constant 0 : index
    %c0_7 = arith.constant 0 : index
    %9 = vector.load %arg4[%c0_6, %c0_7] : memref<512x512xbf16, #tpu.memory_space<vmem>>, vector<512x512xbf16>
    %cst_8 = arith.constant dense<0.000000e+00> : vector<8x512xf32>
    %10 = tpu.matmul %8, %9, %cst_8 {dimension_numbers = #tpu.dot_dimension_numbers<[1], [0], [0], [1], [0, 0, 1, 1], [], []>} : vector<8x512xbf16>, vector<512x512xbf16>, vector<8x512xf32> -> vector<8x512xf32>
    %c0_9 = arith.constant 0 : index
    %c0_10 = arith.constant 0 : index
    %11 = vector.load %arg5[%c0_9, %c0_10] : memref<1x512xf32, #tpu.memory_space<vmem>>, vector<1x512xf32>
    %12 = vector.broadcast %11 : vector<1x512xf32> to vector<8x512xf32>
    %13 = arith.addf %10, %12 : vector<8x512xf32>
    %cst_11 = arith.constant 0.000000e+00 : f32
    %14 = vector.broadcast %cst_11 : f32 to vector<8x512xf32>
    %15 = arith.maximumf %13, %14 : vector<8x512xf32>
    %16 = arith.truncf %15 : vector<8x512xf32> to vector<8x512xbf16>
    %c0_12 = arith.constant 0 : index
    %c0_13 = arith.constant 0 : index
    %17 = vector.load %arg6[%c0_12, %c0_13] : memref<512x128xbf16, #tpu.memory_space<vmem>>, vector<512x128xbf16>
    %cst_14 = arith.constant dense<0.000000e+00> : vector<8x128xf32>
    %18 = tpu.matmul %16, %17, %cst_14 {dimension_numbers = #tpu.dot_dimension_numbers<[1], [0], [0], [1], [0, 0, 1, 1], [], []>} : vector<8x512xbf16>, vector<512x128xbf16>, vector<8x128xf32> -> vector<8x128xf32>
    %c0_15 = arith.constant 0 : index
    %c0_16 = arith.constant 0 : index
    %19 = vector.load %arg7[%c0_15, %c0_16] : memref<8x128xf32, #tpu.memory_space<vmem>>, vector<8x128xf32>
    tpu.vector_store %arg7[%c0_15, %c0_16], %18 {strides = array<i32>} : memref<8x128xf32, #tpu.memory_space<vmem>>, vector<8x128xf32>,
    return
  }
  func.func @transform_0(%arg0: i32) -> (i32, i32) {
    %c0_i32 = arith.constant 0 : i32
    %c0_i32_0 = arith.constant 0 : i32
    return %arg0, %c0_i32 : i32, i32
  }
  func.func @transform_1(%arg0: i32) -> (i32, i32) {
    %c0_i32 = arith.constant 0 : i32
    %c0_i32_0 = arith.constant 0 : i32
    %c0_i32_1 = arith.constant 0 : i32
    return %c0_i32, %c0_i32_0 : i32, i32
  }
  func.func @transform_2(%arg0: i32) -> (i32, i32) {
    %c0_i32 = arith.constant 0 : i32
    %c0_i32_0 = arith.constant 0 : i32
    %c0_i32_1 = arith.constant 0 : i32
    return %c0_i32, %c0_i32_0 : i32, i32
  }
  func.func @transform_3(%arg0: i32) -> (i32, i32) {
    %c0_i32 = arith.constant 0 : i32
    %c0_i32_0 = arith.constant 0 : i32
    %c0_i32_1 = arith.constant 0 : i32
    return %c0_i32, %c0_i32_0 : i32, i32
  }
  func.func @transform_4(%arg0: i32) -> (i32, i32) {
    %c0_i32 = arith.constant 0 : i32
    %c0_i32_0 = arith.constant 0 : i32
    %c0_i32_1 = arith.constant 0 : i32
    return %c0_i32, %c0_i32_0 : i32, i32
  }
  func.func @transform_5(%arg0: i32) -> (i32, i32) {
    %c0_i32 = arith.constant 0 : i32
    %c0_i32_0 = arith.constant 0 : i32
    %c0_i32_1 = arith.constant 0 : i32
    return %c0_i32, %c0_i32_0 : i32, i32
  }
  func.func @transform_6(%arg0: i32) -> (i32, i32) {
    %c0_i32 = arith.constant 0 : i32
    %c0_i32_0 = arith.constant 0 : i32
    return %arg0, %c0_i32 : i32, i32
  }
}

module attributes {stable_mosaic.version = 11 : i64} {
  func.func @_convt_partial_kernel(%arg0: i32, %arg1: memref<64x256xbf16, #tpu.memory_space<vmem>>, %arg2: memref<256x128xbf16, #tpu.memory_space<vmem>>, %arg3: memref<1x128xf32, #tpu.memory_space<vmem>>, %arg4: memref<64x128xf32, #tpu.memory_space<vmem>>) attributes {dimension_semantics = [#tpu.dimension_semantics<parallel>], iteration_bounds = array<i64: 2>, scalar_prefetch = 0 : i64, scratch_operands = 0 : i64, tpu.core_type = #tpu.core_type<tc>, window_params = [{transform_indices = @transform_0, window_bounds = array<i64: 64, 256>}, {pipeline_mode = #tpu.pipeline_mode<synchronous>, transform_indices = @transform_1, window_bounds = array<i64: 256, 128>}, {pipeline_mode = #tpu.pipeline_mode<synchronous>, transform_indices = @transform_2, window_bounds = array<i64: 1, 128>}, {transform_indices = @transform_3, window_bounds = array<i64: 64, 128>}]} {
    %c0 = arith.constant 0 : index
    %c0_0 = arith.constant 0 : index
    %0 = vector.load %arg1[%c0, %c0_0] : memref<64x256xbf16, #tpu.memory_space<vmem>>, vector<64x256xbf16>
    %c0_1 = arith.constant 0 : index
    %c0_2 = arith.constant 0 : index
    %1 = vector.load %arg2[%c0_1, %c0_2] : memref<256x128xbf16, #tpu.memory_space<vmem>>, vector<256x128xbf16>
    %cst = arith.constant dense<0.000000e+00> : vector<64x128xf32>
    %2 = tpu.matmul %0, %1, %cst {dimension_numbers = #tpu.dot_dimension_numbers<[1], [0], [0], [1], [0, 0, 1, 1], [], []>} : vector<64x256xbf16>, vector<256x128xbf16>, vector<64x128xf32> -> vector<64x128xf32>
    %c0_3 = arith.constant 0 : index
    %c0_4 = arith.constant 0 : index
    %3 = vector.load %arg3[%c0_3, %c0_4] : memref<1x128xf32, #tpu.memory_space<vmem>>, vector<1x128xf32>
    %4 = vector.broadcast %3 : vector<1x128xf32> to vector<64x128xf32>
    %5 = arith.addf %2, %4 : vector<64x128xf32>
    %c0_5 = arith.constant 0 : index
    %c0_6 = arith.constant 0 : index
    %6 = vector.load %arg4[%c0_5, %c0_6] : memref<64x128xf32, #tpu.memory_space<vmem>>, vector<64x128xf32>
    tpu.vector_store %arg4[%c0_5, %c0_6], %5 {strides = array<i32>} : memref<64x128xf32, #tpu.memory_space<vmem>>, vector<64x128xf32>,
    return
  }
  func.func @transform_0(%arg0: i32) -> (i32, i32) {
    %c0_i32 = arith.constant 0 : i32
    %c0_i32_0 = arith.constant 0 : i32
    return %arg0, %c0_i32 : i32, i32
  }
  func.func @transform_1(%arg0: i32) -> (i32, i32) {
    %c0_i32 = arith.constant 0 : i32
    %c0_i32_0 = arith.constant 0 : i32
    %c0_i32_1 = arith.constant 0 : i32
    return %c0_i32, %c0_i32_0 : i32, i32
  }
  func.func @transform_2(%arg0: i32) -> (i32, i32) {
    %c0_i32 = arith.constant 0 : i32
    %c0_i32_0 = arith.constant 0 : i32
    %c0_i32_1 = arith.constant 0 : i32
    return %c0_i32, %c0_i32_0 : i32, i32
  }
  func.func @transform_3(%arg0: i32) -> (i32, i32) {
    %c0_i32 = arith.constant 0 : i32
    %c0_i32_0 = arith.constant 0 : i32
    return %arg0, %c0_i32 : i32, i32
  }
}

module attributes {stable_mosaic.version = 11 : i64} {
  func.func @_convt_partial_kernel(%arg0: i32, %arg1: memref<16x512xbf16, #tpu.memory_space<vmem>>, %arg2: memref<512x128xbf16, #tpu.memory_space<vmem>>, %arg3: memref<1x128xf32, #tpu.memory_space<vmem>>, %arg4: memref<16x128xf32, #tpu.memory_space<vmem>>) attributes {dimension_semantics = [#tpu.dimension_semantics<parallel>], iteration_bounds = array<i64: 2>, scalar_prefetch = 0 : i64, scratch_operands = 0 : i64, tpu.core_type = #tpu.core_type<tc>, window_params = [{transform_indices = @transform_0, window_bounds = array<i64: 16, 512>}, {pipeline_mode = #tpu.pipeline_mode<synchronous>, transform_indices = @transform_1, window_bounds = array<i64: 512, 128>}, {pipeline_mode = #tpu.pipeline_mode<synchronous>, transform_indices = @transform_2, window_bounds = array<i64: 1, 128>}, {transform_indices = @transform_3, window_bounds = array<i64: 16, 128>}]} {
    %c0 = arith.constant 0 : index
    %c0_0 = arith.constant 0 : index
    %0 = vector.load %arg1[%c0, %c0_0] : memref<16x512xbf16, #tpu.memory_space<vmem>>, vector<16x512xbf16>
    %c0_1 = arith.constant 0 : index
    %c0_2 = arith.constant 0 : index
    %1 = vector.load %arg2[%c0_1, %c0_2] : memref<512x128xbf16, #tpu.memory_space<vmem>>, vector<512x128xbf16>
    %cst = arith.constant dense<0.000000e+00> : vector<16x128xf32>
    %2 = tpu.matmul %0, %1, %cst {dimension_numbers = #tpu.dot_dimension_numbers<[1], [0], [0], [1], [0, 0, 1, 1], [], []>} : vector<16x512xbf16>, vector<512x128xbf16>, vector<16x128xf32> -> vector<16x128xf32>
    %c0_3 = arith.constant 0 : index
    %c0_4 = arith.constant 0 : index
    %3 = vector.load %arg3[%c0_3, %c0_4] : memref<1x128xf32, #tpu.memory_space<vmem>>, vector<1x128xf32>
    %4 = vector.broadcast %3 : vector<1x128xf32> to vector<16x128xf32>
    %5 = arith.addf %2, %4 : vector<16x128xf32>
    %c0_5 = arith.constant 0 : index
    %c0_6 = arith.constant 0 : index
    %6 = vector.load %arg4[%c0_5, %c0_6] : memref<16x128xf32, #tpu.memory_space<vmem>>, vector<16x128xf32>
    tpu.vector_store %arg4[%c0_5, %c0_6], %5 {strides = array<i32>} : memref<16x128xf32, #tpu.memory_space<vmem>>, vector<16x128xf32>,
    return
  }
  func.func @transform_0(%arg0: i32) -> (i32, i32) {
    %c0_i32 = arith.constant 0 : i32
    %c0_i32_0 = arith.constant 0 : i32
    return %arg0, %c0_i32 : i32, i32
  }
  func.func @transform_1(%arg0: i32) -> (i32, i32) {
    %c0_i32 = arith.constant 0 : i32
    %c0_i32_0 = arith.constant 0 : i32
    %c0_i32_1 = arith.constant 0 : i32
    return %c0_i32, %c0_i32_0 : i32, i32
  }
  func.func @transform_2(%arg0: i32) -> (i32, i32) {
    %c0_i32 = arith.constant 0 : i32
    %c0_i32_0 = arith.constant 0 : i32
    %c0_i32_1 = arith.constant 0 : i32
    return %c0_i32, %c0_i32_0 : i32, i32
  }
  func.func @transform_3(%arg0: i32) -> (i32, i32) {
    %c0_i32 = arith.constant 0 : i32
    %c0_i32_0 = arith.constant 0 : i32
    return %arg0, %c0_i32 : i32, i32
  }
}

</mosaic_0001>

<llo_original>
// kernel: tile.7
$region0: #{tile.7}
  %s0 = inlined_call_operand.vmem [shape: f32[4,2], index: 0, kind: input, shape index: {}]
  %s1 = inlined_call_operand.vmem [shape: f32[1,8], index: 1, kind: output, shape index: {}]
  $region1: #{tile.7} parent=0
    #allocation0 [shape = 'u8[4096]{0}', space=vmem, size = 0x1000, scoped, tag = 'scoped mem for output reshape']
    #allocation1 [shape = 'u8[4096]{0}', space=vmem, size = 0x1000, scoped, tag = 'scoped mem for input reshape']
    %s3 = sshll.u32 1, 4
    %s4 = ssub.s32 %s3, 1
    %v5 = vld [vmem:[%s0] sm:%s4]
    %6 = vst [vmem:[#allocation1] sm:%s4] %v5
    %v7 = vld [vmem:[#allocation1] sm:$0x1]
    %vm8 = vcmask 15360
    %9 = vst.msk [vmem:[#allocation0] sm:$0x1] %vm8, %v7
    %s10 = scalar_lea.vmem [#allocation1], 3
    %v11 = vld [vmem:[%s10] sm:$0x1]
    %12 = vrot.lane.b32.xlu0 %v11, 6
    %v13 = vpop.permute.xlu0 %12
    %vm14 = vcmask 64560
    %15 = vst.msk [vmem:[#allocation0] sm:$0x1] %vm14, %v13
    %s16 = scalar_lea.vmem [#allocation1], 2
    %v17 = vld [vmem:[%s16] sm:$0x1]
    %18 = vrot.lane.b32.xlu0 %v17, 4
    %v19 = vpop.permute.xlu0 %18
    %vm20 = vcmask 48160
    %21 = vst.msk [vmem:[#allocation0] sm:$0x1] %vm20, %v19
    %s22 = scalar_lea.vmem [#allocation1], 1
    %v23 = vld [vmem:[%s22] sm:$0x1]
    %24 = vrot.lane.b32.xlu0 %v23, 2
    %v25 = vpop.permute.xlu0 %24
    %vm26 = vcmask 31760
    %27 = vst.msk [vmem:[#allocation0] sm:$0x1] %vm26, %v25
    %s29 = sshll.u32 1, 1
    %s30 = ssub.s32 %s29, 1
    %v32 = vld [vmem:[#allocation0] sm:%s30]
    %s33 = sshll.u32 1, 1
    %s34 = ssub.s32 %s33, 1
    %35 = vst [vmem:[%s1] sm:%s34] %v32

// kernel: tile.6
$region0: #{tile.6}
  #allocation2 [shape = 's32[1]{0}', space=sflag, size = 0x4, scoped, tag = 'scoped memory for tile.6']
  %s0 = inlined_call_operand.hbm [shape: f32[2], index: 0, kind: input, shape index: {}]
  %s1 = inlined_call_operand.vmem [shape: f32[4,2], index: 1, kind: output, shape index: {}]
  $region1: #{tile.6} parent=0
    #allocation0 [shape = 'u8[512]{0}', space=vmem, size = 0x400, scoped, tag = 'operand span for operand 0']
    #allocation1 [shape = 's32[1]{0}', space=sflag, size = 0x4, scoped, tag = 'scoped memory for tile.6']
    %2 = vsyncpa [#allocation1], 0
    // Predicated region
    $region2: #{tile.6} parent=1 // pred_check
      _
    $region3: #{tile.6} parent=1 // pred_check_branch
      %4 = sbr.rel (0) target = $region5
    $region4: #{tile.6} parent=1 // pred_region
      %s6 = ssub.s32 16, 16
      %7 = vsyncadd [#allocation1], %s6
      %s9 = sshll.u32 [#allocation0], 4
      %s10 = int_to_ptr.vmem [resolvable:$true] %s9
      %12 = dma.hbm_to_vmem [thread:$0]  %s0, 16, %s10, [#allocation1]
    $region5: #{tile.6} parent=1 // pred_fallthru
      _
    // Predicated region
    $region6: #{tile.6} parent=1 // pred_check
      _
    $region7: #{tile.6} parent=1 // pred_check_branch
      %14 = sbr.rel (0) target = $region9
    $region8: #{tile.6} parent=1 // pred_region
      %15 = dma.done [#allocation1], 16
    $region9: #{tile.6} parent=1 // pred_fallthru
      _
    %v16 = vld [vmem:[#allocation0] ss:$0 sm:$0xff]
    %17 = vst [vmem:[%s1] sm:$0xf] %v16
    %18 = vsyncpa [#allocation1], 1

// kernel: column_decoder_forward.5
$region0: #{column_decoder_forward.5}
  #allocation0 [shape = 'u32[]', space=smem, size = 0x4, offset = 0x4, fixed_abs, tag = 'smem constant byte address 0x4 - core index']
  #allocation1 [shape = 'u32[144,128]{1,0:T(1,128)}', space=vmem, size = 0x12000, scoped, tag = 'internal scratch']
  %s0 = inlined_call_operand.vmem [shape: bf16[128,256], index: 0, kind: input, shape index: {}]
  %s1 = inlined_call_operand.hbm [shape: bf16[256,128], index: 1, kind: input, shape index: {}]
  %s2 = inlined_call_operand.vmem [shape: f32[1,128], index: 2, kind: input, shape index: {}]
  %s3 = inlined_call_operand.vmem [shape: f32[128,128], index: 3, kind: output, shape index: {}]
  %s4 = sld [smem:[#allocation0]]
  $region49: #{column_decoder_forward.5} parent=0
    _
  %s6 = ssub.s32 1, %s4
  %s7 = scalar_select 0, %s6, %s4
  $region1: #{column_decoder_forward.5} parent=0
    #allocation2 [shape = 'u8[65536]{0}', space=vmem, size = 0x10000, scoped, tag = 'input window, operand 1, single buffered']
    #allocation3 [shape = 's32[2]{0}', space=sflag, size = 0x8, scoped, tag = 'scoped memory for column_decoder_forward.5']
    %8 = vsyncpa [#allocation3], 0
    loop: start=0, step=1, limit=4
    $region2: #{column_decoder_forward.5} parent=1 // loop_pre_header
      _
    $region3: #{column_decoder_forward.5} parent=1 // loop_header
      %s10 = sphi 0, %s14
      %p11 = scmp.ge.s32.totalorder %s10, 4
      %s20 = sphi 0, %s22
      %s23 = sphi 0, %s20
      %s24 = sphi 0, %s23
      %s40 = sphi 0, %s24
      %s44 = sphi 0, %s44
      %s46 = sphi 0, %s44
      %s47 = sphi 0, %s46
      %s61 = sphi 0, %s47
      %s65 = sphi 0, %s65
      %s67 = sphi 0, %s65
      %s68 = sphi 0, %s67
      %s82 = sphi 0, %s68
      %s88 = sphi 0, %s90
      %s91 = sphi 0, %s88
      %s92 = sphi 0, %s91
      %s108 = sphi 0, %s92
    $region4: #{column_decoder_forward.5} parent=1 // loop_header_branch
      %13 = sbr.rel (%p11) target = $region8
    $region5: #{column_decoder_forward.5} parent=1 // loop_body
      %s15 = ssub.s32 %s10, 1
      %s16 = ssub.s32 %s10, 2
      %s17 = sadd.s32 %s10, 1
      %s18 = ssub.s32 %s10, %s17
      %p19 = scmp.eq.s32.totalorder %s18, 0
      %s21 = sadd.s32 %s20, 1
      %s22 = scalar_select %p19, %s20, %s21
      %p25 = pneg %p19
      %p26 = scmp.eq.s32.totalorder %s10, 1
      %p27 = por %p25, %p26
      %p28 = scmp.ne.s32.totalorder %s20, %s23
      %p29 = scmp.eq.s32.totalorder %s10, 0
      %p30 = por %p28, %p29
      %p31 = scmp.ne.s32.totalorder %s20, %s23
      %p32 = scmp.eq.s32.totalorder %s15, 1
      %p33 = por %p31, %p32
      %p34 = scmp.ne.s32.totalorder %s23, %s24
      %p35 = scmp.eq.s32.totalorder %s15, 0
      %p36 = por %p34, %p35
      %p37 = scmp.ne.s32.totalorder %s23, %s24
      %p38 = scmp.eq.s32.totalorder %s16, 1
      %p39 = por %p37, %p38
      %p41 = scmp.ne.s32.totalorder %s24, %s40
      %p42 = scmp.eq.s32.totalorder %s16, 0
      %p43 = por %p41, %p42
      %s45 = sadd.s32 %s44, 1
      %p48 = scmp.eq.s32.totalorder %s10, 1
      %p49 = scmp.ne.s32.totalorder %s44, %s46
      %p50 = scmp.eq.s32.totalorder %s10, 0
      %p51 = por %p49, %p50
      %p52 = scmp.ne.s32.totalorder %s44, %s46
      %p53 = scmp.eq.s32.totalorder %s15, 1
      %p54 = por %p52, %p53
      %p55 = scmp.ne.s32.totalorder %s46, %s47
      %p56 = scmp.eq.s32.totalorder %s15, 0
      %p57 = por %p55, %p56
      %p58 = scmp.ne.s32.totalorder %s46, %s47
      %p59 = scmp.eq.s32.totalorder %s16, 1
      %p60 = por %p58, %p59
      %p62 = scmp.ne.s32.totalorder %s47, %s61
      %p63 = scmp.eq.s32.totalorder %s16, 0
      %p64 = por %p62, %p63
      %s66 = sadd.s32 %s65, 1
      %p69 = scmp.eq.s32.totalorder %s10, 1
      %p70 = scmp.ne.s32.totalorder %s65, %s67
      %p71 = scmp.eq.s32.totalorder %s10, 0
      %p72 = por %p70, %p71
      %p73 = scmp.ne.s32.totalorder %s65, %s67
      %p74 = scmp.eq.s32.totalorder %s15, 1
      %p75 = por %p73, %p74
      %p76 = scmp.ne.s32.totalorder %s67, %s68
      %p77 = scmp.eq.s32.totalorder %s15, 0
      %p78 = por %p76, %p77
      %p79 = scmp.ne.s32.totalorder %s67, %s68
      %p80 = scmp.eq.s32.totalorder %s16, 1
      %p81 = por %p79, %p80
      %p83 = scmp.ne.s32.totalorder %s68, %s82
      %p84 = scmp.eq.s32.totalorder %s16, 0
      %p85 = por %p83, %p84
      %s86 = ssub.s32 %s10, %s17
      %p87 = scmp.eq.s32.totalorder %s86, 0
      %s89 = sadd.s32 %s88, 1
      %s90 = scalar_select %p87, %s88, %s89
      %p93 = pneg %p87
      %p94 = scmp.eq.s32.totalorder %s10, 1
      %p95 = por %p93, %p94
      %p96 = scmp.ne.s32.totalorder %s88, %s91
      %p97 = scmp.eq.s32.totalorder %s10, 0
      %p98 = por %p96, %p97
      %p99 = scmp.ne.s32.totalorder %s88, %s91
      %p100 = scmp.eq.s32.totalorder %s15, 1
      %p101 = por %p99, %p100
      %p102 = scmp.ne.s32.totalorder %s91, %s92
      %p103 = scmp.eq.s32.totalorder %s15, 0
      %p104 = por %p102, %p103
      %p105 = scmp.ne.s32.totalorder %s91, %s92
      %p106 = scmp.eq.s32.totalorder %s16, 1
      %p107 = por %p105, %p106
      %p109 = scmp.ne.s32.totalorder %s92, %s108
      %p110 = scmp.eq.s32.totalorder %s16, 0
      %p111 = por %p109, %p110
      %p112 = scmp.le.s32.totalorder 1, %s10
      %p113 = scmp.lt.s32.totalorder %s10, 3
      %p114 = pnand %p112, %p113
      %p115 = pneg %p114
      // Predicated region
      $region9: #{column_decoder_forward.5} parent=5 // pred_check
        _
      $region10: #{column_decoder_forward.5} parent=5 // pred_check_branch
        %117 = sbr.rel (%p114) target = $region12
      $region11: #{column_decoder_forward.5} parent=5 // pred_region
        %s118 = ssub.s32 %s10, 1
        // Predicated region
        $region13: #{column_decoder_forward.5} parent=11 // pred_check
          %p119 = pneg %p57
        $region14: #{column_decoder_forward.5} parent=11 // pred_check_branch
          %121 = sbr.rel (%p119) target = $region16
        $region15: #{column_decoder_forward.5} parent=11 // pred_region
          %s123 = ssub.s32 2048, 2048
          %124 = vsyncadd [#allocation3], %s123
          %s125 = sshll.u32 [#allocation2], 4
          %s126 = int_to_ptr.vmem [resolvable:$true] %s125
          %131 = dma.hbm_to_vmem [thread:$0]  %s1, 2048, %s126, [#allocation3], 64, 64, 4
        $region16: #{column_decoder_forward.5} parent=11 // pred_fallthru
          _
        // Predicated region
        $region17: #{column_decoder_forward.5} parent=11 // pred_check
          %p132 = pneg %p78
        $region18: #{column_decoder_forward.5} parent=11 // pred_check_branch
          %134 = sbr.rel (%p132) target = $region20
        $region19: #{column_decoder_forward.5} parent=11 // pred_region
          _
        $region20: #{column_decoder_forward.5} parent=11 // pred_fallthru
          _
      $region12: #{column_decoder_forward.5} parent=5 // pred_fallthru
        _
      %p135 = scmp.lt.s32.totalorder %s10, 2
      // Predicated region
      $region21: #{column_decoder_forward.5} parent=5 // pred_check
        %p136 = pneg %p135
      $region22: #{column_decoder_forward.5} parent=5 // pred_check_branch
        %138 = sbr.rel (%p136) target = $region24
      $region23: #{column_decoder_forward.5} parent=5 // pred_region
        // Predicated region
        $region25: #{column_decoder_forward.5} parent=23 // pred_check
          %p139 = pneg %p30
        $region26: #{column_decoder_forward.5} parent=23 // pred_check_branch
          %141 = sbr.rel (%p139) target = $region28
        $region27: #{column_decoder_forward.5} parent=23 // pred_region
          %s142 = smul.u32 8, %s10
          %p143 = scmp.lt.s32.totalorder %s142, 15
          %s144 = scalar_select %p143, %s142, 15
          %s145 = smul.addr %s144, 2
          %s146 = smul.addr %s145, 4
          %s147 = scalar_lea.vmem %s0, %s146
          %s148 = smul.u32 8, %s10
        $region28: #{column_decoder_forward.5} parent=23 // pred_fallthru
          _
      $region24: #{column_decoder_forward.5} parent=5 // pred_fallthru
        _
      %p149 = scmp.le.s32.totalorder 1, %s10
      %p150 = scmp.lt.s32.totalorder %s10, 3
      %p151 = pnand %p149, %p150
      %p152 = pneg %p151
      // Predicated region
      $region29: #{column_decoder_forward.5} parent=5 // pred_check
        _
      $region30: #{column_decoder_forward.5} parent=5 // pred_check_branch
        %154 = sbr.rel (%p151) target = $region32
      $region31: #{column_decoder_forward.5} parent=5 // pred_region
        %s155 = ssub.s32 %s10, 1
        // Predicated region
        $region33: #{column_decoder_forward.5} parent=31 // pred_check
          %p156 = pneg %p57
        $region34: #{column_decoder_forward.5} parent=31 // pred_check_branch
          %158 = sbr.rel (%p156) target = $region36
        $region35: #{column_decoder_forward.5} parent=31 // pred_region
          %159 = dma.done [#allocation3], 2048
        $region36: #{column_decoder_forward.5} parent=31 // pred_fallthru
          _
        %s160 = smul.u32 8, %s15
        %p161 = scmp.lt.s32.totalorder %s160, 15
        %s162 = scalar_select %p161, %s160, 15
        %s163 = smul.addr %s162, 2
        %s164 = smul.addr %s163, 4
        %s165 = scalar_lea.vmem %s0, %s164
        %p166 = pneg %p36
        %p167 = pneg %p33
        %p168 = pneg %p57
        %p169 = pneg %p54
        %p170 = pneg %p78
        %p171 = pneg %p75
        %p172 = pneg %p104
        %p173 = pneg %p101
        %s174 = smul.u32 8, %s15
        %p175 = scmp.lt.s32.totalorder %s174, 15
        %s176 = scalar_select %p175, %s174, 15
        %s177 = smul.addr %s176, 8
        %s178 = scalar_lea.vmem %s3, %s177
        %s179 = smul.u32 8, %s15
        %p180 = scmp.lt.s32.totalorder %s179, 15
        %s181 = scalar_select %p180, %s179, 15
        %s182 = smul.addr %s181, 2
        %s183 = smul.addr %s182, 4
        %s184 = scalar_lea.vmem %s0, %s183
        %s185 = smul.u32 8, %s15
        %s186 = smul.u32 8, %s15
        %p187 = scmp.lt.s32.totalorder %s186, 15
        %s188 = scalar_select %p187, %s186, 15
        %s189 = smul.addr %s188, 8
        %s190 = scalar_lea.vmem %s3, %s189
        %s191 = smul.u32 8, %s15
        %v193 = vld [vmem:[%s184] sm:$0xff]
        %v194 = vld [vmem:[%s184 + $0x8] sm:$0xff]
        %v195 = vld [vmem:[%s184 + $0x10] sm:$0xff]
        %v196 = vld [vmem:[%s184 + $0x18] sm:$0xff]
        %v197 = vld [vmem:[%s184 + $0x20] sm:$0xff]
        %v198 = vld [vmem:[%s184 + $0x28] sm:$0xff]
        %v199 = vld [vmem:[%s184 + $0x30] sm:$0xff]
        %v200 = vld [vmem:[%s184 + $0x38] sm:$0xff]
        %v201 = vld [vmem:[#allocation2] sm:$0xf]
        %v202 = vld [vmem:[#allocation2 + $0x4] sm:$0xf]
        %v203 = vld [vmem:[#allocation2 + $0x8] sm:$0xf]
        %v204 = vld [vmem:[#allocation2 + $0xc] sm:$0xf]
        %v205 = vld [vmem:[#allocation2 + $0x10] sm:$0xf]
        %v206 = vld [vmem:[#allocation2 + $0x14] sm:$0xf]
        %v207 = vld [vmem:[#allocation2 + $0x18] sm:$0xf]
        %v208 = vld [vmem:[#allocation2 + $0x1c] sm:$0xf]
        %v209 = vld [vmem:[#allocation2 + $0x20] sm:$0xf]
        %v210 = vld [vmem:[#allocation2 + $0x24] sm:$0xf]
        %v211 = vld [vmem:[#allocation2 + $0x28] sm:$0xf]
        %v212 = vld [vmem:[#allocation2 + $0x2c] sm:$0xf]
        %v213 = vld [vmem:[#allocation2 + $0x30] sm:$0xf]
        %v214 = vld [vmem:[#allocation2 + $0x34] sm:$0xf]
        %v215 = vld [vmem:[#allocation2 + $0x38] sm:$0xf]
        %v216 = vld [vmem:[#allocation2 + $0x3c] sm:$0xf]
        %v217 = vld [vmem:[#allocation2 + $0x40] sm:$0xf]
        %v218 = vld [vmem:[#allocation2 + $0x44] sm:$0xf]
        %v219 = vld [vmem:[#allocation2 + $0x48] sm:$0xf]
        %v220 = vld [vmem:[#allocation2 + $0x4c] sm:$0xf]
        %v221 = vld [vmem:[#allocation2 + $0x50] sm:$0xf]
        %v222 = vld [vmem:[#allocation2 + $0x54] sm:$0xf]
        %v223 = vld [vmem:[#allocation2 + $0x58] sm:$0xf]
        %v224 = vld [vmem:[#allocation2 + $0x5c] sm:$0xf]
        %v225 = vld [vmem:[#allocation2 + $0x60] sm:$0xf]
        %v226 = vld [vmem:[#allocation2 + $0x64] sm:$0xf]
        %v227 = vld [vmem:[#allocation2 + $0x68] sm:$0xf]
        %v228 = vld [vmem:[#allocation2 + $0x6c] sm:$0xf]
        %v229 = vld [vmem:[#allocation2 + $0x70] sm:$0xf]
        %v230 = vld [vmem:[#allocation2 + $0x74] sm:$0xf]
        %v231 = vld [vmem:[#allocation2 + $0x78] sm:$0xf]
        %v232 = vld [vmem:[#allocation2 + $0x7c] sm:$0xf]
        %v233 = vld [vmem:[%s2] sm:$0x1]
        %v235 = vlaneseq
        %v236 = vshrl.u32 %v235, 7
        %v237 = vsub.s32 0, %v236
        %v238 = vrot.slane %v233, %v237
        %v248 = vunpack.c.l.b16 %v193
        %v249 = vunpack.c.h.b16 %v193
        %v250 = vunpack.c.l.b16 %v194
        %v251 = vunpack.c.h.b16 %v194
        %v252 = vunpack.c.l.b16 %v195
        %v253 = vunpack.c.h.b16 %v195
        %v254 = vunpack.c.l.b16 %v196
        %v255 = vunpack.c.h.b16 %v196
        %v256 = vunpack.c.l.b16 %v197
        %v257 = vunpack.c.h.b16 %v197
        %v258 = vunpack.c.l.b16 %v198
        %v259 = vunpack.c.h.b16 %v198
        %v260 = vunpack.c.l.b16 %v199
        %v261 = vunpack.c.h.b16 %v199
        %v262 = vunpack.c.l.b16 %v200
        %v263 = vunpack.c.h.b16 %v200
        %v264 = vpack.c.b16 %v250, %v248
        %v265 = vpack.c.b16 %v251, %v249
        %v266 = vpack.c.b16 %v254, %v252
        %v267 = vpack.c.b16 %v255, %v253
        %v268 = vpack.c.b16 %v258, %v256
        %v269 = vpack.c.b16 %v259, %v257
        %v270 = vpack.c.b16 %v262, %v260
        %v271 = vpack.c.b16 %v263, %v261
        %v312 = vunpack.c.l.b16 %v201
        %v313 = vunpack.c.l.b16 %v202
        %v314 = vunpack.c.l.b16 %v203
        %v315 = vunpack.c.l.b16 %v204
        %v316 = vunpack.c.l.b16 %v205
        %v317 = vunpack.c.l.b16 %v206
        %v318 = vunpack.c.l.b16 %v207
        %v319 = vunpack.c.l.b16 %v208
        %v320 = vunpack.c.l.b16 %v209
        %v321 = vunpack.c.l.b16 %v210
        %v322 = vunpack.c.l.b16 %v211
        %v323 = vunpack.c.l.b16 %v212
        %v324 = vunpack.c.l.b16 %v213
        %v325 = vunpack.c.l.b16 %v214
        %v326 = vunpack.c.l.b16 %v215
        %v327 = vunpack.c.l.b16 %v216
        %v328 = vunpack.c.l.b16 %v217
        %v329 = vunpack.c.l.b16 %v218
        %v330 = vunpack.c.l.b16 %v219
        %v331 = vunpack.c.l.b16 %v220
        %v332 = vunpack.c.l.b16 %v221
        %v333 = vunpack.c.l.b16 %v222
        %v334 = vunpack.c.l.b16 %v223
        %v335 = vunpack.c.l.b16 %v224
        %v336 = vunpack.c.l.b16 %v225
        %v337 = vunpack.c.l.b16 %v226
        %v338 = vunpack.c.l.b16 %v227
        %v339 = vunpack.c.l.b16 %v228
        %v340 = vunpack.c.l.b16 %v229
        %v341 = vunpack.c.l.b16 %v230
        %v342 = vunpack.c.l.b16 %v231
        %v343 = vunpack.c.l.b16 %v232
        %v344 = vpack.c.b16 %v313, %v312
        %v345 = vpack.c.b16 %v315, %v314
        %v346 = vpack.c.b16 %v317, %v316
        %v347 = vpack.c.b16 %v319, %v318
        %v348 = vpack.c.b16 %v321, %v320
        %v349 = vpack.c.b16 %v323, %v322
        %v350 = vpack.c.b16 %v325, %v324
        %v351 = vpack.c.b16 %v327, %v326
        %v352 = vpack.c.b16 %v329, %v328
        %v353 = vpack.c.b16 %v331, %v330
        %v354 = vpack.c.b16 %v333, %v332
        %v355 = vpack.c.b16 %v335, %v334
        %v356 = vpack.c.b16 %v337, %v336
        %v357 = vpack.c.b16 %v339, %v338
        %v358 = vpack.c.b16 %v341, %v340
        %v359 = vpack.c.b16 %v343, %v342
        %376 = vmatprep.subr.bf16.mxu0 0
        %377 = vmatpush1.bf16.msra.mxu0 %v351
        %378 = vmatprep.subr.bf16.mxu0 0
        %379 = vmatpush1.bf16.msra.mxu0 %v350
        %380 = vmatprep.subr.bf16.mxu0 0
        %381 = vmatpush1.bf16.msra.mxu0 %v349
        %382 = vmatprep.subr.bf16.mxu0 0
        %383 = vmatpush1.bf16.msra.mxu0 %v348
        %384 = vmatprep.subr.bf16.mxu0 0
        %385 = vmatpush1.bf16.msra.mxu0 %v347
        %386 = vmatprep.subr.bf16.mxu0 0
        %387 = vmatpush1.bf16.msra.mxu0 %v346
        %388 = vmatprep.subr.bf16.mxu0 0
        %389 = vmatpush1.bf16.msra.mxu0 %v345
        %390 = vmatprep.subr.bf16.mxu0 0
        %391 = vmatpush1.bf16.msra.mxu0 %v344
        %392 = vmatprep.subr.bf16.mxu0 0
        %393 = vmatpush2.bf16.msra.mxu0 %v359
        %394 = vmatprep.subr.bf16.mxu0 0
        %395 = vmatpush2.bf16.msra.mxu0 %v358
        %396 = vmatprep.subr.bf16.mxu0 0
        %397 = vmatpush2.bf16.msra.mxu0 %v357
        %398 = vmatprep.subr.bf16.mxu0 0
        %399 = vmatpush2.bf16.msra.mxu0 %v356
        %400 = vmatprep.subr.bf16.mxu0 0
        %401 = vmatpush2.bf16.msra.mxu0 %v355
        %402 = vmatprep.subr.bf16.mxu0 0
        %403 = vmatpush2.bf16.msra.mxu0 %v354
        %404 = vmatprep.subr.bf16.mxu0 0
        %405 = vmatpush2.bf16.msra.mxu0 %v353
        %406 = vmatprep.subr.bf16.mxu0 0
        %407 = vmatpush2.bf16.msra.mxu0 %v352
        %408 = vmatprep.mubr.bf16.mxu0 %v265
        %409 = vmatmul.mubr.bf16.gmra.mxu0 %v264
        %v410 = vpop.f32.mrf.mxu0
        %v411 = vadd.f32 %v238, %v410
        %v412 = vpop.f32.mrf.mxu0
        %v413 = vpop.f32.mrf.mxu0
        %v414 = vadd.f32 %v238, %v413
        %v415 = vpop.f32.mrf.mxu0
        %416 = vmatprep.mubr.bf16.mxu0 %v267
        %417 = vmatmul.mubr.bf16.gmra.mxu0 %v266
        %v418 = vpop.f32.mrf.mxu0
        %v419 = vadd.f32 %v238, %v418
        %v420 = vpop.f32.mrf.mxu0
        %v421 = vpop.f32.mrf.mxu0
        %v422 = vadd.f32 %v238, %v421
        %v423 = vpop.f32.mrf.mxu0
        %424 = vmatprep.mubr.bf16.mxu0 %v269
        %425 = vmatmul.mubr.bf16.gmra.mxu0 %v268
        %v426 = vpop.f32.mrf.mxu0
        %v427 = vadd.f32 %v238, %v426
        %v428 = vpop.f32.mrf.mxu0
        %v429 = vpop.f32.mrf.mxu0
        %v430 = vadd.f32 %v238, %v429
        %v431 = vpop.f32.mrf.mxu0
        %432 = vmatprep.mubr.bf16.mxu0 %v271
        %433 = vmatmul.mubr.bf16.gmra.mxu0 %v270
        %v434 = vpop.f32.mrf.mxu0
        %v435 = vadd.f32 %v238, %v434
        %v436 = vpop.f32.mrf.mxu0
        %v437 = vpop.f32.mrf.mxu0
        %v438 = vadd.f32 %v238, %v437
        %v439 = vpop.f32.mrf.mxu0
        %440 = vdwg.mxu0
        %441 = vst [vmem:[%s190] sm:$0xff] %v411
        %442 = vst [vmem:[%s190 + $0x8] sm:$0xff] %v414
        %443 = vst [vmem:[%s190 + $0x10] sm:$0xff] %v419
        %444 = vst [vmem:[%s190 + $0x18] sm:$0xff] %v422
        %445 = vst [vmem:[%s190 + $0x20] sm:$0xff] %v427
        %446 = vst [vmem:[%s190 + $0x28] sm:$0xff] %v430
        %447 = vst [vmem:[%s190 + $0x30] sm:$0xff] %v435
        %448 = vst [vmem:[%s190 + $0x38] sm:$0xff] %v438
        %s449 = smul.u32 8, %s15
        %p450 = scmp.lt.s32.totalorder %s449, 15
        %s451 = scalar_select %p450, %s449, 15
        %s452 = smul.addr %s451, 8
        %s453 = scalar_lea.vmem %s3, %s452
        // Predicated region
        $region37: #{column_decoder_forward.5} parent=31 // pred_check
          %p454 = pneg %p101
        $region38: #{column_decoder_forward.5} parent=31 // pred_check_branch
          %456 = sbr.rel (%p454) target = $region40
        $region39: #{column_decoder_forward.5} parent=31 // pred_region
          %s457 = smul.u32 8, %s15
        $region40: #{column_decoder_forward.5} parent=31 // pred_fallthru
          _
      $region32: #{column_decoder_forward.5} parent=5 // pred_fallthru
        _
      %p458 = scmp.le.s32.totalorder 2, %s10
      // Predicated region
      $region41: #{column_decoder_forward.5} parent=5 // pred_check
        %p459 = pneg %p458
      $region42: #{column_decoder_forward.5} parent=5 // pred_check_branch
        %461 = sbr.rel (%p459) target = $region44
      $region43: #{column_decoder_forward.5} parent=5 // pred_region
        %s462 = ssub.s32 %s10, 2
        // Predicated region
        $region45: #{column_decoder_forward.5} parent=43 // pred_check
          %p463 = pneg %p107
        $region46: #{column_decoder_forward.5} parent=43 // pred_check_branch
          %465 = sbr.rel (%p463) target = $region48
        $region47: #{column_decoder_forward.5} parent=43 // pred_region
          %s466 = smul.u32 8, %s16
          %p467 = scmp.lt.s32.totalorder %s466, 15
          %s468 = scalar_select %p467, %s466, 15
          %s469 = smul.addr %s468, 8
          %s470 = scalar_lea.vmem %s3, %s469
        $region48: #{column_decoder_forward.5} parent=43 // pred_fallthru
          _
      $region44: #{column_decoder_forward.5} parent=5 // pred_fallthru
        _
    $region6: #{column_decoder_forward.5} parent=1 // loop_footer
      %s14 = sadd.s32 1, %s10
    $region7: #{column_decoder_forward.5} parent=1 // loop_footer_branch
      %9 = sbr.rel target = $region3
    $region8: #{column_decoder_forward.5} parent=1 // loop_exit
      _
    %471 = vsyncpa [#allocation3], 1
    %s472 = scalar_lea.sflag [#allocation3], 1
    %473 = vsyncpa %s472, 1

// kernel: column_decoder_forward.4
$region0: #{column_decoder_forward.4}
  #allocation0 [shape = 'u32[]', space=smem, size = 0x4, offset = 0x4, fixed_abs, tag = 'smem constant byte address 0x4 - core index']
  #allocation1 [shape = 'u32[144,128]{1,0:T(1,128)}', space=vmem, size = 0x12000, scoped, tag = 'internal scratch']
  %s0 = inlined_call_operand.vmem [shape: bf16[32,512], index: 0, kind: input, shape index: {}]
  %s1 = inlined_call_operand.hbm [shape: bf16[512,128], index: 1, kind: input, shape index: {}]
  %s2 = inlined_call_operand.vmem [shape: f32[1,128], index: 2, kind: input, shape index: {}]
  %s3 = inlined_call_operand.vmem [shape: f32[32,128], index: 3, kind: output, shape index: {}]
  %s4 = sld [smem:[#allocation0]]
  $region49: #{column_decoder_forward.4} parent=0
    _
  %s6 = ssub.s32 1, %s4
  %s7 = scalar_select 0, %s6, %s4
  $region1: #{column_decoder_forward.4} parent=0
    #allocation2 [shape = 'u8[131072]{0}', space=vmem, size = 0x20000, scoped, tag = 'input window, operand 1, single buffered']
    #allocation3 [shape = 's32[2]{0}', space=sflag, size = 0x8, scoped, tag = 'scoped memory for column_decoder_forward.4']
    %8 = vsyncpa [#allocation3], 0
    loop: start=0, step=1, limit=4
    $region2: #{column_decoder_forward.4} parent=1 // loop_pre_header
      _
    $region3: #{column_decoder_forward.4} parent=1 // loop_header
      %s10 = sphi 0, %s14
      %p11 = scmp.ge.s32.totalorder %s10, 4
      %s20 = sphi 0, %s22
      %s23 = sphi 0, %s20
      %s24 = sphi 0, %s23
      %s40 = sphi 0, %s24
      %s44 = sphi 0, %s44
      %s46 = sphi 0, %s44
      %s47 = sphi 0, %s46
      %s61 = sphi 0, %s47
      %s65 = sphi 0, %s65
      %s67 = sphi 0, %s65
      %s68 = sphi 0, %s67
      %s82 = sphi 0, %s68
      %s88 = sphi 0, %s90
      %s91 = sphi 0, %s88
      %s92 = sphi 0, %s91
      %s108 = sphi 0, %s92
    $region4: #{column_decoder_forward.4} parent=1 // loop_header_branch
      %13 = sbr.rel (%p11) target = $region8
    $region5: #{column_decoder_forward.4} parent=1 // loop_body
      %s15 = ssub.s32 %s10, 1
      %s16 = ssub.s32 %s10, 2
      %s17 = sadd.s32 %s10, 1
      %s18 = ssub.s32 %s10, %s17
      %p19 = scmp.eq.s32.totalorder %s18, 0
      %s21 = sadd.s32 %s20, 1
      %s22 = scalar_select %p19, %s20, %s21
      %p25 = pneg %p19
      %p26 = scmp.eq.s32.totalorder %s10, 1
      %p27 = por %p25, %p26
      %p28 = scmp.ne.s32.totalorder %s20, %s23
      %p29 = scmp.eq.s32.totalorder %s10, 0
      %p30 = por %p28, %p29
      %p31 = scmp.ne.s32.totalorder %s20, %s23
      %p32 = scmp.eq.s32.totalorder %s15, 1
      %p33 = por %p31, %p32
      %p34 = scmp.ne.s32.totalorder %s23, %s24
      %p35 = scmp.eq.s32.totalorder %s15, 0
      %p36 = por %p34, %p35
      %p37 = scmp.ne.s32.totalorder %s23, %s24
      %p38 = scmp.eq.s32.totalorder %s16, 1
      %p39 = por %p37, %p38
      %p41 = scmp.ne.s32.totalorder %s24, %s40
      %p42 = scmp.eq.s32.totalorder %s16, 0
      %p43 = por %p41, %p42
      %s45 = sadd.s32 %s44, 1
      %p48 = scmp.eq.s32.totalorder %s10, 1
      %p49 = scmp.ne.s32.totalorder %s44, %s46
      %p50 = scmp.eq.s32.totalorder %s10, 0
      %p51 = por %p49, %p50
      %p52 = scmp.ne.s32.totalorder %s44, %s46
      %p53 = scmp.eq.s32.totalorder %s15, 1
      %p54 = por %p52, %p53
      %p55 = scmp.ne.s32.totalorder %s46, %s47
      %p56 = scmp.eq.s32.totalorder %s15, 0
      %p57 = por %p55, %p56
      %p58 = scmp.ne.s32.totalorder %s46, %s47
      %p59 = scmp.eq.s32.totalorder %s16, 1
      %p60 = por %p58, %p59
      %p62 = scmp.ne.s32.totalorder %s47, %s61
      %p63 = scmp.eq.s32.totalorder %s16, 0
      %p64 = por %p62, %p63
      %s66 = sadd.s32 %s65, 1
      %p69 = scmp.eq.s32.totalorder %s10, 1
      %p70 = scmp.ne.s32.totalorder %s65, %s67
      %p71 = scmp.eq.s32.totalorder %s10, 0
      %p72 = por %p70, %p71
      %p73 = scmp.ne.s32.totalorder %s65, %s67
      %p74 = scmp.eq.s32.totalorder %s15, 1
      %p75 = por %p73, %p74
      %p76 = scmp.ne.s32.totalorder %s67, %s68
      %p77 = scmp.eq.s32.totalorder %s15, 0
      %p78 = por %p76, %p77
      %p79 = scmp.ne.s32.totalorder %s67, %s68
      %p80 = scmp.eq.s32.totalorder %s16, 1
      %p81 = por %p79, %p80
      %p83 = scmp.ne.s32.totalorder %s68, %s82
      %p84 = scmp.eq.s32.totalorder %s16, 0
      %p85 = por %p83, %p84
      %s86 = ssub.s32 %s10, %s17
      %p87 = scmp.eq.s32.totalorder %s86, 0
      %s89 = sadd.s32 %s88, 1
      %s90 = scalar_select %p87, %s88, %s89
      %p93 = pneg %p87
      %p94 = scmp.eq.s32.totalorder %s10, 1
      %p95 = por %p93, %p94
      %p96 = scmp.ne.s32.totalorder %s88, %s91
      %p97 = scmp.eq.s32.totalorder %s10, 0
      %p98 = por %p96, %p97
      %p99 = scmp.ne.s32.totalorder %s88, %s91
      %p100 = scmp.eq.s32.totalorder %s15, 1
      %p101 = por %p99, %p100
      %p102 = scmp.ne.s32.totalorder %s91, %s92
      %p103 = scmp.eq.s32.totalorder %s15, 0
      %p104 = por %p102, %p103
      %p105 = scmp.ne.s32.totalorder %s91, %s92
      %p106 = scmp.eq.s32.totalorder %s16, 1
      %p107 = por %p105, %p106
      %p109 = scmp.ne.s32.totalorder %s92, %s108
      %p110 = scmp.eq.s32.totalorder %s16, 0
      %p111 = por %p109, %p110
      %p112 = scmp.le.s32.totalorder 1, %s10
      %p113 = scmp.lt.s32.totalorder %s10, 3
      %p114 = pnand %p112, %p113
      %p115 = pneg %p114
      // Predicated region
      $region9: #{column_decoder_forward.4} parent=5 // pred_check
        _
      $region10: #{column_decoder_forward.4} parent=5 // pred_check_branch
        %117 = sbr.rel (%p114) target = $region12
      $region11: #{column_decoder_forward.4} parent=5 // pred_region
        %s118 = ssub.s32 %s10, 1
        // Predicated region
        $region13: #{column_decoder_forward.4} parent=11 // pred_check
          %p119 = pneg %p57
        $region14: #{column_decoder_forward.4} parent=11 // pred_check_branch
          %121 = sbr.rel (%p119) target = $region16
        $region15: #{column_decoder_forward.4} parent=11 // pred_region
          %s123 = ssub.s32 4096, 4096
          %124 = vsyncadd [#allocation3], %s123
          %s125 = sshll.u32 [#allocation2], 4
          %s126 = int_to_ptr.vmem [resolvable:$true] %s125
          %131 = dma.hbm_to_vmem [thread:$0]  %s1, 4096, %s126, [#allocation3], 64, 64, 4
        $region16: #{column_decoder_forward.4} parent=11 // pred_fallthru
          _
        // Predicated region
        $region17: #{column_decoder_forward.4} parent=11 // pred_check
          %p132 = pneg %p78
        $region18: #{column_decoder_forward.4} parent=11 // pred_check_branch
          %134 = sbr.rel (%p132) target = $region20
        $region19: #{column_decoder_forward.4} parent=11 // pred_region
          _
        $region20: #{column_decoder_forward.4} parent=11 // pred_fallthru
          _
      $region12: #{column_decoder_forward.4} parent=5 // pred_fallthru
        _
      %p135 = scmp.lt.s32.totalorder %s10, 2
      // Predicated region
      $region21: #{column_decoder_forward.4} parent=5 // pred_check
        %p136 = pneg %p135
      $region22: #{column_decoder_forward.4} parent=5 // pred_check_branch
        %138 = sbr.rel (%p136) target = $region24
      $region23: #{column_decoder_forward.4} parent=5 // pred_region
        // Predicated region
        $region25: #{column_decoder_forward.4} parent=23 // pred_check
          %p139 = pneg %p30
        $region26: #{column_decoder_forward.4} parent=23 // pred_check_branch
          %141 = sbr.rel (%p139) target = $region28
        $region27: #{column_decoder_forward.4} parent=23 // pred_region
          %s142 = smul.u32 2, %s10
          %p143 = scmp.lt.s32.totalorder %s142, 3
          %s144 = scalar_select %p143, %s142, 3
          %s145 = smul.addr %s144, 4
          %s146 = smul.addr %s145, 4
          %s147 = scalar_lea.vmem %s0, %s146
          %s148 = smul.u32 2, %s10
        $region28: #{column_decoder_forward.4} parent=23 // pred_fallthru
          _
      $region24: #{column_decoder_forward.4} parent=5 // pred_fallthru
        _
      %p149 = scmp.le.s32.totalorder 1, %s10
      %p150 = scmp.lt.s32.totalorder %s10, 3
      %p151 = pnand %p149, %p150
      %p152 = pneg %p151
      // Predicated region
      $region29: #{column_decoder_forward.4} parent=5 // pred_check
        _
      $region30: #{column_decoder_forward.4} parent=5 // pred_check_branch
        %154 = sbr.rel (%p151) target = $region32
      $region31: #{column_decoder_forward.4} parent=5 // pred_region
        %s155 = ssub.s32 %s10, 1
        // Predicated region
        $region33: #{column_decoder_forward.4} parent=31 // pred_check
          %p156 = pneg %p57
        $region34: #{column_decoder_forward.4} parent=31 // pred_check_branch
          %158 = sbr.rel (%p156) target = $region36
        $region35: #{column_decoder_forward.4} parent=31 // pred_region
          %159 = dma.done [#allocation3], 4096
        $region36: #{column_decoder_forward.4} parent=31 // pred_fallthru
          _
        %s160 = smul.u32 2, %s15
        %p161 = scmp.lt.s32.totalorder %s160, 3
        %s162 = scalar_select %p161, %s160, 3
        %s163 = smul.addr %s162, 4
        %s164 = smul.addr %s163, 4
        %s165 = scalar_lea.vmem %s0, %s164
        %p166 = pneg %p36
        %p167 = pneg %p33
        %p168 = pneg %p57
        %p169 = pneg %p54
        %p170 = pneg %p78
        %p171 = pneg %p75
        %p172 = pneg %p104
        %p173 = pneg %p101
        %s174 = smul.u32 2, %s15
        %p175 = scmp.lt.s32.totalorder %s174, 3
        %s176 = scalar_select %p175, %s174, 3
        %s177 = smul.addr %s176, 8
        %s178 = scalar_lea.vmem %s3, %s177
        %s179 = smul.u32 2, %s15
        %p180 = scmp.lt.s32.totalorder %s179, 3
        %s181 = scalar_select %p180, %s179, 3
        %s182 = smul.addr %s181, 4
        %s183 = smul.addr %s182, 4
        %s184 = scalar_lea.vmem %s0, %s183
        %s185 = smul.u32 2, %s15
        %s186 = smul.u32 2, %s15
        %p187 = scmp.lt.s32.totalorder %s186, 3
        %s188 = scalar_select %p187, %s186, 3
        %s189 = smul.addr %s188, 8
        %s190 = scalar_lea.vmem %s3, %s189
        %s191 = smul.u32 2, %s15
        %v193 = vld [vmem:[%s184] sm:$0xff]
        %v194 = vld [vmem:[%s184 + $0x8] sm:$0xff]
        %v195 = vld [vmem:[%s184 + $0x10] sm:$0xff]
        %v196 = vld [vmem:[%s184 + $0x18] sm:$0xff]
        %v197 = vld [vmem:[#allocation2] sm:$0xf]
        %v198 = vld [vmem:[#allocation2 + $0x4] sm:$0xf]
        %v199 = vld [vmem:[#allocation2 + $0x8] sm:$0xf]
        %v200 = vld [vmem:[#allocation2 + $0xc] sm:$0xf]
        %v201 = vld [vmem:[#allocation2 + $0x10] sm:$0xf]
        %v202 = vld [vmem:[#allocation2 + $0x14] sm:$0xf]
        %v203 = vld [vmem:[#allocation2 + $0x18] sm:$0xf]
        %v204 = vld [vmem:[#allocation2 + $0x1c] sm:$0xf]
        %v205 = vld [vmem:[#allocation2 + $0x20] sm:$0xf]
        %v206 = vld [vmem:[#allocation2 + $0x24] sm:$0xf]
        %v207 = vld [vmem:[#allocation2 + $0x28] sm:$0xf]
        %v208 = vld [vmem:[#allocation2 + $0x2c] sm:$0xf]
        %v209 = vld [vmem:[#allocation2 + $0x30] sm:$0xf]
        %v210 = vld [vmem:[#allocation2 + $0x34] sm:$0xf]
        %v211 = vld [vmem:[#allocation2 + $0x38] sm:$0xf]
        %v212 = vld [vmem:[#allocation2 + $0x3c] sm:$0xf]
        %v213 = vld [vmem:[#allocation2 + $0x40] sm:$0xf]
        %v214 = vld [vmem:[#allocation2 + $0x44] sm:$0xf]
        %v215 = vld [vmem:[#allocation2 + $0x48] sm:$0xf]
        %v216 = vld [vmem:[#allocation2 + $0x4c] sm:$0xf]
        %v217 = vld [vmem:[#allocation2 + $0x50] sm:$0xf]
        %v218 = vld [vmem:[#allocation2 + $0x54] sm:$0xf]
        %v219 = vld [vmem:[#allocation2 + $0x58] sm:$0xf]
        %v220 = vld [vmem:[#allocation2 + $0x5c] sm:$0xf]
        %v221 = vld [vmem:[#allocation2 + $0x60] sm:$0xf]
        %v222 = vld [vmem:[#allocation2 + $0x64] sm:$0xf]
        %v223 = vld [vmem:[#allocation2 + $0x68] sm:$0xf]
        %v224 = vld [vmem:[#allocation2 + $0x6c] sm:$0xf]
        %v225 = vld [vmem:[#allocation2 + $0x70] sm:$0xf]
        %v226 = vld [vmem:[#allocation2 + $0x74] sm:$0xf]
        %v227 = vld [vmem:[#allocation2 + $0x78] sm:$0xf]
        %v228 = vld [vmem:[#allocation2 + $0x7c] sm:$0xf]
        %v229 = vld [vmem:[#allocation2 + $0x80] sm:$0xf]
        %v230 = vld [vmem:[#allocation2 + $0x84] sm:$0xf]
        %v231 = vld [vmem:[#allocation2 + $0x88] sm:$0xf]
        %v232 = vld [vmem:[#allocation2 + $0x8c] sm:$0xf]
        %v233 = vld [vmem:[#allocation2 + $0x90] sm:$0xf]
        %v234 = vld [vmem:[#allocation2 + $0x94] sm:$0xf]
        %v235 = vld [vmem:[#allocation2 + $0x98] sm:$0xf]
        %v236 = vld [vmem:[#allocation2 + $0x9c] sm:$0xf]
        %v237 = vld [vmem:[#allocation2 + $0xa0] sm:$0xf]
        %v238 = vld [vmem:[#allocation2 + $0xa4] sm:$0xf]
        %v239 = vld [vmem:[#allocation2 + $0xa8] sm:$0xf]
        %v240 = vld [vmem:[#allocation2 + $0xac] sm:$0xf]
        %v241 = vld [vmem:[#allocation2 + $0xb0] sm:$0xf]
        %v242 = vld [vmem:[#allocation2 + $0xb4] sm:$0xf]
        %v243 = vld [vmem:[#allocation2 + $0xb8] sm:$0xf]
        %v244 = vld [vmem:[#allocation2 + $0xbc] sm:$0xf]
        %v245 = vld [vmem:[#allocation2 + $0xc0] sm:$0xf]
        %v246 = vld [vmem:[#allocation2 + $0xc4] sm:$0xf]
        %v247 = vld [vmem:[#allocation2 + $0xc8] sm:$0xf]
        %v248 = vld [vmem:[#allocation2 + $0xcc] sm:$0xf]
        %v249 = vld [vmem:[#allocation2 + $0xd0] sm:$0xf]
        %v250 = vld [vmem:[#allocation2 + $0xd4] sm:$0xf]
        %v251 = vld [vmem:[#allocation2 + $0xd8] sm:$0xf]
        %v252 = vld [vmem:[#allocation2 + $0xdc] sm:$0xf]
        %v253 = vld [vmem:[#allocation2 + $0xe0] sm:$0xf]
        %v254 = vld [vmem:[#allocation2 + $0xe4] sm:$0xf]
        %v255 = vld [vmem:[#allocation2 + $0xe8] sm:$0xf]
        %v256 = vld [vmem:[#allocation2 + $0xec] sm:$0xf]
        %v257 = vld [vmem:[#allocation2 + $0xf0] sm:$0xf]
        %v258 = vld [vmem:[#allocation2 + $0xf4] sm:$0xf]
        %v259 = vld [vmem:[#allocation2 + $0xf8] sm:$0xf]
        %v260 = vld [vmem:[#allocation2 + $0xfc] sm:$0xf]
        %v261 = vld [vmem:[%s2] sm:$0x1]
        %v263 = vlaneseq
        %v264 = vshrl.u32 %v263, 7
        %v265 = vsub.s32 0, %v264
        %v266 = vrot.slane %v261, %v265
        %v272 = vunpack.c.l.b16 %v193
        %v273 = vunpack.c.h.b16 %v193
        %v274 = vunpack.c.l.b16 %v194
        %v275 = vunpack.c.h.b16 %v194
        %v276 = vunpack.c.l.b16 %v195
        %v277 = vunpack.c.h.b16 %v195
        %v278 = vunpack.c.l.b16 %v196
        %v279 = vunpack.c.h.b16 %v196
        %v280 = vpack.c.b16 %v276, %v272
        %v281 = vpack.c.b16 %v277, %v273
        %v282 = vpack.c.b16 %v278, %v274
        %v283 = vpack.c.b16 %v279, %v275
        %v352 = vunpack.c.l.b16 %v197
        %v353 = vunpack.c.l.b16 %v198
        %v354 = vunpack.c.l.b16 %v199
        %v355 = vunpack.c.l.b16 %v200
        %v356 = vunpack.c.l.b16 %v201
        %v357 = vunpack.c.l.b16 %v202
        %v358 = vunpack.c.l.b16 %v203
        %v359 = vunpack.c.l.b16 %v204
        %v360 = vunpack.c.l.b16 %v205
        %v361 = vunpack.c.l.b16 %v206
        %v362 = vunpack.c.l.b16 %v207
        %v363 = vunpack.c.l.b16 %v208
        %v364 = vunpack.c.l.b16 %v209
        %v365 = vunpack.c.l.b16 %v210
        %v366 = vunpack.c.l.b16 %v211
        %v367 = vunpack.c.l.b16 %v212
        %v368 = vunpack.c.l.b16 %v213
        %v369 = vunpack.c.l.b16 %v214
        %v370 = vunpack.c.l.b16 %v215
        %v371 = vunpack.c.l.b16 %v216
        %v372 = vunpack.c.l.b16 %v217
        %v373 = vunpack.c.l.b16 %v218
        %v374 = vunpack.c.l.b16 %v219
        %v375 = vunpack.c.l.b16 %v220
        %v376 = vunpack.c.l.b16 %v221
        %v377 = vunpack.c.l.b16 %v222
        %v378 = vunpack.c.l.b16 %v223
        %v379 = vunpack.c.l.b16 %v224
        %v380 = vunpack.c.l.b16 %v225
        %v381 = vunpack.c.l.b16 %v226
        %v382 = vunpack.c.l.b16 %v227
        %v383 = vunpack.c.l.b16 %v228
        %v384 = vunpack.c.l.b16 %v229
        %v385 = vunpack.c.l.b16 %v230
        %v386 = vunpack.c.l.b16 %v231
        %v387 = vunpack.c.l.b16 %v232
        %v388 = vunpack.c.l.b16 %v233
        %v389 = vunpack.c.l.b16 %v234
        %v390 = vunpack.c.l.b16 %v235
        %v391 = vunpack.c.l.b16 %v236
        %v392 = vunpack.c.l.b16 %v237
        %v393 = vunpack.c.l.b16 %v238
        %v394 = vunpack.c.l.b16 %v239
        %v395 = vunpack.c.l.b16 %v240
        %v396 = vunpack.c.l.b16 %v241
        %v397 = vunpack.c.l.b16 %v242
        %v398 = vunpack.c.l.b16 %v243
        %v399 = vunpack.c.l.b16 %v244
        %v400 = vunpack.c.l.b16 %v245
        %v401 = vunpack.c.l.b16 %v246
        %v402 = vunpack.c.l.b16 %v247
        %v403 = vunpack.c.l.b16 %v248
        %v404 = vunpack.c.l.b16 %v249
        %v405 = vunpack.c.l.b16 %v250
        %v406 = vunpack.c.l.b16 %v251
        %v407 = vunpack.c.l.b16 %v252
        %v408 = vunpack.c.l.b16 %v253
        %v409 = vunpack.c.l.b16 %v254
        %v410 = vunpack.c.l.b16 %v255
        %v411 = vunpack.c.l.b16 %v256
        %v412 = vunpack.c.l.b16 %v257
        %v413 = vunpack.c.l.b16 %v258
        %v414 = vunpack.c.l.b16 %v259
        %v415 = vunpack.c.l.b16 %v260
        %v416 = vpack.c.b16 %v353, %v352
        %v417 = vpack.c.b16 %v355, %v354
        %v418 = vpack.c.b16 %v357, %v356
        %v419 = vpack.c.b16 %v359, %v358
        %v420 = vpack.c.b16 %v361, %v360
        %v421 = vpack.c.b16 %v363, %v362
        %v422 = vpack.c.b16 %v365, %v364
        %v423 = vpack.c.b16 %v367, %v366
        %v424 = vpack.c.b16 %v369, %v368
        %v425 = vpack.c.b16 %v371, %v370
        %v426 = vpack.c.b16 %v373, %v372
        %v427 = vpack.c.b16 %v375, %v374
        %v428 = vpack.c.b16 %v377, %v376
        %v429 = vpack.c.b16 %v379, %v378
        %v430 = vpack.c.b16 %v381, %v380
        %v431 = vpack.c.b16 %v383, %v382
        %v432 = vpack.c.b16 %v385, %v384
        %v433 = vpack.c.b16 %v387, %v386
        %v434 = vpack.c.b16 %v389, %v388
        %v435 = vpack.c.b16 %v391, %v390
        %v436 = vpack.c.b16 %v393, %v392
        %v437 = vpack.c.b16 %v395, %v394
        %v438 = vpack.c.b16 %v397, %v396
        %v439 = vpack.c.b16 %v399, %v398
        %v440 = vpack.c.b16 %v401, %v400
        %v441 = vpack.c.b16 %v403, %v402
        %v442 = vpack.c.b16 %v405, %v404
        %v443 = vpack.c.b16 %v407, %v406
        %v444 = vpack.c.b16 %v409, %v408
        %v445 = vpack.c.b16 %v411, %v410
        %v446 = vpack.c.b16 %v413, %v412
        %v447 = vpack.c.b16 %v415, %v414
        %480 = vmatprep.subr.bf16.mxu0 0
        %481 = vmatpush1.bf16.msra.mxu0 %v423
        %482 = vmatprep.subr.bf16.mxu0 0
        %483 = vmatpush1.bf16.msra.mxu0 %v422
        %484 = vmatprep.subr.bf16.mxu0 0
        %485 = vmatpush1.bf16.msra.mxu0 %v421
        %486 = vmatprep.subr.bf16.mxu0 0
        %487 = vmatpush1.bf16.msra.mxu0 %v420
        %488 = vmatprep.subr.bf16.mxu0 0
        %489 = vmatpush1.bf16.msra.mxu0 %v419
        %490 = vmatprep.subr.bf16.mxu0 0
        %491 = vmatpush1.bf16.msra.mxu0 %v418
        %492 = vmatprep.subr.bf16.mxu0 0
        %493 = vmatpush1.bf16.msra.mxu0 %v417
        %494 = vmatprep.subr.bf16.mxu0 0
        %495 = vmatpush1.bf16.msra.mxu0 %v416
        %496 = vmatprep.subr.bf16.mxu0 0
        %497 = vmatpush2.bf16.msra.mxu0 %v431
        %498 = vmatprep.subr.bf16.mxu0 0
        %499 = vmatpush2.bf16.msra.mxu0 %v430
        %500 = vmatprep.subr.bf16.mxu0 0
        %501 = vmatpush2.bf16.msra.mxu0 %v429
        %502 = vmatprep.subr.bf16.mxu0 0
        %503 = vmatpush2.bf16.msra.mxu0 %v428
        %504 = vmatprep.subr.bf16.mxu0 0
        %505 = vmatpush2.bf16.msra.mxu0 %v427
        %506 = vmatprep.subr.bf16.mxu0 0
        %507 = vmatpush2.bf16.msra.mxu0 %v426
        %508 = vmatprep.subr.bf16.mxu0 0
        %509 = vmatpush2.bf16.msra.mxu0 %v425
        %510 = vmatprep.subr.bf16.mxu0 0
        %511 = vmatpush2.bf16.msra.mxu0 %v424
        %512 = vmatprep.mubr.bf16.mxu0 %v281
        %513 = vmatmul.mubr.bf16.gmra.mxu0 %v280
        %v514 = vpop.f32.mrf.mxu0
        %v515 = vadd.f32 %v266, %v514
        %v516 = vpop.f32.mrf.mxu0
        %v517 = vpop.f32.mrf.mxu0
        %v518 = vadd.f32 %v266, %v517
        %v519 = vpop.f32.mrf.mxu0
        %520 = vdwg.mxu0
        %521 = vmatprep.subr.bf16.mxu0 0
        %522 = vmatpush1.bf16.msra.mxu0 %v439
        %523 = vmatprep.subr.bf16.mxu0 0
        %524 = vmatpush1.bf16.msra.mxu0 %v438
        %525 = vmatprep.subr.bf16.mxu0 0
        %526 = vmatpush1.bf16.msra.mxu0 %v437
        %527 = vmatprep.subr.bf16.mxu0 0
        %528 = vmatpush1.bf16.msra.mxu0 %v436
        %529 = vmatprep.subr.bf16.mxu0 0
        %530 = vmatpush1.bf16.msra.mxu0 %v435
        %531 = vmatprep.subr.bf16.mxu0 0
        %532 = vmatpush1.bf16.msra.mxu0 %v434
        %533 = vmatprep.subr.bf16.mxu0 0
        %534 = vmatpush1.bf16.msra.mxu0 %v433
        %535 = vmatprep.subr.bf16.mxu0 0
        %536 = vmatpush1.bf16.msra.mxu0 %v432
        %537 = vmatprep.subr.bf16.mxu0 0
        %538 = vmatpush2.bf16.msra.mxu0 %v447
        %539 = vmatprep.subr.bf16.mxu0 0
        %540 = vmatpush2.bf16.msra.mxu0 %v446
        %541 = vmatprep.subr.bf16.mxu0 0
        %542 = vmatpush2.bf16.msra.mxu0 %v445
        %543 = vmatprep.subr.bf16.mxu0 0
        %544 = vmatpush2.bf16.msra.mxu0 %v444
        %545 = vmatprep.subr.bf16.mxu0 0
        %546 = vmatpush2.bf16.msra.mxu0 %v443
        %547 = vmatprep.subr.bf16.mxu0 0
        %548 = vmatpush2.bf16.msra.mxu0 %v442
        %549 = vmatprep.subr.bf16.mxu0 0
        %550 = vmatpush2.bf16.msra.mxu0 %v441
        %551 = vmatprep.subr.bf16.mxu0 0
        %552 = vmatpush2.bf16.msra.mxu0 %v440
        %553 = vmatprep.mubr.bf16.mxu0 %v283
        %554 = vmatmul.mubr.bf16.gmra.mxu0 %v282
        %v555 = vpop.f32.mrf.mxu0
        %v556 = vadd.f32 %v515, %v555
        %v557 = vpop.f32.mrf.mxu0
        %v558 = vpop.f32.mrf.mxu0
        %v559 = vadd.f32 %v518, %v558
        %v560 = vpop.f32.mrf.mxu0
        %561 = vdwg.mxu0
        %562 = vst [vmem:[%s190] sm:$0xff] %v556
        %563 = vst [vmem:[%s190 + $0x8] sm:$0xff] %v559
        %s564 = smul.u32 2, %s15
        %p565 = scmp.lt.s32.totalorder %s564, 3
        %s566 = scalar_select %p565, %s564, 3
        %s567 = smul.addr %s566, 8
        %s568 = scalar_lea.vmem %s3, %s567
        // Predicated region
        $region37: #{column_decoder_forward.4} parent=31 // pred_check
          %p569 = pneg %p101
        $region38: #{column_decoder_forward.4} parent=31 // pred_check_branch
          %571 = sbr.rel (%p569) target = $region40
        $region39: #{column_decoder_forward.4} parent=31 // pred_region
          %s572 = smul.u32 2, %s15
        $region40: #{column_decoder_forward.4} parent=31 // pred_fallthru
          _
      $region32: #{column_decoder_forward.4} parent=5 // pred_fallthru
        _
      %p573 = scmp.le.s32.totalorder 2, %s10
      // Predicated region
      $region41: #{column_decoder_forward.4} parent=5 // pred_check
        %p574 = pneg %p573
      $region42: #{column_decoder_forward.4} parent=5 // pred_check_branch
        %576 = sbr.rel (%p574) target = $region44
      $region43: #{column_decoder_forward.4} parent=5 // pred_region
        %s577 = ssub.s32 %s10, 2
        // Predicated region
        $region45: #{column_decoder_forward.4} parent=43 // pred_check
          %p578 = pneg %p107
        $region46: #{column_decoder_forward.4} parent=43 // pred_check_branch
          %580 = sbr.rel (%p578) target = $region48
        $region47: #{column_decoder_forward.4} parent=43 // pred_region
          %s581 = smul.u32 2, %s16
          %p582 = scmp.lt.s32.totalorder %s581, 3
          %s583 = scalar_select %p582, %s581, 3
          %s584 = smul.addr %s583, 8
          %s585 = scalar_lea.vmem %s3, %s584
        $region48: #{column_decoder_forward.4} parent=43 // pred_fallthru
          _
      $region44: #{column_decoder_forward.4} parent=5 // pred_fallthru
        _
    $region6: #{column_decoder_forward.4} parent=1 // loop_footer
      %s14 = sadd.s32 1, %s10
    $region7: #{column_decoder_forward.4} parent=1 // loop_footer_branch
      %9 = sbr.rel target = $region3
    $region8: #{column_decoder_forward.4} parent=1 // loop_exit
      _
    %586 = vsyncpa [#allocation3], 1
    %s587 = scalar_lea.sflag [#allocation3], 1
    %588 = vsyncpa %s587, 1

// kernel: column_decoder_forward.3
$region0: #{column_decoder_forward.3}
  #allocation0 [shape = 'u32[]', space=smem, size = 0x4, offset = 0x4, fixed_abs, tag = 'smem constant byte address 0x4 - core index']
  #allocation1 [shape = 'u32[144,128]{1,0:T(1,128)}', space=vmem, size = 0x12000, scoped, tag = 'internal scratch']
  %s0 = inlined_call_operand.vmem [shape: bf16[8,512], index: 0, kind: input, shape index: {}]
  %s1 = inlined_call_operand.hbm [shape: bf16[512,512], index: 1, kind: input, shape index: {}]
  %s2 = inlined_call_operand.hbm [shape: f32[1,512], index: 2, kind: input, shape index: {}]
  %s3 = inlined_call_operand.hbm [shape: bf16[512,512], index: 3, kind: input, shape index: {}]
  %s4 = inlined_call_operand.hbm [shape: f32[1,512], index: 4, kind: input, shape index: {}]
  %s5 = inlined_call_operand.hbm [shape: bf16[512,128], index: 5, kind: input, shape index: {}]
  %s6 = inlined_call_operand.vmem [shape: f32[8,128], index: 6, kind: output, shape index: {}]
  %s7 = sld [smem:[#allocation0]]
  $region54: #{column_decoder_forward.3} parent=0
    _
  %s9 = ssub.s32 1, %s7
  %s10 = scalar_select 0, %s9, %s7
  $region1: #{column_decoder_forward.3} parent=0
    #allocation2 [shape = 'u8[524288]{0}', space=vmem, size = 0x80000, scoped, tag = 'input window, operand 1, single buffered']
    #allocation3 [shape = 's32[1]{0}', space=sflag, size = 0x4, scoped, tag = 'scoped memory for column_decoder_forward.3']
    #allocation4 [shape = 'u8[2048]{0}', space=vmem, size = 0x800, scoped, tag = 'input window, operand 2, single buffered']
    #allocation5 [shape = 's32[1]{0}', space=sflag, size = 0x4, scoped, tag = 'scoped memory for column_decoder_forward.3']
    #allocation6 [shape = 'u8[524288]{0}', space=vmem, size = 0x80000, scoped, tag = 'input window, operand 3, single buffered']
    #allocation7 [shape = 'u8[2048]{0}', space=vmem, size = 0x800, scoped, tag = 'input window, operand 4, single buffered']
    #allocation8 [shape = 's32[1]{0}', space=sflag, size = 0x4, scoped, tag = 'scoped memory for column_decoder_forward.3']
    #allocation9 [shape = 'u8[131072]{0}', space=vmem, size = 0x20000, scoped, tag = 'input window, operand 5, single buffered']
    %11 = vsyncpa [#allocation3], 0
    %12 = vsyncpa [#allocation5], 0
    %13 = vsyncpa [#allocation8], 0
    // Predicated region
    $region2: #{column_decoder_forward.3} parent=1 // pred_check
      _
    $region3: #{column_decoder_forward.3} parent=1 // pred_check_branch
      %15 = sbr.rel (0) target = $region5
    $region4: #{column_decoder_forward.3} parent=1 // pred_region
      _
    $region5: #{column_decoder_forward.3} parent=1 // pred_fallthru
      _
    // Predicated region
    $region6: #{column_decoder_forward.3} parent=1 // pred_check
      _
    $region7: #{column_decoder_forward.3} parent=1 // pred_check_branch
      %17 = sbr.rel (0) target = $region9
    $region8: #{column_decoder_forward.3} parent=1 // pred_region
      %s19 = ssub.s32 16384, 16384
      %20 = vsyncadd [#allocation3], %s19
      %s21 = sshll.u32 [#allocation2], 4
      %s22 = int_to_ptr.vmem [resolvable:$true] %s21
      %27 = dma.hbm_to_vmem [thread:$0]  %s1, 16384, %s22, [#allocation3], 256, 256, 16
    $region9: #{column_decoder_forward.3} parent=1 // pred_fallthru
      _
    // Predicated region
    $region10: #{column_decoder_forward.3} parent=1 // pred_check
      _
    $region11: #{column_decoder_forward.3} parent=1 // pred_check_branch
      %29 = sbr.rel (0) target = $region13
    $region12: #{column_decoder_forward.3} parent=1 // pred_region
      %s31 = ssub.s32 64, 64
      %32 = vsyncadd [#allocation5], %s31
      %s34 = sshll.u32 [#allocation4], 4
      %s35 = int_to_ptr.vmem [resolvable:$true] %s34
      %37 = dma.hbm_to_vmem [thread:$0]  %s2, 64, %s35, [#allocation5]
    $region13: #{column_decoder_forward.3} parent=1 // pred_fallthru
      _
    // Predicated region
    $region14: #{column_decoder_forward.3} parent=1 // pred_check
      _
    $region15: #{column_decoder_forward.3} parent=1 // pred_check_branch
      %39 = sbr.rel (0) target = $region17
    $region16: #{column_decoder_forward.3} parent=1 // pred_region
      %s41 = ssub.s32 16384, 16384
      %42 = vsyncadd [#allocation5], %s41
      %s43 = sshll.u32 [#allocation6], 4
      %s44 = int_to_ptr.vmem [resolvable:$true] %s43
      %49 = dma.hbm_to_vmem [thread:$0]  %s3, 16384, %s44, [#allocation5], 256, 256, 16
    $region17: #{column_decoder_forward.3} parent=1 // pred_fallthru
      _
    // Predicated region
    $region18: #{column_decoder_forward.3} parent=1 // pred_check
      _
    $region19: #{column_decoder_forward.3} parent=1 // pred_check_branch
      %51 = sbr.rel (0) target = $region21
    $region20: #{column_decoder_forward.3} parent=1 // pred_region
      %s53 = ssub.s32 64, 64
      %54 = vsyncadd [#allocation8], %s53
      %s56 = sshll.u32 [#allocation7], 4
      %s57 = int_to_ptr.vmem [resolvable:$true] %s56
      %59 = dma.hbm_to_vmem [thread:$0]  %s4, 64, %s57, [#allocation8]
    $region21: #{column_decoder_forward.3} parent=1 // pred_fallthru
      _
    // Predicated region
    $region22: #{column_decoder_forward.3} parent=1 // pred_check
      _
    $region23: #{column_decoder_forward.3} parent=1 // pred_check_branch
      %61 = sbr.rel (0) target = $region25
    $region24: #{column_decoder_forward.3} parent=1 // pred_region
      %s63 = ssub.s32 4096, 4096
      %64 = vsyncadd [#allocation8], %s63
      %s65 = sshll.u32 [#allocation9], 4
      %s66 = int_to_ptr.vmem [resolvable:$true] %s65
      %71 = dma.hbm_to_vmem [thread:$0]  %s5, 4096, %s66, [#allocation8], 64, 64, 4
    $region25: #{column_decoder_forward.3} parent=1 // pred_fallthru
      _
    // Predicated region
    $region26: #{column_decoder_forward.3} parent=1 // pred_check
      _
    $region27: #{column_decoder_forward.3} parent=1 // pred_check_branch
      %73 = sbr.rel (0) target = $region29
    $region28: #{column_decoder_forward.3} parent=1 // pred_region
      %74 = dma.done [#allocation3], 16384
    $region29: #{column_decoder_forward.3} parent=1 // pred_fallthru
      _
    // Predicated region
    $region30: #{column_decoder_forward.3} parent=1 // pred_check
      _
    $region31: #{column_decoder_forward.3} parent=1 // pred_check_branch
      %76 = sbr.rel (0) target = $region33
    $region32: #{column_decoder_forward.3} parent=1 // pred_region
      %77 = dma.done [#allocation5], 64
    $region33: #{column_decoder_forward.3} parent=1 // pred_fallthru
      _
    // Predicated region
    $region34: #{column_decoder_forward.3} parent=1 // pred_check
      _
    $region35: #{column_decoder_forward.3} parent=1 // pred_check_branch
      %79 = sbr.rel (0) target = $region37
    $region36: #{column_decoder_forward.3} parent=1 // pred_region
      %80 = dma.done [#allocation5], 16384
    $region37: #{column_decoder_forward.3} parent=1 // pred_fallthru
      _
    // Predicated region
    $region38: #{column_decoder_forward.3} parent=1 // pred_check
      _
    $region39: #{column_decoder_forward.3} parent=1 // pred_check_branch
      %82 = sbr.rel (0) target = $region41
    $region40: #{column_decoder_forward.3} parent=1 // pred_region
      %83 = dma.done [#allocation8], 64
    $region41: #{column_decoder_forward.3} parent=1 // pred_fallthru
      _
    // Predicated region
    $region42: #{column_decoder_forward.3} parent=1 // pred_check
      _
    $region43: #{column_decoder_forward.3} parent=1 // pred_check_branch
      %85 = sbr.rel (0) target = $region45
    $region44: #{column_decoder_forward.3} parent=1 // pred_region
      %86 = dma.done [#allocation8], 4096
    $region45: #{column_decoder_forward.3} parent=1 // pred_fallthru
      _
    %v88 = vld [vmem:[%s0] sm:$0xff]
    %v89 = vld [vmem:[%s0 + $0x8] sm:$0xff]
    %v90 = vld [vmem:[#allocation2] sm:$0xff]
    %v91 = vld [vmem:[#allocation2 + $0x8] sm:$0xff]
    %v92 = vld [vmem:[#allocation2 + $0x10] sm:$0xff]
    %v93 = vld [vmem:[#allocation2 + $0x18] sm:$0xff]
    %v94 = vld [vmem:[#allocation2 + $0x20] sm:$0xff]
    %v95 = vld [vmem:[#allocation2 + $0x28] sm:$0xff]
    %v96 = vld [vmem:[#allocation2 + $0x30] sm:$0xff]
    %v97 = vld [vmem:[#allocation2 + $0x38] sm:$0xff]
    %v98 = vld [vmem:[#allocation2 + $0x40] sm:$0xff]
    %v99 = vld [vmem:[#allocation2 + $0x48] sm:$0xff]
    %v100 = vld [vmem:[#allocation2 + $0x50] sm:$0xff]
    %v101 = vld [vmem:[#allocation2 + $0x58] sm:$0xff]
    %v102 = vld [vmem:[#allocation2 + $0x60] sm:$0xff]
    %v103 = vld [vmem:[#allocation2 + $0x68] sm:$0xff]
    %v104 = vld [vmem:[#allocation2 + $0x70] sm:$0xff]
    %v105 = vld [vmem:[#allocation2 + $0x78] sm:$0xff]
    %v106 = vld [vmem:[#allocation2 + $0x80] sm:$0xff]
    %v107 = vld [vmem:[#allocation2 + $0x88] sm:$0xff]
    %v108 = vld [vmem:[#allocation2 + $0x90] sm:$0xff]
    %v109 = vld [vmem:[#allocation2 + $0x98] sm:$0xff]
    %v110 = vld [vmem:[#allocation2 + $0xa0] sm:$0xff]
    %v111 = vld [vmem:[#allocation2 + $0xa8] sm:$0xff]
    %v112 = vld [vmem:[#allocation2 + $0xb0] sm:$0xff]
    %v113 = vld [vmem:[#allocation2 + $0xb8] sm:$0xff]
    %v114 = vld [vmem:[#allocation2 + $0xc0] sm:$0xff]
    %v115 = vld [vmem:[#allocation2 + $0xc8] sm:$0xff]
    %v116 = vld [vmem:[#allocation2 + $0xd0] sm:$0xff]
    %v117 = vld [vmem:[#allocation2 + $0xd8] sm:$0xff]
    %v118 = vld [vmem:[#allocation2 + $0xe0] sm:$0xff]
    %v119 = vld [vmem:[#allocation2 + $0xe8] sm:$0xff]
    %v120 = vld [vmem:[#allocation2 + $0xf0] sm:$0xff]
    %v121 = vld [vmem:[#allocation2 + $0xf8] sm:$0xff]
    %v122 = vld [vmem:[#allocation2 + $0x100] sm:$0xff]
    %v123 = vld [vmem:[#allocation2 + $0x108] sm:$0xff]
    %v124 = vld [vmem:[#allocation2 + $0x110] sm:$0xff]
    %v125 = vld [vmem:[#allocation2 + $0x118] sm:$0xff]
    %v126 = vld [vmem:[#allocation2 + $0x120] sm:$0xff]
    %v127 = vld [vmem:[#allocation2 + $0x128] sm:$0xff]
    %v128 = vld [vmem:[#allocation2 + $0x130] sm:$0xff]
    %v129 = vld [vmem:[#allocation2 + $0x138] sm:$0xff]
    %v130 = vld [vmem:[#allocation2 + $0x140] sm:$0xff]
    %v131 = vld [vmem:[#allocation2 + $0x148] sm:$0xff]
    %v132 = vld [vmem:[#allocation2 + $0x150] sm:$0xff]
    %v133 = vld [vmem:[#allocation2 + $0x158] sm:$0xff]
    %v134 = vld [vmem:[#allocation2 + $0x160] sm:$0xff]
    %v135 = vld [vmem:[#allocation2 + $0x168] sm:$0xff]
    %v136 = vld [vmem:[#allocation2 + $0x170] sm:$0xff]
    %v137 = vld [vmem:[#allocation2 + $0x178] sm:$0xff]
    %v138 = vld [vmem:[#allocation2 + $0x180] sm:$0xff]
    %v139 = vld [vmem:[#allocation2 + $0x188] sm:$0xff]
    %v140 = vld [vmem:[#allocation2 + $0x190] sm:$0xff]
    %v141 = vld [vmem:[#allocation2 + $0x198] sm:$0xff]
    %v142 = vld [vmem:[#allocation2 + $0x1a0] sm:$0xff]
    %v143 = vld [vmem:[#allocation2 + $0x1a8] sm:$0xff]
    %v144 = vld [vmem:[#allocation2 + $0x1b0] sm:$0xff]
    %v145 = vld [vmem:[#allocation2 + $0x1b8] sm:$0xff]
    %v146 = vld [vmem:[#allocation2 + $0x1c0] sm:$0xff]
    %v147 = vld [vmem:[#allocation2 + $0x1c8] sm:$0xff]
    %v148 = vld [vmem:[#allocation2 + $0x1d0] sm:$0xff]
    %v149 = vld [vmem:[#allocation2 + $0x1d8] sm:$0xff]
    %v150 = vld [vmem:[#allocation2 + $0x1e0] sm:$0xff]
    %v151 = vld [vmem:[#allocation2 + $0x1e8] sm:$0xff]
    %v152 = vld [vmem:[#allocation2 + $0x1f0] sm:$0xff]
    %v153 = vld [vmem:[#allocation2 + $0x1f8] sm:$0xff]
    %v154 = vld [vmem:[#allocation2 + $0x200] sm:$0xff]
    %v155 = vld [vmem:[#allocation2 + $0x208] sm:$0xff]
    %v156 = vld [vmem:[#allocation2 + $0x210] sm:$0xff]
    %v157 = vld [vmem:[#allocation2 + $0x218] sm:$0xff]
    %v158 = vld [vmem:[#allocation2 + $0x220] sm:$0xff]
    %v159 = vld [vmem:[#allocation2 + $0x228] sm:$0xff]
    %v160 = vld [vmem:[#allocation2 + $0x230] sm:$0xff]
    %v161 = vld [vmem:[#allocation2 + $0x238] sm:$0xff]
    %v162 = vld [vmem:[#allocation2 + $0x240] sm:$0xff]
    %v163 = vld [vmem:[#allocation2 + $0x248] sm:$0xff]
    %v164 = vld [vmem:[#allocation2 + $0x250] sm:$0xff]
    %v165 = vld [vmem:[#allocation2 + $0x258] sm:$0xff]
    %v166 = vld [vmem:[#allocation2 + $0x260] sm:$0xff]
    %v167 = vld [vmem:[#allocation2 + $0x268] sm:$0xff]
    %v168 = vld [vmem:[#allocation2 + $0x270] sm:$0xff]
    %v169 = vld [vmem:[#allocation2 + $0x278] sm:$0xff]
    %v170 = vld [vmem:[#allocation2 + $0x280] sm:$0xff]
    %v171 = vld [vmem:[#allocation2 + $0x288] sm:$0xff]
    %v172 = vld [vmem:[#allocation2 + $0x290] sm:$0xff]
    %v173 = vld [vmem:[#allocation2 + $0x298] sm:$0xff]
    %v174 = vld [vmem:[#allocation2 + $0x2a0] sm:$0xff]
    %v175 = vld [vmem:[#allocation2 + $0x2a8] sm:$0xff]
    %v176 = vld [vmem:[#allocation2 + $0x2b0] sm:$0xff]
    %v177 = vld [vmem:[#allocation2 + $0x2b8] sm:$0xff]
    %v178 = vld [vmem:[#allocation2 + $0x2c0] sm:$0xff]
    %v179 = vld [vmem:[#allocation2 + $0x2c8] sm:$0xff]
    %v180 = vld [vmem:[#allocation2 + $0x2d0] sm:$0xff]
    %v181 = vld [vmem:[#allocation2 + $0x2d8] sm:$0xff]
    %v182 = vld [vmem:[#allocation2 + $0x2e0] sm:$0xff]
    %v183 = vld [vmem:[#allocation2 + $0x2e8] sm:$0xff]
    %v184 = vld [vmem:[#allocation2 + $0x2f0] sm:$0xff]
    %v185 = vld [vmem:[#allocation2 + $0x2f8] sm:$0xff]
    %v186 = vld [vmem:[#allocation2 + $0x300] sm:$0xff]
    %v187 = vld [vmem:[#allocation2 + $0x308] sm:$0xff]
    %v188 = vld [vmem:[#allocation2 + $0x310] sm:$0xff]
    %v189 = vld [vmem:[#allocation2 + $0x318] sm:$0xff]
    %v190 = vld [vmem:[#allocation2 + $0x320] sm:$0xff]
    %v191 = vld [vmem:[#allocation2 + $0x328] sm:$0xff]
    %v192 = vld [vmem:[#allocation2 + $0x330] sm:$0xff]
    %v193 = vld [vmem:[#allocation2 + $0x338] sm:$0xff]
    %v194 = vld [vmem:[#allocation2 + $0x340] sm:$0xff]
    %v195 = vld [vmem:[#allocation2 + $0x348] sm:$0xff]
    %v196 = vld [vmem:[#allocation2 + $0x350] sm:$0xff]
    %v197 = vld [vmem:[#allocation2 + $0x358] sm:$0xff]
    %v198 = vld [vmem:[#allocation2 + $0x360] sm:$0xff]
    %v199 = vld [vmem:[#allocation2 + $0x368] sm:$0xff]
    %v200 = vld [vmem:[#allocation2 + $0x370] sm:$0xff]
    %v201 = vld [vmem:[#allocation2 + $0x378] sm:$0xff]
    %v202 = vld [vmem:[#allocation2 + $0x380] sm:$0xff]
    %v203 = vld [vmem:[#allocation2 + $0x388] sm:$0xff]
    %v204 = vld [vmem:[#allocation2 + $0x390] sm:$0xff]
    %v205 = vld [vmem:[#allocation2 + $0x398] sm:$0xff]
    %v206 = vld [vmem:[#allocation2 + $0x3a0] sm:$0xff]
    %v207 = vld [vmem:[#allocation2 + $0x3a8] sm:$0xff]
    %v208 = vld [vmem:[#allocation2 + $0x3b0] sm:$0xff]
    %v209 = vld [vmem:[#allocation2 + $0x3b8] sm:$0xff]
    %v210 = vld [vmem:[#allocation2 + $0x3c0] sm:$0xff]
    %v211 = vld [vmem:[#allocation2 + $0x3c8] sm:$0xff]
    %v212 = vld [vmem:[#allocation2 + $0x3d0] sm:$0xff]
    %v213 = vld [vmem:[#allocation2 + $0x3d8] sm:$0xff]
    %v214 = vld [vmem:[#allocation2 + $0x3e0] sm:$0xff]
    %v215 = vld [vmem:[#allocation2 + $0x3e8] sm:$0xff]
    %v216 = vld [vmem:[#allocation2 + $0x3f0] sm:$0xff]
    %v217 = vld [vmem:[#allocation2 + $0x3f8] sm:$0xff]
    %v218 = vld [vmem:[#allocation4] sm:$0xf]
    %v220 = vlaneseq
    %v221 = vshrl.u32 %v220, 7
    %v222 = vsub.s32 0, %v221
    %v223 = vrot.slane %v218, %v222
    %v224 = vlaneseq
    %v225 = vshrl.u32 %v224, 7
    %v226 = vsub.s32 1, %v225
    %v227 = vrot.slane %v218, %v226
    %v228 = vlaneseq
    %v229 = vshrl.u32 %v228, 7
    %v230 = vsub.s32 2, %v229
    %v231 = vrot.slane %v218, %v230
    %v232 = vlaneseq
    %v233 = vshrl.u32 %v232, 7
    %v234 = vsub.s32 3, %v233
    %v235 = vrot.slane %v218, %v234
    %v242 = vunpack.c.l.b16 %v88
    %v243 = vunpack.c.h.b16 %v88
    %v244 = vunpack.c.l.b16 %v89
    %v245 = vunpack.c.h.b16 %v89
    %v246 = vpack.c.b16 %v242, %v242
    %v247 = vpack.c.b16 %v243, %v243
    %v248 = vpack.c.b16 %v244, %v244
    %v249 = vpack.c.b16 %v245, %v245
    %v382 = vunpack.c.l.b16 %v90
    %v383 = vunpack.c.h.b16 %v90
    %v384 = vunpack.c.l.b16 %v91
    %v385 = vunpack.c.h.b16 %v91
    %v386 = vunpack.c.l.b16 %v92
    %v387 = vunpack.c.h.b16 %v92
    %v388 = vunpack.c.l.b16 %v93
    %v389 = vunpack.c.h.b16 %v93
    %v390 = vunpack.c.l.b16 %v94
    %v391 = vunpack.c.h.b16 %v94
    %v392 = vunpack.c.l.b16 %v95
    %v393 = vunpack.c.h.b16 %v95
    %v394 = vunpack.c.l.b16 %v96
    %v395 = vunpack.c.h.b16 %v96
    %v396 = vunpack.c.l.b16 %v97
    %v397 = vunpack.c.h.b16 %v97
    %v398 = vunpack.c.l.b16 %v98
    %v399 = vunpack.c.h.b16 %v98
    %v400 = vunpack.c.l.b16 %v99
    %v401 = vunpack.c.h.b16 %v99
    %v402 = vunpack.c.l.b16 %v100
    %v403 = vunpack.c.h.b16 %v100
    %v404 = vunpack.c.l.b16 %v101
    %v405 = vunpack.c.h.b16 %v101
    %v406 = vunpack.c.l.b16 %v102
    %v407 = vunpack.c.h.b16 %v102
    %v408 = vunpack.c.l.b16 %v103
    %v409 = vunpack.c.h.b16 %v103
    %v410 = vunpack.c.l.b16 %v104
    %v411 = vunpack.c.h.b16 %v104
    %v412 = vunpack.c.l.b16 %v105
    %v413 = vunpack.c.h.b16 %v105
    %v414 = vunpack.c.l.b16 %v106
    %v415 = vunpack.c.h.b16 %v106
    %v416 = vunpack.c.l.b16 %v107
    %v417 = vunpack.c.h.b16 %v107
    %v418 = vunpack.c.l.b16 %v108
    %v419 = vunpack.c.h.b16 %v108
    %v420 = vunpack.c.l.b16 %v109
    %v421 = vunpack.c.h.b16 %v109
    %v422 = vunpack.c.l.b16 %v110
    %v423 = vunpack.c.h.b16 %v110
    %v424 = vunpack.c.l.b16 %v111
    %v425 = vunpack.c.h.b16 %v111
    %v426 = vunpack.c.l.b16 %v112
    %v427 = vunpack.c.h.b16 %v112
    %v428 = vunpack.c.l.b16 %v113
    %v429 = vunpack.c.h.b16 %v113
    %v430 = vunpack.c.l.b16 %v114
    %v431 = vunpack.c.h.b16 %v114
    %v432 = vunpack.c.l.b16 %v115
    %v433 = vunpack.c.h.b16 %v115
    %v434 = vunpack.c.l.b16 %v116
    %v435 = vunpack.c.h.b16 %v116
    %v436 = vunpack.c.l.b16 %v117
    %v437 = vunpack.c.h.b16 %v117
    %v438 = vunpack.c.l.b16 %v118
    %v439 = vunpack.c.h.b16 %v118
    %v440 = vunpack.c.l.b16 %v119
    %v441 = vunpack.c.h.b16 %v119
    %v442 = vunpack.c.l.b16 %v120
    %v443 = vunpack.c.h.b16 %v120
    %v444 = vunpack.c.l.b16 %v121
    %v445 = vunpack.c.h.b16 %v121
    %v446 = vunpack.c.l.b16 %v122
    %v447 = vunpack.c.h.b16 %v122
    %v448 = vunpack.c.l.b16 %v123
    %v449 = vunpack.c.h.b16 %v123
    %v450 = vunpack.c.l.b16 %v124
    %v451 = vunpack.c.h.b16 %v124
    %v452 = vunpack.c.l.b16 %v125
    %v453 = vunpack.c.h.b16 %v125
    %v454 = vunpack.c.l.b16 %v126
    %v455 = vunpack.c.h.b16 %v126
    %v456 = vunpack.c.l.b16 %v127
    %v457 = vunpack.c.h.b16 %v127
    %v458 = vunpack.c.l.b16 %v128
    %v459 = vunpack.c.h.b16 %v128
    %v460 = vunpack.c.l.b16 %v129
    %v461 = vunpack.c.h.b16 %v129
    %v462 = vunpack.c.l.b16 %v130
    %v463 = vunpack.c.h.b16 %v130
    %v464 = vunpack.c.l.b16 %v131
    %v465 = vunpack.c.h.b16 %v131
    %v466 = vunpack.c.l.b16 %v132
    %v467 = vunpack.c.h.b16 %v132
    %v468 = vunpack.c.l.b16 %v133
    %v469 = vunpack.c.h.b16 %v133
    %v470 = vunpack.c.l.b16 %v134
    %v471 = vunpack.c.h.b16 %v134
    %v472 = vunpack.c.l.b16 %v135
    %v473 = vunpack.c.h.b16 %v135
    %v474 = vunpack.c.l.b16 %v136
    %v475 = vunpack.c.h.b16 %v136
    %v476 = vunpack.c.l.b16 %v137
    %v477 = vunpack.c.h.b16 %v137
    %v478 = vunpack.c.l.b16 %v138
    %v479 = vunpack.c.h.b16 %v138
    %v480 = vunpack.c.l.b16 %v139
    %v481 = vunpack.c.h.b16 %v139
    %v482 = vunpack.c.l.b16 %v140
    %v483 = vunpack.c.h.b16 %v140
    %v484 = vunpack.c.l.b16 %v141
    %v485 = vunpack.c.h.b16 %v141
    %v486 = vunpack.c.l.b16 %v142
    %v487 = vunpack.c.h.b16 %v142
    %v488 = vunpack.c.l.b16 %v143
    %v489 = vunpack.c.h.b16 %v143
    %v490 = vunpack.c.l.b16 %v144
    %v491 = vunpack.c.h.b16 %v144
    %v492 = vunpack.c.l.b16 %v145
    %v493 = vunpack.c.h.b16 %v145
    %v494 = vunpack.c.l.b16 %v146
    %v495 = vunpack.c.h.b16 %v146
    %v496 = vunpack.c.l.b16 %v147
    %v497 = vunpack.c.h.b16 %v147
    %v498 = vunpack.c.l.b16 %v148
    %v499 = vunpack.c.h.b16 %v148
    %v500 = vunpack.c.l.b16 %v149
    %v501 = vunpack.c.h.b16 %v149
    %v502 = vunpack.c.l.b16 %v150
    %v503 = vunpack.c.h.b16 %v150
    %v504 = vunpack.c.l.b16 %v151
    %v505 = vunpack.c.h.b16 %v151
    %v506 = vunpack.c.l.b16 %v152
    %v507 = vunpack.c.h.b16 %v152
    %v508 = vunpack.c.l.b16 %v153
    %v509 = vunpack.c.h.b16 %v153
    %v510 = vunpack.c.l.b16 %v154
    %v511 = vunpack.c.h.b16 %v154
    %v512 = vunpack.c.l.b16 %v155
    %v513 = vunpack.c.h.b16 %v155
    %v514 = vunpack.c.l.b16 %v156
    %v515 = vunpack.c.h.b16 %v156
    %v516 = vunpack.c.l.b16 %v157
    %v517 = vunpack.c.h.b16 %v157
    %v518 = vunpack.c.l.b16 %v158
    %v519 = vunpack.c.h.b16 %v158
    %v520 = vunpack.c.l.b16 %v159
    %v521 = vunpack.c.h.b16 %v159
    %v522 = vunpack.c.l.b16 %v160
    %v523 = vunpack.c.h.b16 %v160
    %v524 = vunpack.c.l.b16 %v161
    %v525 = vunpack.c.h.b16 %v161
    %v526 = vunpack.c.l.b16 %v162
    %v527 = vunpack.c.h.b16 %v162
    %v528 = vunpack.c.l.b16 %v163
    %v529 = vunpack.c.h.b16 %v163
    %v530 = vunpack.c.l.b16 %v164
    %v531 = vunpack.c.h.b16 %v164
    %v532 = vunpack.c.l.b16 %v165
    %v533 = vunpack.c.h.b16 %v165
    %v534 = vunpack.c.l.b16 %v166
    %v535 = vunpack.c.h.b16 %v166
    %v536 = vunpack.c.l.b16 %v167
    %v537 = vunpack.c.h.b16 %v167
    %v538 = vunpack.c.l.b16 %v168
    %v539 = vunpack.c.h.b16 %v168
    %v540 = vunpack.c.l.b16 %v169
    %v541 = vunpack.c.h.b16 %v169
    %v542 = vunpack.c.l.b16 %v170
    %v543 = vunpack.c.h.b16 %v170
    %v544 = vunpack.c.l.b16 %v171
    %v545 = vunpack.c.h.b16 %v171
    %v546 = vunpack.c.l.b16 %v172
    %v547 = vunpack.c.h.b16 %v172
    %v548 = vunpack.c.l.b16 %v173
    %v549 = vunpack.c.h.b16 %v173
    %v550 = vunpack.c.l.b16 %v174
    %v551 = vunpack.c.h.b16 %v174
    %v552 = vunpack.c.l.b16 %v175
    %v553 = vunpack.c.h.b16 %v175
    %v554 = vunpack.c.l.b16 %v176
    %v555 = vunpack.c.h.b16 %v176
    %v556 = vunpack.c.l.b16 %v177
    %v557 = vunpack.c.h.b16 %v177
    %v558 = vunpack.c.l.b16 %v178
    %v559 = vunpack.c.h.b16 %v178
    %v560 = vunpack.c.l.b16 %v179
    %v561 = vunpack.c.h.b16 %v179
    %v562 = vunpack.c.l.b16 %v180
    %v563 = vunpack.c.h.b16 %v180
    %v564 = vunpack.c.l.b16 %v181
    %v565 = vunpack.c.h.b16 %v181
    %v566 = vunpack.c.l.b16 %v182
    %v567 = vunpack.c.h.b16 %v182
    %v568 = vunpack.c.l.b16 %v183
    %v569 = vunpack.c.h.b16 %v183
    %v570 = vunpack.c.l.b16 %v184
    %v571 = vunpack.c.h.b16 %v184
    %v572 = vunpack.c.l.b16 %v185
    %v573 = vunpack.c.h.b16 %v185
    %v574 = vunpack.c.l.b16 %v186
    %v575 = vunpack.c.h.b16 %v186
    %v576 = vunpack.c.l.b16 %v187
    %v577 = vunpack.c.h.b16 %v187
    %v578 = vunpack.c.l.b16 %v188
    %v579 = vunpack.c.h.b16 %v188
    %v580 = vunpack.c.l.b16 %v189
    %v581 = vunpack.c.h.b16 %v189
    %v582 = vunpack.c.l.b16 %v190
    %v583 = vunpack.c.h.b16 %v190
    %v584 = vunpack.c.l.b16 %v191
    %v585 = vunpack.c.h.b16 %v191
    %v586 = vunpack.c.l.b16 %v192
    %v587 = vunpack.c.h.b16 %v192
    %v588 = vunpack.c.l.b16 %v193
    %v589 = vunpack.c.h.b16 %v193
    %v590 = vunpack.c.l.b16 %v194
    %v591 = vunpack.c.h.b16 %v194
    %v592 = vunpack.c.l.b16 %v195
    %v593 = vunpack.c.h.b16 %v195
    %v594 = vunpack.c.l.b16 %v196
    %v595 = vunpack.c.h.b16 %v196
    %v596 = vunpack.c.l.b16 %v197
    %v597 = vunpack.c.h.b16 %v197
    %v598 = vunpack.c.l.b16 %v198
    %v599 = vunpack.c.h.b16 %v198
    %v600 = vunpack.c.l.b16 %v199
    %v601 = vunpack.c.h.b16 %v199
    %v602 = vunpack.c.l.b16 %v200
    %v603 = vunpack.c.h.b16 %v200
    %v604 = vunpack.c.l.b16 %v201
    %v605 = vunpack.c.h.b16 %v201
    %v606 = vunpack.c.l.b16 %v202
    %v607 = vunpack.c.h.b16 %v202
    %v608 = vunpack.c.l.b16 %v203
    %v609 = vunpack.c.h.b16 %v203
    %v610 = vunpack.c.l.b16 %v204
    %v611 = vunpack.c.h.b16 %v204
    %v612 = vunpack.c.l.b16 %v205
    %v613 = vunpack.c.h.b16 %v205
    %v614 = vunpack.c.l.b16 %v206
    %v615 = vunpack.c.h.b16 %v206
    %v616 = vunpack.c.l.b16 %v207
    %v617 = vunpack.c.h.b16 %v207
    %v618 = vunpack.c.l.b16 %v208
    %v619 = vunpack.c.h.b16 %v208
    %v620 = vunpack.c.l.b16 %v209
    %v621 = vunpack.c.h.b16 %v209
    %v622 = vunpack.c.l.b16 %v210
    %v623 = vunpack.c.h.b16 %v210
    %v624 = vunpack.c.l.b16 %v211
    %v625 = vunpack.c.h.b16 %v211
    %v626 = vunpack.c.l.b16 %v212
    %v627 = vunpack.c.h.b16 %v212
    %v628 = vunpack.c.l.b16 %v213
    %v629 = vunpack.c.h.b16 %v213
    %v630 = vunpack.c.l.b16 %v214
    %v631 = vunpack.c.h.b16 %v214
    %v632 = vunpack.c.l.b16 %v215
    %v633 = vunpack.c.h.b16 %v215
    %v634 = vunpack.c.l.b16 %v216
    %v635 = vunpack.c.h.b16 %v216
    %v636 = vunpack.c.l.b16 %v217
    %v637 = vunpack.c.h.b16 %v217
    %v638 = vpack.c.b16 %v386, %v382
    %v639 = vpack.c.b16 %v387, %v383
    %v640 = vpack.c.b16 %v388, %v384
    %v641 = vpack.c.b16 %v389, %v385
    %v642 = vpack.c.b16 %v394, %v390
    %v643 = vpack.c.b16 %v395, %v391
    %v644 = vpack.c.b16 %v396, %v392
    %v645 = vpack.c.b16 %v397, %v393
    %v646 = vpack.c.b16 %v402, %v398
    %v647 = vpack.c.b16 %v403, %v399
    %v648 = vpack.c.b16 %v404, %v400
    %v649 = vpack.c.b16 %v405, %v401
    %v650 = vpack.c.b16 %v410, %v406
    %v651 = vpack.c.b16 %v411, %v407
    %v652 = vpack.c.b16 %v412, %v408
    %v653 = vpack.c.b16 %v413, %v409
    %v654 = vpack.c.b16 %v418, %v414
    %v655 = vpack.c.b16 %v419, %v415
    %v656 = vpack.c.b16 %v420, %v416
    %v657 = vpack.c.b16 %v421, %v417
    %v658 = vpack.c.b16 %v426, %v422
    %v659 = vpack.c.b16 %v427, %v423
    %v660 = vpack.c.b16 %v428, %v424
    %v661 = vpack.c.b16 %v429, %v425
    %v662 = vpack.c.b16 %v434, %v430
    %v663 = vpack.c.b16 %v435, %v431
    %v664 = vpack.c.b16 %v436, %v432
    %v665 = vpack.c.b16 %v437, %v433
    %v666 = vpack.c.b16 %v442, %v438
    %v667 = vpack.c.b16 %v443, %v439
    %v668 = vpack.c.b16 %v444, %v440
    %v669 = vpack.c.b16 %v445, %v441
    %v670 = vpack.c.b16 %v450, %v446
    %v671 = vpack.c.b16 %v451, %v447
    %v672 = vpack.c.b16 %v452, %v448
    %v673 = vpack.c.b16 %v453, %v449
    %v674 = vpack.c.b16 %v458, %v454
    %v675 = vpack.c.b16 %v459, %v455
    %v676 = vpack.c.b16 %v460, %v456
    %v677 = vpack.c.b16 %v461, %v457
    %v678 = vpack.c.b16 %v466, %v462
    %v679 = vpack.c.b16 %v467, %v463
    %v680 = vpack.c.b16 %v468, %v464
    %v681 = vpack.c.b16 %v469, %v465
    %v682 = vpack.c.b16 %v474, %v470
    %v683 = vpack.c.b16 %v475, %v471
    %v684 = vpack.c.b16 %v476, %v472
    %v685 = vpack.c.b16 %v477, %v473
    %v686 = vpack.c.b16 %v482, %v478
    %v687 = vpack.c.b16 %v483, %v479
    %v688 = vpack.c.b16 %v484, %v480
    %v689 = vpack.c.b16 %v485, %v481
    %v690 = vpack.c.b16 %v490, %v486
    %v691 = vpack.c.b16 %v491, %v487
    %v692 = vpack.c.b16 %v492, %v488
    %v693 = vpack.c.b16 %v493, %v489
    %v694 = vpack.c.b16 %v498, %v494
    %v695 = vpack.c.b16 %v499, %v495
    %v696 = vpack.c.b16 %v500, %v496
    %v697 = vpack.c.b16 %v501, %v497
    %v698 = vpack.c.b16 %v506, %v502
    %v699 = vpack.c.b16 %v507, %v503
    %v700 = vpack.c.b16 %v508, %v504
    %v701 = vpack.c.b16 %v509, %v505
    %v702 = vpack.c.b16 %v514, %v510
    %v703 = vpack.c.b16 %v515, %v511
    %v704 = vpack.c.b16 %v516, %v512
    %v705 = vpack.c.b16 %v517, %v513
    %v706 = vpack.c.b16 %v522, %v518
    %v707 = vpack.c.b16 %v523, %v519
    %v708 = vpack.c.b16 %v524, %v520
    %v709 = vpack.c.b16 %v525, %v521
    %v710 = vpack.c.b16 %v530, %v526
    %v711 = vpack.c.b16 %v531, %v527
    %v712 = vpack.c.b16 %v532, %v528
    %v713 = vpack.c.b16 %v533, %v529
    %v714 = vpack.c.b16 %v538, %v534
    %v715 = vpack.c.b16 %v539, %v535
    %v716 = vpack.c.b16 %v540, %v536
    %v717 = vpack.c.b16 %v541, %v537
    %v718 = vpack.c.b16 %v546, %v542
    %v719 = vpack.c.b16 %v547, %v543
    %v720 = vpack.c.b16 %v548, %v544
    %v721 = vpack.c.b16 %v549, %v545
    %v722 = vpack.c.b16 %v554, %v550
    %v723 = vpack.c.b16 %v555, %v551
    %v724 = vpack.c.b16 %v556, %v552
    %v725 = vpack.c.b16 %v557, %v553
    %v726 = vpack.c.b16 %v562, %v558
    %v727 = vpack.c.b16 %v563, %v559
    %v728 = vpack.c.b16 %v564, %v560
    %v729 = vpack.c.b16 %v565, %v561
    %v730 = vpack.c.b16 %v570, %v566
    %v731 = vpack.c.b16 %v571, %v567
    %v732 = vpack.c.b16 %v572, %v568
    %v733 = vpack.c.b16 %v573, %v569
    %v734 = vpack.c.b16 %v578, %v574
    %v735 = vpack.c.b16 %v579, %v575
    %v736 = vpack.c.b16 %v580, %v576
    %v737 = vpack.c.b16 %v581, %v577
    %v738 = vpack.c.b16 %v586, %v582
    %v739 = vpack.c.b16 %v587, %v583
    %v740 = vpack.c.b16 %v588, %v584
    %v741 = vpack.c.b16 %v589, %v585
    %v742 = vpack.c.b16 %v594, %v590
    %v743 = vpack.c.b16 %v595, %v591
    %v744 = vpack.c.b16 %v596, %v592
    %v745 = vpack.c.b16 %v597, %v593
    %v746 = vpack.c.b16 %v602, %v598
    %v747 = vpack.c.b16 %v603, %v599
    %v748 = vpack.c.b16 %v604, %v600
    %v749 = vpack.c.b16 %v605, %v601
    %v750 = vpack.c.b16 %v610, %v606
    %v751 = vpack.c.b16 %v611, %v607
    %v752 = vpack.c.b16 %v612, %v608
    %v753 = vpack.c.b16 %v613, %v609
    %v754 = vpack.c.b16 %v618, %v614
    %v755 = vpack.c.b16 %v619, %v615
    %v756 = vpack.c.b16 %v620, %v616
    %v757 = vpack.c.b16 %v621, %v617
    %v758 = vpack.c.b16 %v626, %v622
    %v759 = vpack.c.b16 %v627, %v623
    %v760 = vpack.c.b16 %v628, %v624
    %v761 = vpack.c.b16 %v629, %v625
    %v762 = vpack.c.b16 %v634, %v630
    %v763 = vpack.c.b16 %v635, %v631
    %v764 = vpack.c.b16 %v636, %v632
    %v765 = vpack.c.b16 %v637, %v633
    %894 = vmatprep.subr.bf16.mxu0 %v667
    %895 = vmatpush1.bf16.msra.mxu0 %v666
    %896 = vmatprep.subr.bf16.mxu0 %v663
    %897 = vmatpush1.bf16.msra.mxu0 %v662
    %898 = vmatprep.subr.bf16.mxu0 %v659
    %899 = vmatpush1.bf16.msra.mxu0 %v658
    %900 = vmatprep.subr.bf16.mxu0 %v655
    %901 = vmatpush1.bf16.msra.mxu0 %v654
    %902 = vmatprep.subr.bf16.mxu0 %v651
    %903 = vmatpush1.bf16.msra.mxu0 %v650
    %904 = vmatprep.subr.bf16.mxu0 %v647
    %905 = vmatpush1.bf16.msra.mxu0 %v646
    %906 = vmatprep.subr.bf16.mxu0 %v643
    %907 = vmatpush1.bf16.msra.mxu0 %v642
    %908 = vmatprep.subr.bf16.mxu0 %v639
    %909 = vmatpush1.bf16.msra.mxu0 %v638
    %910 = vmatprep.subr.bf16.mxu0 %v699
    %911 = vmatpush2.bf16.msra.mxu0 %v698
    %912 = vmatprep.subr.bf16.mxu0 %v695
    %913 = vmatpush2.bf16.msra.mxu0 %v694
    %914 = vmatprep.subr.bf16.mxu0 %v691
    %915 = vmatpush2.bf16.msra.mxu0 %v690
    %916 = vmatprep.subr.bf16.mxu0 %v687
    %917 = vmatpush2.bf16.msra.mxu0 %v686
    %918 = vmatprep.subr.bf16.mxu0 %v683
    %919 = vmatpush2.bf16.msra.mxu0 %v682
    %920 = vmatprep.subr.bf16.mxu0 %v679
    %921 = vmatpush2.bf16.msra.mxu0 %v678
    %922 = vmatprep.subr.bf16.mxu0 %v675
    %923 = vmatpush2.bf16.msra.mxu0 %v674
    %924 = vmatprep.subr.bf16.mxu0 %v671
    %925 = vmatpush2.bf16.msra.mxu0 %v670
    %926 = vmatprep.mubr.bf16.mxu0 %v247
    %927 = vmatmul.mubr.bf16.gmra.mxu0 %v246
    %v928 = vpop.f32.mrf.mxu0
    %v929 = vadd.f32 %v223, %v928
    %v930 = vpop.f32.mrf.mxu0
    %v931 = vadd.f32 %v227, %v930
    %v932 = vpop.f32.mrf.mxu0
    %v933 = vpop.f32.mrf.mxu0
    %934 = vdwg.mxu0
    %935 = vmatprep.subr.bf16.mxu0 %v731
    %936 = vmatpush1.bf16.msra.mxu0 %v730
    %937 = vmatprep.subr.bf16.mxu0 %v727
    %938 = vmatpush1.bf16.msra.mxu0 %v726
    %939 = vmatprep.subr.bf16.mxu0 %v723
    %940 = vmatpush1.bf16.msra.mxu0 %v722
    %941 = vmatprep.subr.bf16.mxu0 %v719
    %942 = vmatpush1.bf16.msra.mxu0 %v718
    %943 = vmatprep.subr.bf16.mxu0 %v715
    %944 = vmatpush1.bf16.msra.mxu0 %v714
    %945 = vmatprep.subr.bf16.mxu0 %v711
    %946 = vmatpush1.bf16.msra.mxu0 %v710
    %947 = vmatprep.subr.bf16.mxu0 %v707
    %948 = vmatpush1.bf16.msra.mxu0 %v706
    %949 = vmatprep.subr.bf16.mxu0 %v703
    %950 = vmatpush1.bf16.msra.mxu0 %v702
    %951 = vmatprep.subr.bf16.mxu0 %v763
    %952 = vmatpush2.bf16.msra.mxu0 %v762
    %953 = vmatprep.subr.bf16.mxu0 %v759
    %954 = vmatpush2.bf16.msra.mxu0 %v758
    %955 = vmatprep.subr.bf16.mxu0 %v755
    %956 = vmatpush2.bf16.msra.mxu0 %v754
    %957 = vmatprep.subr.bf16.mxu0 %v751
    %958 = vmatpush2.bf16.msra.mxu0 %v750
    %959 = vmatprep.subr.bf16.mxu0 %v747
    %960 = vmatpush2.bf16.msra.mxu0 %v746
    %961 = vmatprep.subr.bf16.mxu0 %v743
    %962 = vmatpush2.bf16.msra.mxu0 %v742
    %963 = vmatprep.subr.bf16.mxu0 %v739
    %964 = vmatpush2.bf16.msra.mxu0 %v738
    %965 = vmatprep.subr.bf16.mxu0 %v735
    %966 = vmatpush2.bf16.msra.mxu0 %v734
    %967 = vmatprep.mubr.bf16.mxu0 %v249
    %968 = vmatmul.mubr.bf16.gmra.mxu0 %v248
    %v969 = vpop.f32.mrf.mxu0
    %v970 = vadd.f32 %v929, %v969
    %v971 = vpop.f32.mrf.mxu0
    %v972 = vadd.f32 %v931, %v971
    %v973 = vpop.f32.mrf.mxu0
    %v974 = vpop.f32.mrf.mxu0
    %975 = vdwg.mxu0
    %976 = vmatprep.subr.bf16.mxu0 %v669
    %977 = vmatpush1.bf16.msra.mxu0 %v668
    %978 = vmatprep.subr.bf16.mxu0 %v665
    %979 = vmatpush1.bf16.msra.mxu0 %v664
    %980 = vmatprep.subr.bf16.mxu0 %v661
    %981 = vmatpush1.bf16.msra.mxu0 %v660
    %982 = vmatprep.subr.bf16.mxu0 %v657
    %983 = vmatpush1.bf16.msra.mxu0 %v656
    %984 = vmatprep.subr.bf16.mxu0 %v653
    %985 = vmatpush1.bf16.msra.mxu0 %v652
    %986 = vmatprep.subr.bf16.mxu0 %v649
    %987 = vmatpush1.bf16.msra.mxu0 %v648
    %988 = vmatprep.subr.bf16.mxu0 %v645
    %989 = vmatpush1.bf16.msra.mxu0 %v644
    %990 = vmatprep.subr.bf16.mxu0 %v641
    %991 = vmatpush1.bf16.msra.mxu0 %v640
    %992 = vmatprep.subr.bf16.mxu0 %v701
    %993 = vmatpush2.bf16.msra.mxu0 %v700
    %994 = vmatprep.subr.bf16.mxu0 %v697
    %995 = vmatpush2.bf16.msra.mxu0 %v696
    %996 = vmatprep.subr.bf16.mxu0 %v693
    %997 = vmatpush2.bf16.msra.mxu0 %v692
    %998 = vmatprep.subr.bf16.mxu0 %v689
    %999 = vmatpush2.bf16.msra.mxu0 %v688
    %1000 = vmatprep.subr.bf16.mxu0 %v685
    %1001 = vmatpush2.bf16.msra.mxu0 %v684
    %1002 = vmatprep.subr.bf16.mxu0 %v681
    %1003 = vmatpush2.bf16.msra.mxu0 %v680
    %1004 = vmatprep.subr.bf16.mxu0 %v677
    %1005 = vmatpush2.bf16.msra.mxu0 %v676
    %1006 = vmatprep.subr.bf16.mxu0 %v673
    %1007 = vmatpush2.bf16.msra.mxu0 %v672
    %1008 = vmatprep.mubr.bf16.mxu0 %v247
    %1009 = vmatmul.mubr.bf16.gmra.mxu0 %v246
    %v1010 = vpop.f32.mrf.mxu0
    %v1011 = vadd.f32 %v231, %v1010
    %v1012 = vpop.f32.mrf.mxu0
    %v1013 = vadd.f32 %v235, %v1012
    %v1014 = vpop.f32.mrf.mxu0
    %v1015 = vpop.f32.mrf.mxu0
    %1016 = vdwg.mxu0
    %1017 = vmatprep.subr.bf16.mxu0 %v733
    %1018 = vmatpush1.bf16.msra.mxu0 %v732
    %1019 = vmatprep.subr.bf16.mxu0 %v729
    %1020 = vmatpush1.bf16.msra.mxu0 %v728
    %1021 = vmatprep.subr.bf16.mxu0 %v725
    %1022 = vmatpush1.bf16.msra.mxu0 %v724
    %1023 = vmatprep.subr.bf16.mxu0 %v721
    %1024 = vmatpush1.bf16.msra.mxu0 %v720
    %1025 = vmatprep.subr.bf16.mxu0 %v717
    %1026 = vmatpush1.bf16.msra.mxu0 %v716
    %1027 = vmatprep.subr.bf16.mxu0 %v713
    %1028 = vmatpush1.bf16.msra.mxu0 %v712
    %1029 = vmatprep.subr.bf16.mxu0 %v709
    %1030 = vmatpush1.bf16.msra.mxu0 %v708
    %1031 = vmatprep.subr.bf16.mxu0 %v705
    %1032 = vmatpush1.bf16.msra.mxu0 %v704
    %1033 = vmatprep.subr.bf16.mxu0 %v765
    %1034 = vmatpush2.bf16.msra.mxu0 %v764
    %1035 = vmatprep.subr.bf16.mxu0 %v761
    %1036 = vmatpush2.bf16.msra.mxu0 %v760
    %1037 = vmatprep.subr.bf16.mxu0 %v757
    %1038 = vmatpush2.bf16.msra.mxu0 %v756
    %1039 = vmatprep.subr.bf16.mxu0 %v753
    %1040 = vmatpush2.bf16.msra.mxu0 %v752
    %1041 = vmatprep.subr.bf16.mxu0 %v749
    %1042 = vmatpush2.bf16.msra.mxu0 %v748
    %1043 = vmatprep.subr.bf16.mxu0 %v745
    %1044 = vmatpush2.bf16.msra.mxu0 %v744
    %1045 = vmatprep.subr.bf16.mxu0 %v741
    %1046 = vmatpush2.bf16.msra.mxu0 %v740
    %1047 = vmatprep.subr.bf16.mxu0 %v737
    %1048 = vmatpush2.bf16.msra.mxu0 %v736
    %1049 = vmatprep.mubr.bf16.mxu0 %v249
    %1050 = vmatmul.mubr.bf16.gmra.mxu0 %v248
    %v1051 = vpop.f32.mrf.mxu0
    %v1052 = vadd.f32 %v1011, %v1051
    %v1053 = vpop.f32.mrf.mxu0
    %v1054 = vadd.f32 %v1013, %v1053
    %v1055 = vpop.f32.mrf.mxu0
    %v1056 = vpop.f32.mrf.mxu0
    %1057 = vdwg.mxu0
    %v1058 = vmax.f32 %v970, 0.0
    %v1059 = vmax.f32 %v972, 0.0
    %v1060 = vmax.f32 %v1052, 0.0
    %v1061 = vmax.f32 %v1054, 0.0
    %v1062 = vpack.c.bf16 %v1058, %v1058
    %v1063 = vpack.c.bf16 %v1059, %v1059
    %v1064 = vpack.c.bf16 %v1060, %v1060
    %v1065 = vpack.c.bf16 %v1061, %v1061
    %v1066 = vld [vmem:[#allocation6] sm:$0xff]
    %v1067 = vld [vmem:[#allocation6 + $0x8] sm:$0xff]
    %v1068 = vld [vmem:[#allocation6 + $0x10] sm:$0xff]
    %v1069 = vld [vmem:[#allocation6 + $0x18] sm:$0xff]
    %v1070 = vld [vmem:[#allocation6 + $0x20] sm:$0xff]
    %v1071 = vld [vmem:[#allocation6 + $0x28] sm:$0xff]
    %v1072 = vld [vmem:[#allocation6 + $0x30] sm:$0xff]
    %v1073 = vld [vmem:[#allocation6 + $0x38] sm:$0xff]
    %v1074 = vld [vmem:[#allocation6 + $0x40] sm:$0xff]
    %v1075 = vld [vmem:[#allocation6 + $0x48] sm:$0xff]
    %v1076 = vld [vmem:[#allocation6 + $0x50] sm:$0xff]
    %v1077 = vld [vmem:[#allocation6 + $0x58] sm:$0xff]
    %v1078 = vld [vmem:[#allocation6 + $0x60] sm:$0xff]
    %v1079 = vld [vmem:[#allocation6 + $0x68] sm:$0xff]
    %v1080 = vld [vmem:[#allocation6 + $0x70] sm:$0xff]
    %v1081 = vld [vmem:[#allocation6 + $0x78] sm:$0xff]
    %v1082 = vld [vmem:[#allocation6 + $0x80] sm:$0xff]
    %v1083 = vld [vmem:[#allocation6 + $0x88] sm:$0xff]
    %v1084 = vld [vmem:[#allocation6 + $0x90] sm:$0xff]
    %v1085 = vld [vmem:[#allocation6 + $0x98] sm:$0xff]
    %v1086 = vld [vmem:[#allocation6 + $0xa0] sm:$0xff]
    %v1087 = vld [vmem:[#allocation6 + $0xa8] sm:$0xff]
    %v1088 = vld [vmem:[#allocation6 + $0xb0] sm:$0xff]
    %v1089 = vld [vmem:[#allocation6 + $0xb8] sm:$0xff]
    %v1090 = vld [vmem:[#allocation6 + $0xc0] sm:$0xff]
    %v1091 = vld [vmem:[#allocation6 + $0xc8] sm:$0xff]
    %v1092 = vld [vmem:[#allocation6 + $0xd0] sm:$0xff]
    %v1093 = vld [vmem:[#allocation6 + $0xd8] sm:$0xff]
    %v1094 = vld [vmem:[#allocation6 + $0xe0] sm:$0xff]
    %v1095 = vld [vmem:[#allocation6 + $0xe8] sm:$0xff]
    %v1096 = vld [vmem:[#allocation6 + $0xf0] sm:$0xff]
    %v1097 = vld [vmem:[#allocation6 + $0xf8] sm:$0xff]
    %v1098 = vld [vmem:[#allocation6 + $0x100] sm:$0xff]
    %v1099 = vld [vmem:[#allocation6 + $0x108] sm:$0xff]
    %v1100 = vld [vmem:[#allocation6 + $0x110] sm:$0xff]
    %v1101 = vld [vmem:[#allocation6 + $0x118] sm:$0xff]
    %v1102 = vld [vmem:[#allocation6 + $0x120] sm:$0xff]
    %v1103 = vld [vmem:[#allocation6 + $0x128] sm:$0xff]
    %v1104 = vld [vmem:[#allocation6 + $0x130] sm:$0xff]
    %v1105 = vld [vmem:[#allocation6 + $0x138] sm:$0xff]
    %v1106 = vld [vmem:[#allocation6 + $0x140] sm:$0xff]
    %v1107 = vld [vmem:[#allocation6 + $0x148] sm:$0xff]
    %v1108 = vld [vmem:[#allocation6 + $0x150] sm:$0xff]
    %v1109 = vld [vmem:[#allocation6 + $0x158] sm:$0xff]
    %v1110 = vld [vmem:[#allocation6 + $0x160] sm:$0xff]
    %v1111 = vld [vmem:[#allocation6 + $0x168] sm:$0xff]
    %v1112 = vld [vmem:[#allocation6 + $0x170] sm:$0xff]
    %v1113 = vld [vmem:[#allocation6 + $0x178] sm:$0xff]
    %v1114 = vld [vmem:[#allocation6 + $0x180] sm:$0xff]
    %v1115 = vld [vmem:[#allocation6 + $0x188] sm:$0xff]
    %v1116 = vld [vmem:[#allocation6 + $0x190] sm:$0xff]
    %v1117 = vld [vmem:[#allocation6 + $0x198] sm:$0xff]
    %v1118 = vld [vmem:[#allocation6 + $0x1a0] sm:$0xff]
    %v1119 = vld [vmem:[#allocation6 + $0x1a8] sm:$0xff]
    %v1120 = vld [vmem:[#allocation6 + $0x1b0] sm:$0xff]
    %v1121 = vld [vmem:[#allocation6 + $0x1b8] sm:$0xff]
    %v1122 = vld [vmem:[#allocation6 + $0x1c0] sm:$0xff]
    %v1123 = vld [vmem:[#allocation6 + $0x1c8] sm:$0xff]
    %v1124 = vld [vmem:[#allocation6 + $0x1d0] sm:$0xff]
    %v1125 = vld [vmem:[#allocation6 + $0x1d8] sm:$0xff]
    %v1126 = vld [vmem:[#allocation6 + $0x1e0] sm:$0xff]
    %v1127 = vld [vmem:[#allocation6 + $0x1e8] sm:$0xff]
    %v1128 = vld [vmem:[#allocation6 + $0x1f0] sm:$0xff]
    %v1129 = vld [vmem:[#allocation6 + $0x1f8] sm:$0xff]
    %v1130 = vld [vmem:[#allocation6 + $0x200] sm:$0xff]
    %v1131 = vld [vmem:[#allocation6 + $0x208] sm:$0xff]
    %v1132 = vld [vmem:[#allocation6 + $0x210] sm:$0xff]
    %v1133 = vld [vmem:[#allocation6 + $0x218] sm:$0xff]
    %v1134 = vld [vmem:[#allocation6 + $0x220] sm:$0xff]
    %v1135 = vld [vmem:[#allocation6 + $0x228] sm:$0xff]
    %v1136 = vld [vmem:[#allocation6 + $0x230] sm:$0xff]
    %v1137 = vld [vmem:[#allocation6 + $0x238] sm:$0xff]
    %v1138 = vld [vmem:[#allocation6 + $0x240] sm:$0xff]
    %v1139 = vld [vmem:[#allocation6 + $0x248] sm:$0xff]
    %v1140 = vld [vmem:[#allocation6 + $0x250] sm:$0xff]
    %v1141 = vld [vmem:[#allocation6 + $0x258] sm:$0xff]
    %v1142 = vld [vmem:[#allocation6 + $0x260] sm:$0xff]
    %v1143 = vld [vmem:[#allocation6 + $0x268] sm:$0xff]
    %v1144 = vld [vmem:[#allocation6 + $0x270] sm:$0xff]
    %v1145 = vld [vmem:[#allocation6 + $0x278] sm:$0xff]
    %v1146 = vld [vmem:[#allocation6 + $0x280] sm:$0xff]
    %v1147 = vld [vmem:[#allocation6 + $0x288] sm:$0xff]
    %v1148 = vld [vmem:[#allocation6 + $0x290] sm:$0xff]
    %v1149 = vld [vmem:[#allocation6 + $0x298] sm:$0xff]
    %v1150 = vld [vmem:[#allocation6 + $0x2a0] sm:$0xff]
    %v1151 = vld [vmem:[#allocation6 + $0x2a8] sm:$0xff]
    %v1152 = vld [vmem:[#allocation6 + $0x2b0] sm:$0xff]
    %v1153 = vld [vmem:[#allocation6 + $0x2b8] sm:$0xff]
    %v1154 = vld [vmem:[#allocation6 + $0x2c0] sm:$0xff]
    %v1155 = vld [vmem:[#allocation6 + $0x2c8] sm:$0xff]
    %v1156 = vld [vmem:[#allocation6 + $0x2d0] sm:$0xff]
    %v1157 = vld [vmem:[#allocation6 + $0x2d8] sm:$0xff]
    %v1158 = vld [vmem:[#allocation6 + $0x2e0] sm:$0xff]
    %v1159 = vld [vmem:[#allocation6 + $0x2e8] sm:$0xff]
    %v1160 = vld [vmem:[#allocation6 + $0x2f0] sm:$0xff]
    %v1161 = vld [vmem:[#allocation6 + $0x2f8] sm:$0xff]
    %v1162 = vld [vmem:[#allocation6 + $0x300] sm:$0xff]
    %v1163 = vld [vmem:[#allocation6 + $0x308] sm:$0xff]
    %v1164 = vld [vmem:[#allocation6 + $0x310] sm:$0xff]
    %v1165 = vld [vmem:[#allocation6 + $0x318] sm:$0xff]
    %v1166 = vld [vmem:[#allocation6 + $0x320] sm:$0xff]
    %v1167 = vld [vmem:[#allocation6 + $0x328] sm:$0xff]
    %v1168 = vld [vmem:[#allocation6 + $0x330] sm:$0xff]
    %v1169 = vld [vmem:[#allocation6 + $0x338] sm:$0xff]
    %v1170 = vld [vmem:[#allocation6 + $0x340] sm:$0xff]
    %v1171 = vld [vmem:[#allocation6 + $0x348] sm:$0xff]
    %v1172 = vld [vmem:[#allocation6 + $0x350] sm:$0xff]
    %v1173 = vld [vmem:[#allocation6 + $0x358] sm:$0xff]
    %v1174 = vld [vmem:[#allocation6 + $0x360] sm:$0xff]
    %v1175 = vld [vmem:[#allocation6 + $0x368] sm:$0xff]
    %v1176 = vld [vmem:[#allocation6 + $0x370] sm:$0xff]
    %v1177 = vld [vmem:[#allocation6 + $0x378] sm:$0xff]
    %v1178 = vld [vmem:[#allocation6 + $0x380] sm:$0xff]
    %v1179 = vld [vmem:[#allocation6 + $0x388] sm:$0xff]
    %v1180 = vld [vmem:[#allocation6 + $0x390] sm:$0xff]
    %v1181 = vld [vmem:[#allocation6 + $0x398] sm:$0xff]
    %v1182 = vld [vmem:[#allocation6 + $0x3a0] sm:$0xff]
    %v1183 = vld [vmem:[#allocation6 + $0x3a8] sm:$0xff]
    %v1184 = vld [vmem:[#allocation6 + $0x3b0] sm:$0xff]
    %v1185 = vld [vmem:[#allocation6 + $0x3b8] sm:$0xff]
    %v1186 = vld [vmem:[#allocation6 + $0x3c0] sm:$0xff]
    %v1187 = vld [vmem:[#allocation6 + $0x3c8] sm:$0xff]
    %v1188 = vld [vmem:[#allocation6 + $0x3d0] sm:$0xff]
    %v1189 = vld [vmem:[#allocation6 + $0x3d8] sm:$0xff]
    %v1190 = vld [vmem:[#allocation6 + $0x3e0] sm:$0xff]
    %v1191 = vld [vmem:[#allocation6 + $0x3e8] sm:$0xff]
    %v1192 = vld [vmem:[#allocation6 + $0x3f0] sm:$0xff]
    %v1193 = vld [vmem:[#allocation6 + $0x3f8] sm:$0xff]
    %v1194 = vld [vmem:[#allocation7] sm:$0xf]
    %v1196 = vlaneseq
    %v1197 = vshrl.u32 %v1196, 7
    %v1198 = vsub.s32 0, %v1197
    %v1199 = vrot.slane %v1194, %v1198
    %v1200 = vlaneseq
    %v1201 = vshrl.u32 %v1200, 7
    %v1202 = vsub.s32 1, %v1201
    %v1203 = vrot.slane %v1194, %v1202
    %v1204 = vlaneseq
    %v1205 = vshrl.u32 %v1204, 7
    %v1206 = vsub.s32 2, %v1205
    %v1207 = vrot.slane %v1194, %v1206
    %v1208 = vlaneseq
    %v1209 = vshrl.u32 %v1208, 7
    %v1210 = vsub.s32 3, %v1209
    %v1211 = vrot.slane %v1194, %v1210
    %v1344 = vunpack.c.l.b16 %v1066
    %v1345 = vunpack.c.h.b16 %v1066
    %v1346 = vunpack.c.l.b16 %v1067
    %v1347 = vunpack.c.h.b16 %v1067
    %v1348 = vunpack.c.l.b16 %v1068
    %v1349 = vunpack.c.h.b16 %v1068
    %v1350 = vunpack.c.l.b16 %v1069
    %v1351 = vunpack.c.h.b16 %v1069
    %v1352 = vunpack.c.l.b16 %v1070
    %v1353 = vunpack.c.h.b16 %v1070
    %v1354 = vunpack.c.l.b16 %v1071
    %v1355 = vunpack.c.h.b16 %v1071
    %v1356 = vunpack.c.l.b16 %v1072
    %v1357 = vunpack.c.h.b16 %v1072
    %v1358 = vunpack.c.l.b16 %v1073
    %v1359 = vunpack.c.h.b16 %v1073
    %v1360 = vunpack.c.l.b16 %v1074
    %v1361 = vunpack.c.h.b16 %v1074
    %v1362 = vunpack.c.l.b16 %v1075
    %v1363 = vunpack.c.h.b16 %v1075
    %v1364 = vunpack.c.l.b16 %v1076
    %v1365 = vunpack.c.h.b16 %v1076
    %v1366 = vunpack.c.l.b16 %v1077
    %v1367 = vunpack.c.h.b16 %v1077
    %v1368 = vunpack.c.l.b16 %v1078
    %v1369 = vunpack.c.h.b16 %v1078
    %v1370 = vunpack.c.l.b16 %v1079
    %v1371 = vunpack.c.h.b16 %v1079
    %v1372 = vunpack.c.l.b16 %v1080
    %v1373 = vunpack.c.h.b16 %v1080
    %v1374 = vunpack.c.l.b16 %v1081
    %v1375 = vunpack.c.h.b16 %v1081
    %v1376 = vunpack.c.l.b16 %v1082
    %v1377 = vunpack.c.h.b16 %v1082
    %v1378 = vunpack.c.l.b16 %v1083
    %v1379 = vunpack.c.h.b16 %v1083
    %v1380 = vunpack.c.l.b16 %v1084
    %v1381 = vunpack.c.h.b16 %v1084
    %v1382 = vunpack.c.l.b16 %v1085
    %v1383 = vunpack.c.h.b16 %v1085
    %v1384 = vunpack.c.l.b16 %v1086
    %v1385 = vunpack.c.h.b16 %v1086
    %v1386 = vunpack.c.l.b16 %v1087
    %v1387 = vunpack.c.h.b16 %v1087
    %v1388 = vunpack.c.l.b16 %v1088
    %v1389 = vunpack.c.h.b16 %v1088
    %v1390 = vunpack.c.l.b16 %v1089
    %v1391 = vunpack.c.h.b16 %v1089
    %v1392 = vunpack.c.l.b16 %v1090
    %v1393 = vunpack.c.h.b16 %v1090
    %v1394 = vunpack.c.l.b16 %v1091
    %v1395 = vunpack.c.h.b16 %v1091
    %v1396 = vunpack.c.l.b16 %v1092
    %v1397 = vunpack.c.h.b16 %v1092
    %v1398 = vunpack.c.l.b16 %v1093
    %v1399 = vunpack.c.h.b16 %v1093
    %v1400 = vunpack.c.l.b16 %v1094
    %v1401 = vunpack.c.h.b16 %v1094
    %v1402 = vunpack.c.l.b16 %v1095
    %v1403 = vunpack.c.h.b16 %v1095
    %v1404 = vunpack.c.l.b16 %v1096
    %v1405 = vunpack.c.h.b16 %v1096
    %v1406 = vunpack.c.l.b16 %v1097
    %v1407 = vunpack.c.h.b16 %v1097
    %v1408 = vunpack.c.l.b16 %v1098
    %v1409 = vunpack.c.h.b16 %v1098
    %v1410 = vunpack.c.l.b16 %v1099
    %v1411 = vunpack.c.h.b16 %v1099
    %v1412 = vunpack.c.l.b16 %v1100
    %v1413 = vunpack.c.h.b16 %v1100
    %v1414 = vunpack.c.l.b16 %v1101
    %v1415 = vunpack.c.h.b16 %v1101
    %v1416 = vunpack.c.l.b16 %v1102
    %v1417 = vunpack.c.h.b16 %v1102
    %v1418 = vunpack.c.l.b16 %v1103
    %v1419 = vunpack.c.h.b16 %v1103
    %v1420 = vunpack.c.l.b16 %v1104
    %v1421 = vunpack.c.h.b16 %v1104
    %v1422 = vunpack.c.l.b16 %v1105
    %v1423 = vunpack.c.h.b16 %v1105
    %v1424 = vunpack.c.l.b16 %v1106
    %v1425 = vunpack.c.h.b16 %v1106
    %v1426 = vunpack.c.l.b16 %v1107
    %v1427 = vunpack.c.h.b16 %v1107
    %v1428 = vunpack.c.l.b16 %v1108
    %v1429 = vunpack.c.h.b16 %v1108
    %v1430 = vunpack.c.l.b16 %v1109
    %v1431 = vunpack.c.h.b16 %v1109
    %v1432 = vunpack.c.l.b16 %v1110
    %v1433 = vunpack.c.h.b16 %v1110
    %v1434 = vunpack.c.l.b16 %v1111
    %v1435 = vunpack.c.h.b16 %v1111
    %v1436 = vunpack.c.l.b16 %v1112
    %v1437 = vunpack.c.h.b16 %v1112
    %v1438 = vunpack.c.l.b16 %v1113
    %v1439 = vunpack.c.h.b16 %v1113
    %v1440 = vunpack.c.l.b16 %v1114
    %v1441 = vunpack.c.h.b16 %v1114
    %v1442 = vunpack.c.l.b16 %v1115
    %v1443 = vunpack.c.h.b16 %v1115
    %v1444 = vunpack.c.l.b16 %v1116
    %v1445 = vunpack.c.h.b16 %v1116
    %v1446 = vunpack.c.l.b16 %v1117
    %v1447 = vunpack.c.h.b16 %v1117
    %v1448 = vunpack.c.l.b16 %v1118
    %v1449 = vunpack.c.h.b16 %v1118
    %v1450 = vunpack.c.l.b16 %v1119
    %v1451 = vunpack.c.h.b16 %v1119
    %v1452 = vunpack.c.l.b16 %v1120
    %v1453 = vunpack.c.h.b16 %v1120
    %v1454 = vunpack.c.l.b16 %v1121
    %v1455 = vunpack.c.h.b16 %v1121
    %v1456 = vunpack.c.l.b16 %v1122
    %v1457 = vunpack.c.h.b16 %v1122
    %v1458 = vunpack.c.l.b16 %v1123
    %v1459 = vunpack.c.h.b16 %v1123
    %v1460 = vunpack.c.l.b16 %v1124
    %v1461 = vunpack.c.h.b16 %v1124
    %v1462 = vunpack.c.l.b16 %v1125
    %v1463 = vunpack.c.h.b16 %v1125
    %v1464 = vunpack.c.l.b16 %v1126
    %v1465 = vunpack.c.h.b16 %v1126
    %v1466 = vunpack.c.l.b16 %v1127
    %v1467 = vunpack.c.h.b16 %v1127
    %v1468 = vunpack.c.l.b16 %v1128
    %v1469 = vunpack.c.h.b16 %v1128
    %v1470 = vunpack.c.l.b16 %v1129
    %v1471 = vunpack.c.h.b16 %v1129
    %v1472 = vunpack.c.l.b16 %v1130
    %v1473 = vunpack.c.h.b16 %v1130
    %v1474 = vunpack.c.l.b16 %v1131
    %v1475 = vunpack.c.h.b16 %v1131
    %v1476 = vunpack.c.l.b16 %v1132
    %v1477 = vunpack.c.h.b16 %v1132
    %v1478 = vunpack.c.l.b16 %v1133
    %v1479 = vunpack.c.h.b16 %v1133
    %v1480 = vunpack.c.l.b16 %v1134
    %v1481 = vunpack.c.h.b16 %v1134
    %v1482 = vunpack.c.l.b16 %v1135
    %v1483 = vunpack.c.h.b16 %v1135
    %v1484 = vunpack.c.l.b16 %v1136
    %v1485 = vunpack.c.h.b16 %v1136
    %v1486 = vunpack.c.l.b16 %v1137
    %v1487 = vunpack.c.h.b16 %v1137
    %v1488 = vunpack.c.l.b16 %v1138
    %v1489 = vunpack.c.h.b16 %v1138
    %v1490 = vunpack.c.l.b16 %v1139
    %v1491 = vunpack.c.h.b16 %v1139
    %v1492 = vunpack.c.l.b16 %v1140
    %v1493 = vunpack.c.h.b16 %v1140
    %v1494 = vunpack.c.l.b16 %v1141
    %v1495 = vunpack.c.h.b16 %v1141
    %v1496 = vunpack.c.l.b16 %v1142
    %v1497 = vunpack.c.h.b16 %v1142
    %v1498 = vunpack.c.l.b16 %v1143
    %v1499 = vunpack.c.h.b16 %v1143
    %v1500 = vunpack.c.l.b16 %v1144
    %v1501 = vunpack.c.h.b16 %v1144
    %v1502 = vunpack.c.l.b16 %v1145
    %v1503 = vunpack.c.h.b16 %v1145
    %v1504 = vunpack.c.l.b16 %v1146
    %v1505 = vunpack.c.h.b16 %v1146
    %v1506 = vunpack.c.l.b16 %v1147
    %v1507 = vunpack.c.h.b16 %v1147
    %v1508 = vunpack.c.l.b16 %v1148
    %v1509 = vunpack.c.h.b16 %v1148
    %v1510 = vunpack.c.l.b16 %v1149
    %v1511 = vunpack.c.h.b16 %v1149
    %v1512 = vunpack.c.l.b16 %v1150
    %v1513 = vunpack.c.h.b16 %v1150
    %v1514 = vunpack.c.l.b16 %v1151
    %v1515 = vunpack.c.h.b16 %v1151
    %v1516 = vunpack.c.l.b16 %v1152
    %v1517 = vunpack.c.h.b16 %v1152
    %v1518 = vunpack.c.l.b16 %v1153
    %v1519 = vunpack.c.h.b16 %v1153
    %v1520 = vunpack.c.l.b16 %v1154
    %v1521 = vunpack.c.h.b16 %v1154
    %v1522 = vunpack.c.l.b16 %v1155
    %v1523 = vunpack.c.h.b16 %v1155
    %v1524 = vunpack.c.l.b16 %v1156
    %v1525 = vunpack.c.h.b16 %v1156
    %v1526 = vunpack.c.l.b16 %v1157
    %v1527 = vunpack.c.h.b16 %v1157
    %v1528 = vunpack.c.l.b16 %v1158
    %v1529 = vunpack.c.h.b16 %v1158
    %v1530 = vunpack.c.l.b16 %v1159
    %v1531 = vunpack.c.h.b16 %v1159
    %v1532 = vunpack.c.l.b16 %v1160
    %v1533 = vunpack.c.h.b16 %v1160
    %v1534 = vunpack.c.l.b16 %v1161
    %v1535 = vunpack.c.h.b16 %v1161
    %v1536 = vunpack.c.l.b16 %v1162
    %v1537 = vunpack.c.h.b16 %v1162
    %v1538 = vunpack.c.l.b16 %v1163
    %v1539 = vunpack.c.h.b16 %v1163
    %v1540 = vunpack.c.l.b16 %v1164
    %v1541 = vunpack.c.h.b16 %v1164
    %v1542 = vunpack.c.l.b16 %v1165
    %v1543 = vunpack.c.h.b16 %v1165
    %v1544 = vunpack.c.l.b16 %v1166
    %v1545 = vunpack.c.h.b16 %v1166
    %v1546 = vunpack.c.l.b16 %v1167
    %v1547 = vunpack.c.h.b16 %v1167
    %v1548 = vunpack.c.l.b16 %v1168
    %v1549 = vunpack.c.h.b16 %v1168
    %v1550 = vunpack.c.l.b16 %v1169
    %v1551 = vunpack.c.h.b16 %v1169
    %v1552 = vunpack.c.l.b16 %v1170
    %v1553 = vunpack.c.h.b16 %v1170
    %v1554 = vunpack.c.l.b16 %v1171
    %v1555 = vunpack.c.h.b16 %v1171
    %v1556 = vunpack.c.l.b16 %v1172
    %v1557 = vunpack.c.h.b16 %v1172
    %v1558 = vunpack.c.l.b16 %v1173
    %v1559 = vunpack.c.h.b16 %v1173
    %v1560 = vunpack.c.l.b16 %v1174
    %v1561 = vunpack.c.h.b16 %v1174
    %v1562 = vunpack.c.l.b16 %v1175
    %v1563 = vunpack.c.h.b16 %v1175
    %v1564 = vunpack.c.l.b16 %v1176
    %v1565 = vunpack.c.h.b16 %v1176
    %v1566 = vunpack.c.l.b16 %v1177
    %v1567 = vunpack.c.h.b16 %v1177
    %v1568 = vunpack.c.l.b16 %v1178
    %v1569 = vunpack.c.h.b16 %v1178
    %v1570 = vunpack.c.l.b16 %v1179
    %v1571 = vunpack.c.h.b16 %v1179
    %v1572 = vunpack.c.l.b16 %v1180
    %v1573 = vunpack.c.h.b16 %v1180
    %v1574 = vunpack.c.l.b16 %v1181
    %v1575 = vunpack.c.h.b16 %v1181
    %v1576 = vunpack.c.l.b16 %v1182
    %v1577 = vunpack.c.h.b16 %v1182
    %v1578 = vunpack.c.l.b16 %v1183
    %v1579 = vunpack.c.h.b16 %v1183
    %v1580 = vunpack.c.l.b16 %v1184
    %v1581 = vunpack.c.h.b16 %v1184
    %v1582 = vunpack.c.l.b16 %v1185
    %v1583 = vunpack.c.h.b16 %v1185
    %v1584 = vunpack.c.l.b16 %v1186
    %v1585 = vunpack.c.h.b16 %v1186
    %v1586 = vunpack.c.l.b16 %v1187
    %v1587 = vunpack.c.h.b16 %v1187
    %v1588 = vunpack.c.l.b16 %v1188
    %v1589 = vunpack.c.h.b16 %v1188
    %v1590 = vunpack.c.l.b16 %v1189
    %v1591 = vunpack.c.h.b16 %v1189
    %v1592 = vunpack.c.l.b16 %v1190
    %v1593 = vunpack.c.h.b16 %v1190
    %v1594 = vunpack.c.l.b16 %v1191
    %v1595 = vunpack.c.h.b16 %v1191
    %v1596 = vunpack.c.l.b16 %v1192
    %v1597 = vunpack.c.h.b16 %v1192
    %v1598 = vunpack.c.l.b16 %v1193
    %v1599 = vunpack.c.h.b16 %v1193
    %v1600 = vpack.c.b16 %v1348, %v1344
    %v1601 = vpack.c.b16 %v1349, %v1345
    %v1602 = vpack.c.b16 %v1350, %v1346
    %v1603 = vpack.c.b16 %v1351, %v1347
    %v1604 = vpack.c.b16 %v1356, %v1352
    %v1605 = vpack.c.b16 %v1357, %v1353
    %v1606 = vpack.c.b16 %v1358, %v1354
    %v1607 = vpack.c.b16 %v1359, %v1355
    %v1608 = vpack.c.b16 %v1364, %v1360
    %v1609 = vpack.c.b16 %v1365, %v1361
    %v1610 = vpack.c.b16 %v1366, %v1362
    %v1611 = vpack.c.b16 %v1367, %v1363
    %v1612 = vpack.c.b16 %v1372, %v1368
    %v1613 = vpack.c.b16 %v1373, %v1369
    %v1614 = vpack.c.b16 %v1374, %v1370
    %v1615 = vpack.c.b16 %v1375, %v1371
    %v1616 = vpack.c.b16 %v1380, %v1376
    %v1617 = vpack.c.b16 %v1381, %v1377
    %v1618 = vpack.c.b16 %v1382, %v1378
    %v1619 = vpack.c.b16 %v1383, %v1379
    %v1620 = vpack.c.b16 %v1388, %v1384
    %v1621 = vpack.c.b16 %v1389, %v1385
    %v1622 = vpack.c.b16 %v1390, %v1386
    %v1623 = vpack.c.b16 %v1391, %v1387
    %v1624 = vpack.c.b16 %v1396, %v1392
    %v1625 = vpack.c.b16 %v1397, %v1393
    %v1626 = vpack.c.b16 %v1398, %v1394
    %v1627 = vpack.c.b16 %v1399, %v1395
    %v1628 = vpack.c.b16 %v1404, %v1400
    %v1629 = vpack.c.b16 %v1405, %v1401
    %v1630 = vpack.c.b16 %v1406, %v1402
    %v1631 = vpack.c.b16 %v1407, %v1403
    %v1632 = vpack.c.b16 %v1412, %v1408
    %v1633 = vpack.c.b16 %v1413, %v1409
    %v1634 = vpack.c.b16 %v1414, %v1410
    %v1635 = vpack.c.b16 %v1415, %v1411
    %v1636 = vpack.c.b16 %v1420, %v1416
    %v1637 = vpack.c.b16 %v1421, %v1417
    %v1638 = vpack.c.b16 %v1422, %v1418
    %v1639 = vpack.c.b16 %v1423, %v1419
    %v1640 = vpack.c.b16 %v1428, %v1424
    %v1641 = vpack.c.b16 %v1429, %v1425
    %v1642 = vpack.c.b16 %v1430, %v1426
    %v1643 = vpack.c.b16 %v1431, %v1427
    %v1644 = vpack.c.b16 %v1436, %v1432
    %v1645 = vpack.c.b16 %v1437, %v1433
    %v1646 = vpack.c.b16 %v1438, %v1434
    %v1647 = vpack.c.b16 %v1439, %v1435
    %v1648 = vpack.c.b16 %v1444, %v1440
    %v1649 = vpack.c.b16 %v1445, %v1441
    %v1650 = vpack.c.b16 %v1446, %v1442
    %v1651 = vpack.c.b16 %v1447, %v1443
    %v1652 = vpack.c.b16 %v1452, %v1448
    %v1653 = vpack.c.b16 %v1453, %v1449
    %v1654 = vpack.c.b16 %v1454, %v1450
    %v1655 = vpack.c.b16 %v1455, %v1451
    %v1656 = vpack.c.b16 %v1460, %v1456
    %v1657 = vpack.c.b16 %v1461, %v1457
    %v1658 = vpack.c.b16 %v1462, %v1458
    %v1659 = vpack.c.b16 %v1463, %v1459
    %v1660 = vpack.c.b16 %v1468, %v1464
    %v1661 = vpack.c.b16 %v1469, %v1465
    %v1662 = vpack.c.b16 %v1470, %v1466
    %v1663 = vpack.c.b16 %v1471, %v1467
    %v1664 = vpack.c.b16 %v1476, %v1472
    %v1665 = vpack.c.b16 %v1477, %v1473
    %v1666 = vpack.c.b16 %v1478, %v1474
    %v1667 = vpack.c.b16 %v1479, %v1475
    %v1668 = vpack.c.b16 %v1484, %v1480
    %v1669 = vpack.c.b16 %v1485, %v1481
    %v1670 = vpack.c.b16 %v1486, %v1482
    %v1671 = vpack.c.b16 %v1487, %v1483
    %v1672 = vpack.c.b16 %v1492, %v1488
    %v1673 = vpack.c.b16 %v1493, %v1489
    %v1674 = vpack.c.b16 %v1494, %v1490
    %v1675 = vpack.c.b16 %v1495, %v1491
    %v1676 = vpack.c.b16 %v1500, %v1496
    %v1677 = vpack.c.b16 %v1501, %v1497
    %v1678 = vpack.c.b16 %v1502, %v1498
    %v1679 = vpack.c.b16 %v1503, %v1499
    %v1680 = vpack.c.b16 %v1508, %v1504
    %v1681 = vpack.c.b16 %v1509, %v1505
    %v1682 = vpack.c.b16 %v1510, %v1506
    %v1683 = vpack.c.b16 %v1511, %v1507
    %v1684 = vpack.c.b16 %v1516, %v1512
    %v1685 = vpack.c.b16 %v1517, %v1513
    %v1686 = vpack.c.b16 %v1518, %v1514
    %v1687 = vpack.c.b16 %v1519, %v1515
    %v1688 = vpack.c.b16 %v1524, %v1520
    %v1689 = vpack.c.b16 %v1525, %v1521
    %v1690 = vpack.c.b16 %v1526, %v1522
    %v1691 = vpack.c.b16 %v1527, %v1523
    %v1692 = vpack.c.b16 %v1532, %v1528
    %v1693 = vpack.c.b16 %v1533, %v1529
    %v1694 = vpack.c.b16 %v1534, %v1530
    %v1695 = vpack.c.b16 %v1535, %v1531
    %v1696 = vpack.c.b16 %v1540, %v1536
    %v1697 = vpack.c.b16 %v1541, %v1537
    %v1698 = vpack.c.b16 %v1542, %v1538
    %v1699 = vpack.c.b16 %v1543, %v1539
    %v1700 = vpack.c.b16 %v1548, %v1544
    %v1701 = vpack.c.b16 %v1549, %v1545
    %v1702 = vpack.c.b16 %v1550, %v1546
    %v1703 = vpack.c.b16 %v1551, %v1547
    %v1704 = vpack.c.b16 %v1556, %v1552
    %v1705 = vpack.c.b16 %v1557, %v1553
    %v1706 = vpack.c.b16 %v1558, %v1554
    %v1707 = vpack.c.b16 %v1559, %v1555
    %v1708 = vpack.c.b16 %v1564, %v1560
    %v1709 = vpack.c.b16 %v1565, %v1561
    %v1710 = vpack.c.b16 %v1566, %v1562
    %v1711 = vpack.c.b16 %v1567, %v1563
    %v1712 = vpack.c.b16 %v1572, %v1568
    %v1713 = vpack.c.b16 %v1573, %v1569
    %v1714 = vpack.c.b16 %v1574, %v1570
    %v1715 = vpack.c.b16 %v1575, %v1571
    %v1716 = vpack.c.b16 %v1580, %v1576
    %v1717 = vpack.c.b16 %v1581, %v1577
    %v1718 = vpack.c.b16 %v1582, %v1578
    %v1719 = vpack.c.b16 %v1583, %v1579
    %v1720 = vpack.c.b16 %v1588, %v1584
    %v1721 = vpack.c.b16 %v1589, %v1585
    %v1722 = vpack.c.b16 %v1590, %v1586
    %v1723 = vpack.c.b16 %v1591, %v1587
    %v1724 = vpack.c.b16 %v1596, %v1592
    %v1725 = vpack.c.b16 %v1597, %v1593
    %v1726 = vpack.c.b16 %v1598, %v1594
    %v1727 = vpack.c.b16 %v1599, %v1595
    %1856 = vmatprep.subr.bf16.mxu0 %v1629
    %1857 = vmatpush1.bf16.msra.mxu0 %v1628
    %1858 = vmatprep.subr.bf16.mxu0 %v1625
    %1859 = vmatpush1.bf16.msra.mxu0 %v1624
    %1860 = vmatprep.subr.bf16.mxu0 %v1621
    %1861 = vmatpush1.bf16.msra.mxu0 %v1620
    %1862 = vmatprep.subr.bf16.mxu0 %v1617
    %1863 = vmatpush1.bf16.msra.mxu0 %v1616
    %1864 = vmatprep.subr.bf16.mxu0 %v1613
    %1865 = vmatpush1.bf16.msra.mxu0 %v1612
    %1866 = vmatprep.subr.bf16.mxu0 %v1609
    %1867 = vmatpush1.bf16.msra.mxu0 %v1608
    %1868 = vmatprep.subr.bf16.mxu0 %v1605
    %1869 = vmatpush1.bf16.msra.mxu0 %v1604
    %1870 = vmatprep.subr.bf16.mxu0 %v1601
    %1871 = vmatpush1.bf16.msra.mxu0 %v1600
    %1872 = vmatprep.subr.bf16.mxu0 %v1661
    %1873 = vmatpush2.bf16.msra.mxu0 %v1660
    %1874 = vmatprep.subr.bf16.mxu0 %v1657
    %1875 = vmatpush2.bf16.msra.mxu0 %v1656
    %1876 = vmatprep.subr.bf16.mxu0 %v1653
    %1877 = vmatpush2.bf16.msra.mxu0 %v1652
    %1878 = vmatprep.subr.bf16.mxu0 %v1649
    %1879 = vmatpush2.bf16.msra.mxu0 %v1648
    %1880 = vmatprep.subr.bf16.mxu0 %v1645
    %1881 = vmatpush2.bf16.msra.mxu0 %v1644
    %1882 = vmatprep.subr.bf16.mxu0 %v1641
    %1883 = vmatpush2.bf16.msra.mxu0 %v1640
    %1884 = vmatprep.subr.bf16.mxu0 %v1637
    %1885 = vmatpush2.bf16.msra.mxu0 %v1636
    %1886 = vmatprep.subr.bf16.mxu0 %v1633
    %1887 = vmatpush2.bf16.msra.mxu0 %v1632
    %1888 = vmatprep.mubr.bf16.mxu0 %v1063
    %1889 = vmatmul.mubr.bf16.gmra.mxu0 %v1062
    %v1890 = vpop.f32.mrf.mxu0
    %v1891 = vadd.f32 %v1199, %v1890
    %v1892 = vpop.f32.mrf.mxu0
    %v1893 = vadd.f32 %v1203, %v1892
    %v1894 = vpop.f32.mrf.mxu0
    %v1895 = vpop.f32.mrf.mxu0
    %1896 = vdwg.mxu0
    %1897 = vmatprep.subr.bf16.mxu0 %v1693
    %1898 = vmatpush1.bf16.msra.mxu0 %v1692
    %1899 = vmatprep.subr.bf16.mxu0 %v1689
    %1900 = vmatpush1.bf16.msra.mxu0 %v1688
    %1901 = vmatprep.subr.bf16.mxu0 %v1685
    %1902 = vmatpush1.bf16.msra.mxu0 %v1684
    %1903 = vmatprep.subr.bf16.mxu0 %v1681
    %1904 = vmatpush1.bf16.msra.mxu0 %v1680
    %1905 = vmatprep.subr.bf16.mxu0 %v1677
    %1906 = vmatpush1.bf16.msra.mxu0 %v1676
    %1907 = vmatprep.subr.bf16.mxu0 %v1673
    %1908 = vmatpush1.bf16.msra.mxu0 %v1672
    %1909 = vmatprep.subr.bf16.mxu0 %v1669
    %1910 = vmatpush1.bf16.msra.mxu0 %v1668
    %1911 = vmatprep.subr.bf16.mxu0 %v1665
    %1912 = vmatpush1.bf16.msra.mxu0 %v1664
    %1913 = vmatprep.subr.bf16.mxu0 %v1725
    %1914 = vmatpush2.bf16.msra.mxu0 %v1724
    %1915 = vmatprep.subr.bf16.mxu0 %v1721
    %1916 = vmatpush2.bf16.msra.mxu0 %v1720
    %1917 = vmatprep.subr.bf16.mxu0 %v1717
    %1918 = vmatpush2.bf16.msra.mxu0 %v1716
    %1919 = vmatprep.subr.bf16.mxu0 %v1713
    %1920 = vmatpush2.bf16.msra.mxu0 %v1712
    %1921 = vmatprep.subr.bf16.mxu0 %v1709
    %1922 = vmatpush2.bf16.msra.mxu0 %v1708
    %1923 = vmatprep.subr.bf16.mxu0 %v1705
    %1924 = vmatpush2.bf16.msra.mxu0 %v1704
    %1925 = vmatprep.subr.bf16.mxu0 %v1701
    %1926 = vmatpush2.bf16.msra.mxu0 %v1700
    %1927 = vmatprep.subr.bf16.mxu0 %v1697
    %1928 = vmatpush2.bf16.msra.mxu0 %v1696
    %1929 = vmatprep.mubr.bf16.mxu0 %v1065
    %1930 = vmatmul.mubr.bf16.gmra.mxu0 %v1064
    %v1931 = vpop.f32.mrf.mxu0
    %v1932 = vadd.f32 %v1891, %v1931
    %v1933 = vpop.f32.mrf.mxu0
    %v1934 = vadd.f32 %v1893, %v1933
    %v1935 = vpop.f32.mrf.mxu0
    %v1936 = vpop.f32.mrf.mxu0
    %1937 = vdwg.mxu0
    %1938 = vmatprep.subr.bf16.mxu0 %v1631
    %1939 = vmatpush1.bf16.msra.mxu0 %v1630
    %1940 = vmatprep.subr.bf16.mxu0 %v1627
    %1941 = vmatpush1.bf16.msra.mxu0 %v1626
    %1942 = vmatprep.subr.bf16.mxu0 %v1623
    %1943 = vmatpush1.bf16.msra.mxu0 %v1622
    %1944 = vmatprep.subr.bf16.mxu0 %v1619
    %1945 = vmatpush1.bf16.msra.mxu0 %v1618
    %1946 = vmatprep.subr.bf16.mxu0 %v1615
    %1947 = vmatpush1.bf16.msra.mxu0 %v1614
    %1948 = vmatprep.subr.bf16.mxu0 %v1611
    %1949 = vmatpush1.bf16.msra.mxu0 %v1610
    %1950 = vmatprep.subr.bf16.mxu0 %v1607
    %1951 = vmatpush1.bf16.msra.mxu0 %v1606
    %1952 = vmatprep.subr.bf16.mxu0 %v1603
    %1953 = vmatpush1.bf16.msra.mxu0 %v1602
    %1954 = vmatprep.subr.bf16.mxu0 %v1663
    %1955 = vmatpush2.bf16.msra.mxu0 %v1662
    %1956 = vmatprep.subr.bf16.mxu0 %v1659
    %1957 = vmatpush2.bf16.msra.mxu0 %v1658
    %1958 = vmatprep.subr.bf16.mxu0 %v1655
    %1959 = vmatpush2.bf16.msra.mxu0 %v1654
    %1960 = vmatprep.subr.bf16.mxu0 %v1651
    %1961 = vmatpush2.bf16.msra.mxu0 %v1650
    %1962 = vmatprep.subr.bf16.mxu0 %v1647
    %1963 = vmatpush2.bf16.msra.mxu0 %v1646
    %1964 = vmatprep.subr.bf16.mxu0 %v1643
    %1965 = vmatpush2.bf16.msra.mxu0 %v1642
    %1966 = vmatprep.subr.bf16.mxu0 %v1639
    %1967 = vmatpush2.bf16.msra.mxu0 %v1638
    %1968 = vmatprep.subr.bf16.mxu0 %v1635
    %1969 = vmatpush2.bf16.msra.mxu0 %v1634
    %1970 = vmatprep.mubr.bf16.mxu0 %v1063
    %1971 = vmatmul.mubr.bf16.gmra.mxu0 %v1062
    %v1972 = vpop.f32.mrf.mxu0
    %v1973 = vadd.f32 %v1207, %v1972
    %v1974 = vpop.f32.mrf.mxu0
    %v1975 = vadd.f32 %v1211, %v1974
    %v1976 = vpop.f32.mrf.mxu0
    %v1977 = vpop.f32.mrf.mxu0
    %1978 = vdwg.mxu0
    %1979 = vmatprep.subr.bf16.mxu0 %v1695
    %1980 = vmatpush1.bf16.msra.mxu0 %v1694
    %1981 = vmatprep.subr.bf16.mxu0 %v1691
    %1982 = vmatpush1.bf16.msra.mxu0 %v1690
    %1983 = vmatprep.subr.bf16.mxu0 %v1687
    %1984 = vmatpush1.bf16.msra.mxu0 %v1686
    %1985 = vmatprep.subr.bf16.mxu0 %v1683
    %1986 = vmatpush1.bf16.msra.mxu0 %v1682
    %1987 = vmatprep.subr.bf16.mxu0 %v1679
    %1988 = vmatpush1.bf16.msra.mxu0 %v1678
    %1989 = vmatprep.subr.bf16.mxu0 %v1675
    %1990 = vmatpush1.bf16.msra.mxu0 %v1674
    %1991 = vmatprep.subr.bf16.mxu0 %v1671
    %1992 = vmatpush1.bf16.msra.mxu0 %v1670
    %1993 = vmatprep.subr.bf16.mxu0 %v1667
    %1994 = vmatpush1.bf16.msra.mxu0 %v1666
    %1995 = vmatprep.subr.bf16.mxu0 %v1727
    %1996 = vmatpush2.bf16.msra.mxu0 %v1726
    %1997 = vmatprep.subr.bf16.mxu0 %v1723
    %1998 = vmatpush2.bf16.msra.mxu0 %v1722
    %1999 = vmatprep.subr.bf16.mxu0 %v1719
    %2000 = vmatpush2.bf16.msra.mxu0 %v1718
    %2001 = vmatprep.subr.bf16.mxu0 %v1715
    %2002 = vmatpush2.bf16.msra.mxu0 %v1714
    %2003 = vmatprep.subr.bf16.mxu0 %v1711
    %2004 = vmatpush2.bf16.msra.mxu0 %v1710
    %2005 = vmatprep.subr.bf16.mxu0 %v1707
    %2006 = vmatpush2.bf16.msra.mxu0 %v1706
    %2007 = vmatprep.subr.bf16.mxu0 %v1703
    %2008 = vmatpush2.bf16.msra.mxu0 %v1702
    %2009 = vmatprep.subr.bf16.mxu0 %v1699
    %2010 = vmatpush2.bf16.msra.mxu0 %v1698
    %2011 = vmatprep.mubr.bf16.mxu0 %v1065
    %2012 = vmatmul.mubr.bf16.gmra.mxu0 %v1064
    %v2013 = vpop.f32.mrf.mxu0
    %v2014 = vadd.f32 %v1973, %v2013
    %v2015 = vpop.f32.mrf.mxu0
    %v2016 = vadd.f32 %v1975, %v2015
    %v2017 = vpop.f32.mrf.mxu0
    %v2018 = vpop.f32.mrf.mxu0
    %2019 = vdwg.mxu0
    %v2020 = vmax.f32 %v1932, 0.0
    %v2021 = vmax.f32 %v1934, 0.0
    %v2022 = vmax.f32 %v2014, 0.0
    %v2023 = vmax.f32 %v2016, 0.0
    %v2024 = vpack.c.bf16 %v2020, %v2020
    %v2025 = vpack.c.bf16 %v2021, %v2021
    %v2026 = vpack.c.bf16 %v2022, %v2022
    %v2027 = vpack.c.bf16 %v2023, %v2023
    %v2028 = vld [vmem:[#allocation9] sm:$0xf]
    %v2029 = vld [vmem:[#allocation9 + $0x4] sm:$0xf]
    %v2030 = vld [vmem:[#allocation9 + $0x8] sm:$0xf]
    %v2031 = vld [vmem:[#allocation9 + $0xc] sm:$0xf]
    %v2032 = vld [vmem:[#allocation9 + $0x10] sm:$0xf]
    %v2033 = vld [vmem:[#allocation9 + $0x14] sm:$0xf]
    %v2034 = vld [vmem:[#allocation9 + $0x18] sm:$0xf]
    %v2035 = vld [vmem:[#allocation9 + $0x1c] sm:$0xf]
    %v2036 = vld [vmem:[#allocation9 + $0x20] sm:$0xf]
    %v2037 = vld [vmem:[#allocation9 + $0x24] sm:$0xf]
    %v2038 = vld [vmem:[#allocation9 + $0x28] sm:$0xf]
    %v2039 = vld [vmem:[#allocation9 + $0x2c] sm:$0xf]
    %v2040 = vld [vmem:[#allocation9 + $0x30] sm:$0xf]
    %v2041 = vld [vmem:[#allocation9 + $0x34] sm:$0xf]
    %v2042 = vld [vmem:[#allocation9 + $0x38] sm:$0xf]
    %v2043 = vld [vmem:[#allocation9 + $0x3c] sm:$0xf]
    %v2044 = vld [vmem:[#allocation9 + $0x40] sm:$0xf]
    %v2045 = vld [vmem:[#allocation9 + $0x44] sm:$0xf]
    %v2046 = vld [vmem:[#allocation9 + $0x48] sm:$0xf]
    %v2047 = vld [vmem:[#allocation9 + $0x4c] sm:$0xf]
    %v2048 = vld [vmem:[#allocation9 + $0x50] sm:$0xf]
    %v2049 = vld [vmem:[#allocation9 + $0x54] sm:$0xf]
    %v2050 = vld [vmem:[#allocation9 + $0x58] sm:$0xf]
    %v2051 = vld [vmem:[#allocation9 + $0x5c] sm:$0xf]
    %v2052 = vld [vmem:[#allocation9 + $0x60] sm:$0xf]
    %v2053 = vld [vmem:[#allocation9 + $0x64] sm:$0xf]
    %v2054 = vld [vmem:[#allocation9 + $0x68] sm:$0xf]
    %v2055 = vld [vmem:[#allocation9 + $0x6c] sm:$0xf]
    %v2056 = vld [vmem:[#allocation9 + $0x70] sm:$0xf]
    %v2057 = vld [vmem:[#allocation9 + $0x74] sm:$0xf]
    %v2058 = vld [vmem:[#allocation9 + $0x78] sm:$0xf]
    %v2059 = vld [vmem:[#allocation9 + $0x7c] sm:$0xf]
    %v2060 = vld [vmem:[#allocation9 + $0x80] sm:$0xf]
    %v2061 = vld [vmem:[#allocation9 + $0x84] sm:$0xf]
    %v2062 = vld [vmem:[#allocation9 + $0x88] sm:$0xf]
    %v2063 = vld [vmem:[#allocation9 + $0x8c] sm:$0xf]
    %v2064 = vld [vmem:[#allocation9 + $0x90] sm:$0xf]
    %v2065 = vld [vmem:[#allocation9 + $0x94] sm:$0xf]
    %v2066 = vld [vmem:[#allocation9 + $0x98] sm:$0xf]
    %v2067 = vld [vmem:[#allocation9 + $0x9c] sm:$0xf]
    %v2068 = vld [vmem:[#allocation9 + $0xa0] sm:$0xf]
    %v2069 = vld [vmem:[#allocation9 + $0xa4] sm:$0xf]
    %v2070 = vld [vmem:[#allocation9 + $0xa8] sm:$0xf]
    %v2071 = vld [vmem:[#allocation9 + $0xac] sm:$0xf]
    %v2072 = vld [vmem:[#allocation9 + $0xb0] sm:$0xf]
    %v2073 = vld [vmem:[#allocation9 + $0xb4] sm:$0xf]
    %v2074 = vld [vmem:[#allocation9 + $0xb8] sm:$0xf]
    %v2075 = vld [vmem:[#allocation9 + $0xbc] sm:$0xf]
    %v2076 = vld [vmem:[#allocation9 + $0xc0] sm:$0xf]
    %v2077 = vld [vmem:[#allocation9 + $0xc4] sm:$0xf]
    %v2078 = vld [vmem:[#allocation9 + $0xc8] sm:$0xf]
    %v2079 = vld [vmem:[#allocation9 + $0xcc] sm:$0xf]
    %v2080 = vld [vmem:[#allocation9 + $0xd0] sm:$0xf]
    %v2081 = vld [vmem:[#allocation9 + $0xd4] sm:$0xf]
    %v2082 = vld [vmem:[#allocation9 + $0xd8] sm:$0xf]
    %v2083 = vld [vmem:[#allocation9 + $0xdc] sm:$0xf]
    %v2084 = vld [vmem:[#allocation9 + $0xe0] sm:$0xf]
    %v2085 = vld [vmem:[#allocation9 + $0xe4] sm:$0xf]
    %v2086 = vld [vmem:[#allocation9 + $0xe8] sm:$0xf]
    %v2087 = vld [vmem:[#allocation9 + $0xec] sm:$0xf]
    %v2088 = vld [vmem:[#allocation9 + $0xf0] sm:$0xf]
    %v2089 = vld [vmem:[#allocation9 + $0xf4] sm:$0xf]
    %v2090 = vld [vmem:[#allocation9 + $0xf8] sm:$0xf]
    %v2091 = vld [vmem:[#allocation9 + $0xfc] sm:$0xf]
    %v2156 = vunpack.c.l.b16 %v2028
    %v2157 = vunpack.c.l.b16 %v2029
    %v2158 = vunpack.c.l.b16 %v2030
    %v2159 = vunpack.c.l.b16 %v2031
    %v2160 = vunpack.c.l.b16 %v2032
    %v2161 = vunpack.c.l.b16 %v2033
    %v2162 = vunpack.c.l.b16 %v2034
    %v2163 = vunpack.c.l.b16 %v2035
    %v2164 = vunpack.c.l.b16 %v2036
    %v2165 = vunpack.c.l.b16 %v2037
    %v2166 = vunpack.c.l.b16 %v2038
    %v2167 = vunpack.c.l.b16 %v2039
    %v2168 = vunpack.c.l.b16 %v2040
    %v2169 = vunpack.c.l.b16 %v2041
    %v2170 = vunpack.c.l.b16 %v2042
    %v2171 = vunpack.c.l.b16 %v2043
    %v2172 = vunpack.c.l.b16 %v2044
    %v2173 = vunpack.c.l.b16 %v2045
    %v2174 = vunpack.c.l.b16 %v2046
    %v2175 = vunpack.c.l.b16 %v2047
    %v2176 = vunpack.c.l.b16 %v2048
    %v2177 = vunpack.c.l.b16 %v2049
    %v2178 = vunpack.c.l.b16 %v2050
    %v2179 = vunpack.c.l.b16 %v2051
    %v2180 = vunpack.c.l.b16 %v2052
    %v2181 = vunpack.c.l.b16 %v2053
    %v2182 = vunpack.c.l.b16 %v2054
    %v2183 = vunpack.c.l.b16 %v2055
    %v2184 = vunpack.c.l.b16 %v2056
    %v2185 = vunpack.c.l.b16 %v2057
    %v2186 = vunpack.c.l.b16 %v2058
    %v2187 = vunpack.c.l.b16 %v2059
    %v2188 = vunpack.c.l.b16 %v2060
    %v2189 = vunpack.c.l.b16 %v2061
    %v2190 = vunpack.c.l.b16 %v2062
    %v2191 = vunpack.c.l.b16 %v2063
    %v2192 = vunpack.c.l.b16 %v2064
    %v2193 = vunpack.c.l.b16 %v2065
    %v2194 = vunpack.c.l.b16 %v2066
    %v2195 = vunpack.c.l.b16 %v2067
    %v2196 = vunpack.c.l.b16 %v2068
    %v2197 = vunpack.c.l.b16 %v2069
    %v2198 = vunpack.c.l.b16 %v2070
    %v2199 = vunpack.c.l.b16 %v2071
    %v2200 = vunpack.c.l.b16 %v2072
    %v2201 = vunpack.c.l.b16 %v2073
    %v2202 = vunpack.c.l.b16 %v2074
    %v2203 = vunpack.c.l.b16 %v2075
    %v2204 = vunpack.c.l.b16 %v2076
    %v2205 = vunpack.c.l.b16 %v2077
    %v2206 = vunpack.c.l.b16 %v2078
    %v2207 = vunpack.c.l.b16 %v2079
    %v2208 = vunpack.c.l.b16 %v2080
    %v2209 = vunpack.c.l.b16 %v2081
    %v2210 = vunpack.c.l.b16 %v2082
    %v2211 = vunpack.c.l.b16 %v2083
    %v2212 = vunpack.c.l.b16 %v2084
    %v2213 = vunpack.c.l.b16 %v2085
    %v2214 = vunpack.c.l.b16 %v2086
    %v2215 = vunpack.c.l.b16 %v2087
    %v2216 = vunpack.c.l.b16 %v2088
    %v2217 = vunpack.c.l.b16 %v2089
    %v2218 = vunpack.c.l.b16 %v2090
    %v2219 = vunpack.c.l.b16 %v2091
    %v2220 = vpack.c.b16 %v2157, %v2156
    %v2221 = vpack.c.b16 %v2159, %v2158
    %v2222 = vpack.c.b16 %v2161, %v2160
    %v2223 = vpack.c.b16 %v2163, %v2162
    %v2224 = vpack.c.b16 %v2165, %v2164
    %v2225 = vpack.c.b16 %v2167, %v2166
    %v2226 = vpack.c.b16 %v2169, %v2168
    %v2227 = vpack.c.b16 %v2171, %v2170
    %v2228 = vpack.c.b16 %v2173, %v2172
    %v2229 = vpack.c.b16 %v2175, %v2174
    %v2230 = vpack.c.b16 %v2177, %v2176
    %v2231 = vpack.c.b16 %v2179, %v2178
    %v2232 = vpack.c.b16 %v2181, %v2180
    %v2233 = vpack.c.b16 %v2183, %v2182
    %v2234 = vpack.c.b16 %v2185, %v2184
    %v2235 = vpack.c.b16 %v2187, %v2186
    %v2236 = vpack.c.b16 %v2189, %v2188
    %v2237 = vpack.c.b16 %v2191, %v2190
    %v2238 = vpack.c.b16 %v2193, %v2192
    %v2239 = vpack.c.b16 %v2195, %v2194
    %v2240 = vpack.c.b16 %v2197, %v2196
    %v2241 = vpack.c.b16 %v2199, %v2198
    %v2242 = vpack.c.b16 %v2201, %v2200
    %v2243 = vpack.c.b16 %v2203, %v2202
    %v2244 = vpack.c.b16 %v2205, %v2204
    %v2245 = vpack.c.b16 %v2207, %v2206
    %v2246 = vpack.c.b16 %v2209, %v2208
    %v2247 = vpack.c.b16 %v2211, %v2210
    %v2248 = vpack.c.b16 %v2213, %v2212
    %v2249 = vpack.c.b16 %v2215, %v2214
    %v2250 = vpack.c.b16 %v2217, %v2216
    %v2251 = vpack.c.b16 %v2219, %v2218
    %2284 = vmatprep.subr.bf16.mxu0 0
    %2285 = vmatpush1.bf16.msra.mxu0 %v2227
    %2286 = vmatprep.subr.bf16.mxu0 0
    %2287 = vmatpush1.bf16.msra.mxu0 %v2226
    %2288 = vmatprep.subr.bf16.mxu0 0
    %2289 = vmatpush1.bf16.msra.mxu0 %v2225
    %2290 = vmatprep.subr.bf16.mxu0 0
    %2291 = vmatpush1.bf16.msra.mxu0 %v2224
    %2292 = vmatprep.subr.bf16.mxu0 0
    %2293 = vmatpush1.bf16.msra.mxu0 %v2223
    %2294 = vmatprep.subr.bf16.mxu0 0
    %2295 = vmatpush1.bf16.msra.mxu0 %v2222
    %2296 = vmatprep.subr.bf16.mxu0 0
    %2297 = vmatpush1.bf16.msra.mxu0 %v2221
    %2298 = vmatprep.subr.bf16.mxu0 0
    %2299 = vmatpush1.bf16.msra.mxu0 %v2220
    %2300 = vmatprep.subr.bf16.mxu0 0
    %2301 = vmatpush2.bf16.msra.mxu0 %v2235
    %2302 = vmatprep.subr.bf16.mxu0 0
    %2303 = vmatpush2.bf16.msra.mxu0 %v2234
    %2304 = vmatprep.subr.bf16.mxu0 0
    %2305 = vmatpush2.bf16.msra.mxu0 %v2233
    %2306 = vmatprep.subr.bf16.mxu0 0
    %2307 = vmatpush2.bf16.msra.mxu0 %v2232
    %2308 = vmatprep.subr.bf16.mxu0 0
    %2309 = vmatpush2.bf16.msra.mxu0 %v2231
    %2310 = vmatprep.subr.bf16.mxu0 0
    %2311 = vmatpush2.bf16.msra.mxu0 %v2230
    %2312 = vmatprep.subr.bf16.mxu0 0
    %2313 = vmatpush2.bf16.msra.mxu0 %v2229
    %2314 = vmatprep.subr.bf16.mxu0 0
    %2315 = vmatpush2.bf16.msra.mxu0 %v2228
    %2316 = vmatprep.mubr.bf16.mxu0 %v2025
    %2317 = vmatmul.mubr.bf16.gmra.mxu0 %v2024
    %v2318 = vpop.f32.mrf.mxu0
    %v2319 = vadd.f32 0.0, %v2318
    %v2320 = vpop.f32.mrf.mxu0
    %v2321 = vpop.f32.mrf.mxu0
    %v2322 = vpop.f32.mrf.mxu0
    %2323 = vdwg.mxu0
    %2324 = vmatprep.subr.bf16.mxu0 0
    %2325 = vmatpush1.bf16.msra.mxu0 %v2243
    %2326 = vmatprep.subr.bf16.mxu0 0
    %2327 = vmatpush1.bf16.msra.mxu0 %v2242
    %2328 = vmatprep.subr.bf16.mxu0 0
    %2329 = vmatpush1.bf16.msra.mxu0 %v2241
    %2330 = vmatprep.subr.bf16.mxu0 0
    %2331 = vmatpush1.bf16.msra.mxu0 %v2240
    %2332 = vmatprep.subr.bf16.mxu0 0
    %2333 = vmatpush1.bf16.msra.mxu0 %v2239
    %2334 = vmatprep.subr.bf16.mxu0 0
    %2335 = vmatpush1.bf16.msra.mxu0 %v2238
    %2336 = vmatprep.subr.bf16.mxu0 0
    %2337 = vmatpush1.bf16.msra.mxu0 %v2237
    %2338 = vmatprep.subr.bf16.mxu0 0
    %2339 = vmatpush1.bf16.msra.mxu0 %v2236
    %2340 = vmatprep.subr.bf16.mxu0 0
    %2341 = vmatpush2.bf16.msra.mxu0 %v2251
    %2342 = vmatprep.subr.bf16.mxu0 0
    %2343 = vmatpush2.bf16.msra.mxu0 %v2250
    %2344 = vmatprep.subr.bf16.mxu0 0
    %2345 = vmatpush2.bf16.msra.mxu0 %v2249
    %2346 = vmatprep.subr.bf16.mxu0 0
    %2347 = vmatpush2.bf16.msra.mxu0 %v2248
    %2348 = vmatprep.subr.bf16.mxu0 0
    %2349 = vmatpush2.bf16.msra.mxu0 %v2247
    %2350 = vmatprep.subr.bf16.mxu0 0
    %2351 = vmatpush2.bf16.msra.mxu0 %v2246
    %2352 = vmatprep.subr.bf16.mxu0 0
    %2353 = vmatpush2.bf16.msra.mxu0 %v2245
    %2354 = vmatprep.subr.bf16.mxu0 0
    %2355 = vmatpush2.bf16.msra.mxu0 %v2244
    %2356 = vmatprep.mubr.bf16.mxu0 %v2027
    %2357 = vmatmul.mubr.bf16.gmra.mxu0 %v2026
    %v2358 = vpop.f32.mrf.mxu0
    %v2359 = vadd.f32 %v2319, %v2358
    %v2360 = vpop.f32.mrf.mxu0
    %v2361 = vpop.f32.mrf.mxu0
    %v2362 = vpop.f32.mrf.mxu0
    %2363 = vdwg.mxu0
    %2364 = vst [vmem:[%s6] sm:$0xff] %v2359
    // Predicated region
    $region46: #{column_decoder_forward.3} parent=1 // pred_check
      _
    $region47: #{column_decoder_forward.3} parent=1 // pred_check_branch
      %2366 = sbr.rel (0) target = $region49
    $region48: #{column_decoder_forward.3} parent=1 // pred_region
      _
    $region49: #{column_decoder_forward.3} parent=1 // pred_fallthru
      _
    // Predicated region
    $region50: #{column_decoder_forward.3} parent=1 // pred_check
      _
    $region51: #{column_decoder_forward.3} parent=1 // pred_check_branch
      %2368 = sbr.rel (0) target = $region53
    $region52: #{column_decoder_forward.3} parent=1 // pred_region
      _
    $region53: #{column_decoder_forward.3} parent=1 // pred_fallthru
      _
    %2369 = vsyncpa [#allocation3], 1
    %2370 = vsyncpa [#allocation5], 1
    %2371 = vsyncpa [#allocation8], 1

</llo_original>
